<compile_context>
chip_gen: v6e
topology: v6e:2x2x1
jax: 0.10.0
libtpu: 0.0.40
codegen_flags: <defaults>
</compile_context>

<pallas_src>
from functools import partial

import jax
import jax.numpy as jnp
from jax import lax
from jax.experimental import pallas as pl
from jax.experimental.pallas import tpu as pltpu

# (dilation, padding) of the three depthwise branches; all map HxW -> (H-2)x(W-2).
_DW_CONVS = ((1, 0), (2, 1), (3, 2))
_PAD = 2          # halo needed by the dilation-3 branch
_K = 3            # ACFF only shape-checks (conv1+conv2+conv3) for kernel_size == 3


def _tap_table():
    """Group the 27 depthwise taps by their row offset in the +2-padded activation."""
    taps = {}
    for m, (dil, p) in enumerate(_DW_CONVS):
        base = _PAD - p
        for ki in range(_K):
            for kj in range(_K):
                taps.setdefault(base + ki * dil, []).append((m, ki, kj, base + kj * dil))
    return taps          # {row_offset r: [(branch, ki, kj, col_offset s), ...]}


# ----------------------------------------------------------------------------
# Fused kernel: one batch image per grid step
# ----------------------------------------------------------------------------
def _acff_kernel(x_ref, wdw_ref, wf_ref, bias_ref, scp_ref, scn_ref, shf_ref,
                 o_ref, xp_ref, acc_ref, acc2_ref, *, cin, cout, h, w, oh, ow):
    hp, wp = h + 2 * _PAD, w + 2 * _PAD

    # ---- in-kernel halo pad: zero-filled VMEM scratch + one interior store ----------
    xp_ref[...] = jnp.zeros((cin, hp, wp), jnp.float32)
    xp_ref[:, _PAD:_PAD + h, _PAD:_PAD + w] = x_ref[...].astype(jnp.float32)
    xp = xp_ref[...]                                               # (cin, hp, wp)

    # ---- sum of the three dilated depthwise 3x3 convs --------------------------------
    taps = _tap_table()
    for c in range(cin):
        dw = None
        for r, row_taps in taps.items():
            band = xp[c, r:r + oh, :]                              # (oh, wp) row band
            for (m, ki, kj, s) in row_taps:
                wt = wdw_ref[(m * cin + c) * (_K * _K) + ki * _K + kj]   # SMEM scalar
                t = band[:, s:s + ow] * wt
                dw = t if dw is None else dw + t                   # first tap initializes
        acc_ref[c] = dw                                            # bounded VMEM scratch

    # ---- lane-dense relayout: (cin, oh, ow) -> (cin, oh*ow), done once per step ------
    for i in range(oh):
        acc2_ref[:, i * ow:(i + 1) * ow] = acc_ref[:, i, :]

    # ---- 1x1 fusion conv on the MXU + folded bias / LeakyReLU / eval-BN --------------
    z = jnp.dot(wf_ref[...], acc2_ref[...],
                precision=lax.Precision.HIGHEST,
                preferred_element_type=jnp.float32)                # (cout, oh*ow)
    z = z + bias_ref[...]                                          # fused_conv + dw biases
    y = jnp.where(z > 0.0, scp_ref[...], scn_ref[...]) * z + shf_ref[...]
    # Dropout(0.2) is identity in eval mode.
    o_ref[...] = y                                                 # single lane-dense store


# ----------------------------------------------------------------------------
# Wrapper: tiny scalar folding + one pallas_call (grid over batch)
# ----------------------------------------------------------------------------
def acff_forward(x, params, *, eps=1e-5):
    n, cin, h, w = x.shape
    k = params['conv1_w'].shape[-1]
    assert k == _K, "ACFF forward only shape-checks for kernel_size=3"
    cout = params['fused_w'].shape[0]
    oh, ow = h - (k - 1), w - (k - 1)
    s_sp = oh * ow
    hp, wp = h + 2 * _PAD, w + 2 * _PAD

    # O(cin*cout) parameter folding, once per call.
    wdw_flat = jnp.stack([params['conv1_w'], params['conv2_w'],
                          params['conv3_w']]).astype(jnp.float32).reshape(-1)      # (3*cin*9,)
    b_dw = (params['conv1_b'] + params['conv2_b'] + params['conv3_b']).astype(jnp.float32)
    wf = params['fused_w'].reshape(cout, cin).astype(jnp.float32)
    bias_eff = (params['fused_b']
                + jnp.dot(wf, b_dw, precision=lax.Precision.HIGHEST))               # (cout,)
    bn_scale = params['bn_gamma'] * lax.rsqrt(params['bn_var'] + eps)
    bn_shift = params['bn_beta'] - params['bn_mean'] * bn_scale

    bias_eff = bias_eff.astype(jnp.float32).reshape(cout, 1)
    scale_pos = bn_scale.astype(jnp.float32).reshape(cout, 1)
    scale_neg = (0.01 * bn_scale).astype(jnp.float32).reshape(cout, 1)
    shift = bn_shift.astype(jnp.float32).reshape(cout, 1)

    kernel = partial(_acff_kernel, cin=cin, cout=cout, h=h, w=w, oh=oh, ow=ow)

    out_flat = pl.pallas_call(
        kernel,
        out_shape=jax.ShapeDtypeStruct((n, cout, s_sp), jnp.float32),
        grid=(n,),
        in_specs=[
            pl.BlockSpec((None, cin, h, w), lambda b: (b, 0, 0, 0)),        # x: one image / step
            pl.BlockSpec(memory_space=pltpu.MemorySpace.SMEM),              # depthwise tap scalars
            pl.BlockSpec((cout, cin), lambda b: (0, 0)),                    # 1x1 weights (MXU lhs)
            pl.BlockSpec((cout, 1), lambda b: (0, 0)),                      # folded bias
            pl.BlockSpec((cout, 1), lambda b: (0, 0)),                      # BN scale (pos slope)
            pl.BlockSpec((cout, 1), lambda b: (0, 0)),                      # 0.01 * BN scale
            pl.BlockSpec((cout, 1), lambda b: (0, 0)),                      # BN shift
        ],
        out_specs=pl.BlockSpec((None, cout, s_sp), lambda b: (b, 0, 0)),
        scratch_shapes=[
            pltpu.VMEM((cin, hp, wp), jnp.float32),     # zero-padded activation (halo)
            pltpu.VMEM((cin, oh, ow), jnp.float32),     # depthwise channel sums
            pltpu.VMEM((cin, s_sp), jnp.float32),       # lane-dense matmul RHS
        ],
        compiler_params=pltpu.CompilerParams(dimension_semantics=("parallel",)),
    )(x, wdw_flat, wf, bias_eff, scale_pos, scale_neg, shift)

    # Metadata-level reshape back to NCHW, outside the kernel.
    return out_flat.reshape(n, cout, oh, ow)


# ----------------------------------------------------------------------------
# Pure-JAX reference (same eval-mode semantics) for validation
# ----------------------------------------------------------------------------
def acff_reference(x, params, *, eps=1e-5):
    dn = ('NCHW', 'OIHW', 'NCHW')
    prec = lax.Precision.HIGHEST

    def dwconv(w, b, padding, dilation):
        y = lax.conv_general_dilated(
            x, w, window_strides=(1, 1),
            padding=((padding, padding), (padding, padding)),
            rhs_dilation=(dilation, dilation),
            dimension_numbers=dn, feature_group_count=x.shape[1], precision=prec)
        return y + b[None, :, None, None]

    s = (dwconv(params['conv1_w'], params['conv1_b'], 0, 1)
         + dwconv(params['conv2_w'], params['conv2_b'], 1, 2)
         + dwconv(params['conv3_w'], params['conv3_b'], 2, 3))
    y = lax.conv_general_dilated(s, params['fused_w'], (1, 1), ((0, 0), (0, 0)),
                                 dimension_numbers=dn, precision=prec)
    y = y + params['fused_b'][None, :, None, None]
    y = jnp.where(y > 0, y, 0.01 * y)
    scale = params['bn_gamma'] / jnp.sqrt(params['bn_var'] + eps)
    shift = params['bn_beta'] - params['bn_mean'] * scale
    return y * scale[None, :, None, None] + shift[None, :, None, None]


# ----------------------------------------------------------------------------
# Deterministic parameter init (PyTorch layouts; non-trivial BN running stats)
# ----------------------------------------------------------------------------
def init_params(key, cin, cout, k=3):
    ks = jax.random.split(key, 12)
    return {
        'conv1_w': 0.1 * jax.random.normal(ks[0], (cin, 1, k, k), jnp.float32),
        'conv1_b': 0.1 * jax.random.normal(ks[1], (cin,), jnp.float32),
        'conv2_w': 0.1 * jax.random.normal(ks[2], (cin, 1, k, k), jnp.float32),
        'conv2_b': 0.1 * jax.random.normal(ks[3], (cin,), jnp.float32),
        'conv3_w': 0.1 * jax.random.normal(ks[4], (cin, 1, k, k), jnp.float32),
        'conv3_b': 0.1 * jax.random.normal(ks[5], (cin,), jnp.float32),
        'fused_w': 0.1 * jax.random.normal(ks[6], (cout, cin, 1, 1), jnp.float32),
        'fused_b': 0.1 * jax.random.normal(ks[7], (cout,), jnp.float32),
        'bn_gamma': 1.0 + 0.1 * jax.random.normal(ks[8], (cout,), jnp.float32),
        'bn_beta': 0.1 * jax.random.normal(ks[9], (cout,), jnp.float32),
        'bn_mean': 0.1 * jax.random.normal(ks[10], (cout,), jnp.float32),
        'bn_var': 1.0 + 0.5 * jax.nn.sigmoid(jax.random.normal(ks[11], (cout,), jnp.float32)),
    }


# ----------------------------------------------------------------------------
if __name__ == "__main__":
    key = jax.random.PRNGKey(0)
    kp, kx = jax.random.split(key)
    cin, cout = 4, 8
    params = init_params(kp, cin, cout, _K)
    x = jax.random.normal(kx, (2, cin, 16, 16), jnp.float32)      # NCHW, like PyTorch

    fwd = jax.jit(acff_forward)
    out = fwd(x, params)
    jax.block_until_ready(out)
    assert out.shape == (2, cout, 14, 14), out.shape

    ref = acff_reference(x, params)
    err = float(jnp.max(jnp.abs(out - ref)))
    assert jnp.allclose(out, ref, atol=1e-3, rtol=1e-3), f"max abs err = {err}"
    print("KERNEL_OK")
</pallas_src>

<mosaic_0001>
module attributes {stable_mosaic.version = 11 : i64} {
  func.func @_acff_kernel(%arg0: i32, %arg1: memref<1x4x16x16xf32, #tpu.memory_space<vmem>>, %arg2: memref<108xf32, #tpu.memory_space<smem>>, %arg3: memref<8x4xf32, #tpu.memory_space<vmem>>, %arg4: memref<8x1xf32, #tpu.memory_space<vmem>>, %arg5: memref<8x1xf32, #tpu.memory_space<vmem>>, %arg6: memref<8x1xf32, #tpu.memory_space<vmem>>, %arg7: memref<8x1xf32, #tpu.memory_space<vmem>>, %arg8: memref<1x8x196xf32, #tpu.memory_space<vmem>>, %arg9: memref<4x20x20xf32, #tpu.memory_space<vmem>>, %arg10: memref<4x14x14xf32, #tpu.memory_space<vmem>>, %arg11: memref<4x196xf32, #tpu.memory_space<vmem>>) attributes {dimension_semantics = [#tpu.dimension_semantics<parallel>], iteration_bounds = array<i64: 2>, scalar_prefetch = 0 : i64, scratch_operands = 3 : i64, tpu.core_type = #tpu.core_type<tc>, window_params = [{transform_indices = @transform_0, window_bounds = array<i64: 1, 4, 16, 16>}, {transform_indices = @transform_1, window_bounds = array<i64: 108>}, {pipeline_mode = #tpu.pipeline_mode<synchronous>, transform_indices = @transform_2, window_bounds = array<i64: 8, 4>}, {pipeline_mode = #tpu.pipeline_mode<synchronous>, transform_indices = @transform_3, window_bounds = array<i64: 8, 1>}, {pipeline_mode = #tpu.pipeline_mode<synchronous>, transform_indices = @transform_4, window_bounds = array<i64: 8, 1>}, {pipeline_mode = #tpu.pipeline_mode<synchronous>, transform_indices = @transform_5, window_bounds = array<i64: 8, 1>}, {pipeline_mode = #tpu.pipeline_mode<synchronous>, transform_indices = @transform_6, window_bounds = array<i64: 8, 1>}, {transform_indices = @transform_7, window_bounds = array<i64: 1, 8, 196>}]} {
    %cst = arith.constant 0.000000e+00 : f32
    %0 = vector.broadcast %cst : f32 to vector<4x20x20xf32>
    %c0 = arith.constant 0 : index
    %c0_0 = arith.constant 0 : index
    %c0_1 = arith.constant 0 : index
    %1 = vector.load %arg9[%c0, %c0_0, %c0_1] : memref<4x20x20xf32, #tpu.memory_space<vmem>>, vector<4x20x20xf32>
    tpu.vector_store %arg9[%c0, %c0_0, %c0_1], %0 {strides = array<i32>} : memref<4x20x20xf32, #tpu.memory_space<vmem>>, vector<4x20x20xf32>,
    %c0_2 = arith.constant 0 : index
    %c0_3 = arith.constant 0 : index
    %c0_4 = arith.constant 0 : index
    %c0_5 = arith.constant 0 : index
    %2 = vector.load %arg1[%c0_2, %c0_3, %c0_4, %c0_5] : memref<1x4x16x16xf32, #tpu.memory_space<vmem>>, vector<1x4x16x16xf32>
    %3 = vector.shape_cast %2 : vector<1x4x16x16xf32> to vector<4x16x16xf32>
    %c0_6 = arith.constant 0 : index
    %c2 = arith.constant 2 : index
    %c2_7 = arith.constant 2 : index
    %4 = vector.load %arg9[%c0_6, %c2, %c2_7] : memref<4x20x20xf32, #tpu.memory_space<vmem>>, vector<4x16x16xf32>
    tpu.vector_store %arg9[%c0_6, %c2, %c2_7], %3 {strides = array<i32>} : memref<4x20x20xf32, #tpu.memory_space<vmem>>, vector<4x16x16xf32>,
    %c0_8 = arith.constant 0 : index
    %c0_9 = arith.constant 0 : index
    %c0_10 = arith.constant 0 : index
    %5 = vector.load %arg9[%c0_8, %c0_9, %c0_10] : memref<4x20x20xf32, #tpu.memory_space<vmem>>, vector<4x20x20xf32>
    %6 = vector.extract_strided_slice %5 {offsets = [0, 2, 0], sizes = [1, 14, 20], strides = [1, 1, 1]} : vector<4x20x20xf32> to vector<1x14x20xf32>
    %7 = vector.shape_cast %6 : vector<1x14x20xf32> to vector<14x20xf32>
    %c0_11 = arith.constant 0 : index
    %8 = memref.load %arg2[%c0_11] : memref<108xf32, #tpu.memory_space<smem>>
    %9 = vector.extract_strided_slice %7 {offsets = [0, 2], sizes = [14, 14], strides = [1, 1]} : vector<14x20xf32> to vector<14x14xf32>
    %10 = vector.broadcast %8 : f32 to vector<14x14xf32>
    %11 = arith.mulf %9, %10 : vector<14x14xf32>
    %c1 = arith.constant 1 : index
    %12 = memref.load %arg2[%c1] : memref<108xf32, #tpu.memory_space<smem>>
    %13 = vector.extract_strided_slice %7 {offsets = [0, 3], sizes = [14, 14], strides = [1, 1]} : vector<14x20xf32> to vector<14x14xf32>
    %14 = vector.broadcast %12 : f32 to vector<14x14xf32>
    %15 = arith.mulf %13, %14 : vector<14x14xf32>
    %16 = arith.addf %11, %15 : vector<14x14xf32>
    %c2_12 = arith.constant 2 : index
    %17 = memref.load %arg2[%c2_12] : memref<108xf32, #tpu.memory_space<smem>>
    %18 = vector.extract_strided_slice %7 {offsets = [0, 4], sizes = [14, 14], strides = [1, 1]} : vector<14x20xf32> to vector<14x14xf32>
    %19 = vector.broadcast %17 : f32 to vector<14x14xf32>
    %20 = arith.mulf %18, %19 : vector<14x14xf32>
    %21 = arith.addf %16, %20 : vector<14x14xf32>
    %22 = vector.extract_strided_slice %5 {offsets = [0, 3, 0], sizes = [1, 14, 20], strides = [1, 1, 1]} : vector<4x20x20xf32> to vector<1x14x20xf32>
    %23 = vector.shape_cast %22 : vector<1x14x20xf32> to vector<14x20xf32>
    %c3 = arith.constant 3 : index
    %24 = memref.load %arg2[%c3] : memref<108xf32, #tpu.memory_space<smem>>
    %25 = vector.extract_strided_slice %23 {offsets = [0, 2], sizes = [14, 14], strides = [1, 1]} : vector<14x20xf32> to vector<14x14xf32>
    %26 = vector.broadcast %24 : f32 to vector<14x14xf32>
    %27 = arith.mulf %25, %26 : vector<14x14xf32>
    %28 = arith.addf %21, %27 : vector<14x14xf32>
    %c4 = arith.constant 4 : index
    %29 = memref.load %arg2[%c4] : memref<108xf32, #tpu.memory_space<smem>>
    %30 = vector.extract_strided_slice %23 {offsets = [0, 3], sizes = [14, 14], strides = [1, 1]} : vector<14x20xf32> to vector<14x14xf32>
    %31 = vector.broadcast %29 : f32 to vector<14x14xf32>
    %32 = arith.mulf %30, %31 : vector<14x14xf32>
    %33 = arith.addf %28, %32 : vector<14x14xf32>
    %c5 = arith.constant 5 : index
    %34 = memref.load %arg2[%c5] : memref<108xf32, #tpu.memory_space<smem>>
    %35 = vector.extract_strided_slice %23 {offsets = [0, 4], sizes = [14, 14], strides = [1, 1]} : vector<14x20xf32> to vector<14x14xf32>
    %36 = vector.broadcast %34 : f32 to vector<14x14xf32>
    %37 = arith.mulf %35, %36 : vector<14x14xf32>
    %38 = arith.addf %33, %37 : vector<14x14xf32>
    %c39 = arith.constant 39 : index
    %39 = memref.load %arg2[%c39] : memref<108xf32, #tpu.memory_space<smem>>
    %40 = vector.extract_strided_slice %23 {offsets = [0, 1], sizes = [14, 14], strides = [1, 1]} : vector<14x20xf32> to vector<14x14xf32>
    %41 = vector.broadcast %39 : f32 to vector<14x14xf32>
    %42 = arith.mulf %40, %41 : vector<14x14xf32>
    %43 = arith.addf %38, %42 : vector<14x14xf32>
    %c40 = arith.constant 40 : index
    %44 = memref.load %arg2[%c40] : memref<108xf32, #tpu.memory_space<smem>>
    %45 = vector.extract_strided_slice %23 {offsets = [0, 3], sizes = [14, 14], strides = [1, 1]} : vector<14x20xf32> to vector<14x14xf32>
    %46 = vector.broadcast %44 : f32 to vector<14x14xf32>
    %47 = arith.mulf %45, %46 : vector<14x14xf32>
    %48 = arith.addf %43, %47 : vector<14x14xf32>
    %c41 = arith.constant 41 : index
    %49 = memref.load %arg2[%c41] : memref<108xf32, #tpu.memory_space<smem>>
    %50 = vector.extract_strided_slice %23 {offsets = [0, 5], sizes = [14, 14], strides = [1, 1]} : vector<14x20xf32> to vector<14x14xf32>
    %51 = vector.broadcast %49 : f32 to vector<14x14xf32>
    %52 = arith.mulf %50, %51 : vector<14x14xf32>
    %53 = arith.addf %48, %52 : vector<14x14xf32>
    %c75 = arith.constant 75 : index
    %54 = memref.load %arg2[%c75] : memref<108xf32, #tpu.memory_space<smem>>
    %55 = vector.extract_strided_slice %23 {offsets = [0, 0], sizes = [14, 14], strides = [1, 1]} : vector<14x20xf32> to vector<14x14xf32>
    %56 = vector.broadcast %54 : f32 to vector<14x14xf32>
    %57 = arith.mulf %55, %56 : vector<14x14xf32>
    %58 = arith.addf %53, %57 : vector<14x14xf32>
    %c76 = arith.constant 76 : index
    %59 = memref.load %arg2[%c76] : memref<108xf32, #tpu.memory_space<smem>>
    %60 = vector.extract_strided_slice %23 {offsets = [0, 3], sizes = [14, 14], strides = [1, 1]} : vector<14x20xf32> to vector<14x14xf32>
    %61 = vector.broadcast %59 : f32 to vector<14x14xf32>
    %62 = arith.mulf %60, %61 : vector<14x14xf32>
    %63 = arith.addf %58, %62 : vector<14x14xf32>
    %c77 = arith.constant 77 : index
    %64 = memref.load %arg2[%c77] : memref<108xf32, #tpu.memory_space<smem>>
    %65 = vector.extract_strided_slice %23 {offsets = [0, 6], sizes = [14, 14], strides = [1, 1]} : vector<14x20xf32> to vector<14x14xf32>
    %66 = vector.broadcast %64 : f32 to vector<14x14xf32>
    %67 = arith.mulf %65, %66 : vector<14x14xf32>
    %68 = arith.addf %63, %67 : vector<14x14xf32>
    %69 = vector.extract_strided_slice %5 {offsets = [0, 4, 0], sizes = [1, 14, 20], strides = [1, 1, 1]} : vector<4x20x20xf32> to vector<1x14x20xf32>
    %70 = vector.shape_cast %69 : vector<1x14x20xf32> to vector<14x20xf32>
    %c6 = arith.constant 6 : index
    %71 = memref.load %arg2[%c6] : memref<108xf32, #tpu.memory_space<smem>>
    %72 = vector.extract_strided_slice %70 {offsets = [0, 2], sizes = [14, 14], strides = [1, 1]} : vector<14x20xf32> to vector<14x14xf32>
    %73 = vector.broadcast %71 : f32 to vector<14x14xf32>
    %74 = arith.mulf %72, %73 : vector<14x14xf32>
    %75 = arith.addf %68, %74 : vector<14x14xf32>
    %c7 = arith.constant 7 : index
    %76 = memref.load %arg2[%c7] : memref<108xf32, #tpu.memory_space<smem>>
    %77 = vector.extract_strided_slice %70 {offsets = [0, 3], sizes = [14, 14], strides = [1, 1]} : vector<14x20xf32> to vector<14x14xf32>
    %78 = vector.broadcast %76 : f32 to vector<14x14xf32>
    %79 = arith.mulf %77, %78 : vector<14x14xf32>
    %80 = arith.addf %75, %79 : vector<14x14xf32>
    %c8 = arith.constant 8 : index
    %81 = memref.load %arg2[%c8] : memref<108xf32, #tpu.memory_space<smem>>
    %82 = vector.extract_strided_slice %70 {offsets = [0, 4], sizes = [14, 14], strides = [1, 1]} : vector<14x20xf32> to vector<14x14xf32>
    %83 = vector.broadcast %81 : f32 to vector<14x14xf32>
    %84 = arith.mulf %82, %83 : vector<14x14xf32>
    %85 = arith.addf %80, %84 : vector<14x14xf32>
    %86 = vector.extract_strided_slice %5 {offsets = [0, 1, 0], sizes = [1, 14, 20], strides = [1, 1, 1]} : vector<4x20x20xf32> to vector<1x14x20xf32>
    %87 = vector.shape_cast %86 : vector<1x14x20xf32> to vector<14x20xf32>
    %c36 = arith.constant 36 : index
    %88 = memref.load %arg2[%c36] : memref<108xf32, #tpu.memory_space<smem>>
    %89 = vector.extract_strided_slice %87 {offsets = [0, 1], sizes = [14, 14], strides = [1, 1]} : vector<14x20xf32> to vector<14x14xf32>
    %90 = vector.broadcast %88 : f32 to vector<14x14xf32>
    %91 = arith.mulf %89, %90 : vector<14x14xf32>
    %92 = arith.addf %85, %91 : vector<14x14xf32>
    %c37 = arith.constant 37 : index
    %93 = memref.load %arg2[%c37] : memref<108xf32, #tpu.memory_space<smem>>
    %94 = vector.extract_strided_slice %87 {offsets = [0, 3], sizes = [14, 14], strides = [1, 1]} : vector<14x20xf32> to vector<14x14xf32>
    %95 = vector.broadcast %93 : f32 to vector<14x14xf32>
    %96 = arith.mulf %94, %95 : vector<14x14xf32>
    %97 = arith.addf %92, %96 : vector<14x14xf32>
    %c38 = arith.constant 38 : index
    %98 = memref.load %arg2[%c38] : memref<108xf32, #tpu.memory_space<smem>>
    %99 = vector.extract_strided_slice %87 {offsets = [0, 5], sizes = [14, 14], strides = [1, 1]} : vector<14x20xf32> to vector<14x14xf32>
    %100 = vector.broadcast %98 : f32 to vector<14x14xf32>
    %101 = arith.mulf %99, %100 : vector<14x14xf32>
    %102 = arith.addf %97, %101 : vector<14x14xf32>
    %103 = vector.extract_strided_slice %5 {offsets = [0, 5, 0], sizes = [1, 14, 20], strides = [1, 1, 1]} : vector<4x20x20xf32> to vector<1x14x20xf32>
    %104 = vector.shape_cast %103 : vector<1x14x20xf32> to vector<14x20xf32>
    %c42 = arith.constant 42 : index
    %105 = memref.load %arg2[%c42] : memref<108xf32, #tpu.memory_space<smem>>
    %106 = vector.extract_strided_slice %104 {offsets = [0, 1], sizes = [14, 14], strides = [1, 1]} : vector<14x20xf32> to vector<14x14xf32>
    %107 = vector.broadcast %105 : f32 to vector<14x14xf32>
    %108 = arith.mulf %106, %107 : vector<14x14xf32>
    %109 = arith.addf %102, %108 : vector<14x14xf32>
    %c43 = arith.constant 43 : index
    %110 = memref.load %arg2[%c43] : memref<108xf32, #tpu.memory_space<smem>>
    %111 = vector.extract_strided_slice %104 {offsets = [0, 3], sizes = [14, 14], strides = [1, 1]} : vector<14x20xf32> to vector<14x14xf32>
    %112 = vector.broadcast %110 : f32 to vector<14x14xf32>
    %113 = arith.mulf %111, %112 : vector<14x14xf32>
    %114 = arith.addf %109, %113 : vector<14x14xf32>
    %c44 = arith.constant 44 : index
    %115 = memref.load %arg2[%c44] : memref<108xf32, #tpu.memory_space<smem>>
    %116 = vector.extract_strided_slice %104 {offsets = [0, 5], sizes = [14, 14], strides = [1, 1]} : vector<14x20xf32> to vector<14x14xf32>
    %117 = vector.broadcast %115 : f32 to vector<14x14xf32>
    %118 = arith.mulf %116, %117 : vector<14x14xf32>
    %119 = arith.addf %114, %118 : vector<14x14xf32>
    %120 = vector.extract_strided_slice %5 {offsets = [0, 0, 0], sizes = [1, 14, 20], strides = [1, 1, 1]} : vector<4x20x20xf32> to vector<1x14x20xf32>
    %121 = vector.shape_cast %120 : vector<1x14x20xf32> to vector<14x20xf32>
    %c72 = arith.constant 72 : index
    %122 = memref.load %arg2[%c72] : memref<108xf32, #tpu.memory_space<smem>>
    %123 = vector.extract_strided_slice %121 {offsets = [0, 0], sizes = [14, 14], strides = [1, 1]} : vector<14x20xf32> to vector<14x14xf32>
    %124 = vector.broadcast %122 : f32 to vector<14x14xf32>
    %125 = arith.mulf %123, %124 : vector<14x14xf32>
    %126 = arith.addf %119, %125 : vector<14x14xf32>
    %c73 = arith.constant 73 : index
    %127 = memref.load %arg2[%c73] : memref<108xf32, #tpu.memory_space<smem>>
    %128 = vector.extract_strided_slice %121 {offsets = [0, 3], sizes = [14, 14], strides = [1, 1]} : vector<14x20xf32> to vector<14x14xf32>
    %129 = vector.broadcast %127 : f32 to vector<14x14xf32>
    %130 = arith.mulf %128, %129 : vector<14x14xf32>
    %131 = arith.addf %126, %130 : vector<14x14xf32>
    %c74 = arith.constant 74 : index
    %132 = memref.load %arg2[%c74] : memref<108xf32, #tpu.memory_space<smem>>
    %133 = vector.extract_strided_slice %121 {offsets = [0, 6], sizes = [14, 14], strides = [1, 1]} : vector<14x20xf32> to vector<14x14xf32>
    %134 = vector.broadcast %132 : f32 to vector<14x14xf32>
    %135 = arith.mulf %133, %134 : vector<14x14xf32>
    %136 = arith.addf %131, %135 : vector<14x14xf32>
    %137 = vector.extract_strided_slice %5 {offsets = [0, 6, 0], sizes = [1, 14, 20], strides = [1, 1, 1]} : vector<4x20x20xf32> to vector<1x14x20xf32>
    %138 = vector.shape_cast %137 : vector<1x14x20xf32> to vector<14x20xf32>
    %c78 = arith.constant 78 : index
    %139 = memref.load %arg2[%c78] : memref<108xf32, #tpu.memory_space<smem>>
    %140 = vector.extract_strided_slice %138 {offsets = [0, 0], sizes = [14, 14], strides = [1, 1]} : vector<14x20xf32> to vector<14x14xf32>
    %141 = vector.broadcast %139 : f32 to vector<14x14xf32>
    %142 = arith.mulf %140, %141 : vector<14x14xf32>
    %143 = arith.addf %136, %142 : vector<14x14xf32>
    %c79 = arith.constant 79 : index
    %144 = memref.load %arg2[%c79] : memref<108xf32, #tpu.memory_space<smem>>
    %145 = vector.extract_strided_slice %138 {offsets = [0, 3], sizes = [14, 14], strides = [1, 1]} : vector<14x20xf32> to vector<14x14xf32>
    %146 = vector.broadcast %144 : f32 to vector<14x14xf32>
    %147 = arith.mulf %145, %146 : vector<14x14xf32>
    %148 = arith.addf %143, %147 : vector<14x14xf32>
    %c80 = arith.constant 80 : index
    %149 = memref.load %arg2[%c80] : memref<108xf32, #tpu.memory_space<smem>>
    %150 = vector.extract_strided_slice %138 {offsets = [0, 6], sizes = [14, 14], strides = [1, 1]} : vector<14x20xf32> to vector<14x14xf32>
    %151 = vector.broadcast %149 : f32 to vector<14x14xf32>
    %152 = arith.mulf %150, %151 : vector<14x14xf32>
    %153 = arith.addf %148, %152 : vector<14x14xf32>
    %c0_13 = arith.constant 0 : index
    %c0_14 = arith.constant 0 : index
    %c0_15 = arith.constant 0 : index
    %154 = vector.load %arg10[%c0_13, %c0_14, %c0_15] : memref<4x14x14xf32, #tpu.memory_space<vmem>>, vector<1x14x14xf32>
    %155 = vector.shape_cast %154 : vector<1x14x14xf32> to vector<14x14xf32>
    %156 = vector.shape_cast %153 : vector<14x14xf32> to vector<1x14x14xf32>
    tpu.vector_store %arg10[%c0_13, %c0_14, %c0_15], %156 {strides = array<i32>} : memref<4x14x14xf32, #tpu.memory_space<vmem>>, vector<1x14x14xf32>,
    %157 = vector.extract_strided_slice %5 {offsets = [1, 2, 0], sizes = [1, 14, 20], strides = [1, 1, 1]} : vector<4x20x20xf32> to vector<1x14x20xf32>
    %158 = vector.shape_cast %157 : vector<1x14x20xf32> to vector<14x20xf32>
    %c9 = arith.constant 9 : index
    %159 = memref.load %arg2[%c9] : memref<108xf32, #tpu.memory_space<smem>>
    %160 = vector.extract_strided_slice %158 {offsets = [0, 2], sizes = [14, 14], strides = [1, 1]} : vector<14x20xf32> to vector<14x14xf32>
    %161 = vector.broadcast %159 : f32 to vector<14x14xf32>
    %162 = arith.mulf %160, %161 : vector<14x14xf32>
    %c10 = arith.constant 10 : index
    %163 = memref.load %arg2[%c10] : memref<108xf32, #tpu.memory_space<smem>>
    %164 = vector.extract_strided_slice %158 {offsets = [0, 3], sizes = [14, 14], strides = [1, 1]} : vector<14x20xf32> to vector<14x14xf32>
    %165 = vector.broadcast %163 : f32 to vector<14x14xf32>
    %166 = arith.mulf %164, %165 : vector<14x14xf32>
    %167 = arith.addf %162, %166 : vector<14x14xf32>
    %c11 = arith.constant 11 : index
    %168 = memref.load %arg2[%c11] : memref<108xf32, #tpu.memory_space<smem>>
    %169 = vector.extract_strided_slice %158 {offsets = [0, 4], sizes = [14, 14], strides = [1, 1]} : vector<14x20xf32> to vector<14x14xf32>
    %170 = vector.broadcast %168 : f32 to vector<14x14xf32>
    %171 = arith.mulf %169, %170 : vector<14x14xf32>
    %172 = arith.addf %167, %171 : vector<14x14xf32>
    %173 = vector.extract_strided_slice %5 {offsets = [1, 3, 0], sizes = [1, 14, 20], strides = [1, 1, 1]} : vector<4x20x20xf32> to vector<1x14x20xf32>
    %174 = vector.shape_cast %173 : vector<1x14x20xf32> to vector<14x20xf32>
    %c12 = arith.constant 12 : index
    %175 = memref.load %arg2[%c12] : memref<108xf32, #tpu.memory_space<smem>>
    %176 = vector.extract_strided_slice %174 {offsets = [0, 2], sizes = [14, 14], strides = [1, 1]} : vector<14x20xf32> to vector<14x14xf32>
    %177 = vector.broadcast %175 : f32 to vector<14x14xf32>
    %178 = arith.mulf %176, %177 : vector<14x14xf32>
    %179 = arith.addf %172, %178 : vector<14x14xf32>
    %c13 = arith.constant 13 : index
    %180 = memref.load %arg2[%c13] : memref<108xf32, #tpu.memory_space<smem>>
    %181 = vector.extract_strided_slice %174 {offsets = [0, 3], sizes = [14, 14], strides = [1, 1]} : vector<14x20xf32> to vector<14x14xf32>
    %182 = vector.broadcast %180 : f32 to vector<14x14xf32>
    %183 = arith.mulf %181, %182 : vector<14x14xf32>
    %184 = arith.addf %179, %183 : vector<14x14xf32>
    %c14 = arith.constant 14 : index
    %185 = memref.load %arg2[%c14] : memref<108xf32, #tpu.memory_space<smem>>
    %186 = vector.extract_strided_slice %174 {offsets = [0, 4], sizes = [14, 14], strides = [1, 1]} : vector<14x20xf32> to vector<14x14xf32>
    %187 = vector.broadcast %185 : f32 to vector<14x14xf32>
    %188 = arith.mulf %186, %187 : vector<14x14xf32>
    %189 = arith.addf %184, %188 : vector<14x14xf32>
    %c48 = arith.constant 48 : index
    %190 = memref.load %arg2[%c48] : memref<108xf32, #tpu.memory_space<smem>>
    %191 = vector.extract_strided_slice %174 {offsets = [0, 1], sizes = [14, 14], strides = [1, 1]} : vector<14x20xf32> to vector<14x14xf32>
    %192 = vector.broadcast %190 : f32 to vector<14x14xf32>
    %193 = arith.mulf %191, %192 : vector<14x14xf32>
    %194 = arith.addf %189, %193 : vector<14x14xf32>
    %c49 = arith.constant 49 : index
    %195 = memref.load %arg2[%c49] : memref<108xf32, #tpu.memory_space<smem>>
    %196 = vector.extract_strided_slice %174 {offsets = [0, 3], sizes = [14, 14], strides = [1, 1]} : vector<14x20xf32> to vector<14x14xf32>
    %197 = vector.broadcast %195 : f32 to vector<14x14xf32>
    %198 = arith.mulf %196, %197 : vector<14x14xf32>
    %199 = arith.addf %194, %198 : vector<14x14xf32>
    %c50 = arith.constant 50 : index
    %200 = memref.load %arg2[%c50] : memref<108xf32, #tpu.memory_space<smem>>
    %201 = vector.extract_strided_slice %174 {offsets = [0, 5], sizes = [14, 14], strides = [1, 1]} : vector<14x20xf32> to vector<14x14xf32>
    %202 = vector.broadcast %200 : f32 to vector<14x14xf32>
    %203 = arith.mulf %201, %202 : vector<14x14xf32>
    %204 = arith.addf %199, %203 : vector<14x14xf32>
    %c84 = arith.constant 84 : index
    %205 = memref.load %arg2[%c84] : memref<108xf32, #tpu.memory_space<smem>>
    %206 = vector.extract_strided_slice %174 {offsets = [0, 0], sizes = [14, 14], strides = [1, 1]} : vector<14x20xf32> to vector<14x14xf32>
    %207 = vector.broadcast %205 : f32 to vector<14x14xf32>
    %208 = arith.mulf %206, %207 : vector<14x14xf32>
    %209 = arith.addf %204, %208 : vector<14x14xf32>
    %c85 = arith.constant 85 : index
    %210 = memref.load %arg2[%c85] : memref<108xf32, #tpu.memory_space<smem>>
    %211 = vector.extract_strided_slice %174 {offsets = [0, 3], sizes = [14, 14], strides = [1, 1]} : vector<14x20xf32> to vector<14x14xf32>
    %212 = vector.broadcast %210 : f32 to vector<14x14xf32>
    %213 = arith.mulf %211, %212 : vector<14x14xf32>
    %214 = arith.addf %209, %213 : vector<14x14xf32>
    %c86 = arith.constant 86 : index
    %215 = memref.load %arg2[%c86] : memref<108xf32, #tpu.memory_space<smem>>
    %216 = vector.extract_strided_slice %174 {offsets = [0, 6], sizes = [14, 14], strides = [1, 1]} : vector<14x20xf32> to vector<14x14xf32>
    %217 = vector.broadcast %215 : f32 to vector<14x14xf32>
    %218 = arith.mulf %216, %217 : vector<14x14xf32>
    %219 = arith.addf %214, %218 : vector<14x14xf32>
    %220 = vector.extract_strided_slice %5 {offsets = [1, 4, 0], sizes = [1, 14, 20], strides = [1, 1, 1]} : vector<4x20x20xf32> to vector<1x14x20xf32>
    %221 = vector.shape_cast %220 : vector<1x14x20xf32> to vector<14x20xf32>
    %c15 = arith.constant 15 : index
    %222 = memref.load %arg2[%c15] : memref<108xf32, #tpu.memory_space<smem>>
    %223 = vector.extract_strided_slice %221 {offsets = [0, 2], sizes = [14, 14], strides = [1, 1]} : vector<14x20xf32> to vector<14x14xf32>
    %224 = vector.broadcast %222 : f32 to vector<14x14xf32>
    %225 = arith.mulf %223, %224 : vector<14x14xf32>
    %226 = arith.addf %219, %225 : vector<14x14xf32>
    %c16 = arith.constant 16 : index
    %227 = memref.load %arg2[%c16] : memref<108xf32, #tpu.memory_space<smem>>
    %228 = vector.extract_strided_slice %221 {offsets = [0, 3], sizes = [14, 14], strides = [1, 1]} : vector<14x20xf32> to vector<14x14xf32>
    %229 = vector.broadcast %227 : f32 to vector<14x14xf32>
    %230 = arith.mulf %228, %229 : vector<14x14xf32>
    %231 = arith.addf %226, %230 : vector<14x14xf32>
    %c17 = arith.constant 17 : index
    %232 = memref.load %arg2[%c17] : memref<108xf32, #tpu.memory_space<smem>>
    %233 = vector.extract_strided_slice %221 {offsets = [0, 4], sizes = [14, 14], strides = [1, 1]} : vector<14x20xf32> to vector<14x14xf32>
    %234 = vector.broadcast %232 : f32 to vector<14x14xf32>
    %235 = arith.mulf %233, %234 : vector<14x14xf32>
    %236 = arith.addf %231, %235 : vector<14x14xf32>
    %237 = vector.extract_strided_slice %5 {offsets = [1, 1, 0], sizes = [1, 14, 20], strides = [1, 1, 1]} : vector<4x20x20xf32> to vector<1x14x20xf32>
    %238 = vector.shape_cast %237 : vector<1x14x20xf32> to vector<14x20xf32>
    %c45 = arith.constant 45 : index
    %239 = memref.load %arg2[%c45] : memref<108xf32, #tpu.memory_space<smem>>
    %240 = vector.extract_strided_slice %238 {offsets = [0, 1], sizes = [14, 14], strides = [1, 1]} : vector<14x20xf32> to vector<14x14xf32>
    %241 = vector.broadcast %239 : f32 to vector<14x14xf32>
    %242 = arith.mulf %240, %241 : vector<14x14xf32>
    %243 = arith.addf %236, %242 : vector<14x14xf32>
    %c46 = arith.constant 46 : index
    %244 = memref.load %arg2[%c46] : memref<108xf32, #tpu.memory_space<smem>>
    %245 = vector.extract_strided_slice %238 {offsets = [0, 3], sizes = [14, 14], strides = [1, 1]} : vector<14x20xf32> to vector<14x14xf32>
    %246 = vector.broadcast %244 : f32 to vector<14x14xf32>
    %247 = arith.mulf %245, %246 : vector<14x14xf32>
    %248 = arith.addf %243, %247 : vector<14x14xf32>
    %c47 = arith.constant 47 : index
    %249 = memref.load %arg2[%c47] : memref<108xf32, #tpu.memory_space<smem>>
    %250 = vector.extract_strided_slice %238 {offsets = [0, 5], sizes = [14, 14], strides = [1, 1]} : vector<14x20xf32> to vector<14x14xf32>
    %251 = vector.broadcast %249 : f32 to vector<14x14xf32>
    %252 = arith.mulf %250, %251 : vector<14x14xf32>
    %253 = arith.addf %248, %252 : vector<14x14xf32>
    %254 = vector.extract_strided_slice %5 {offsets = [1, 5, 0], sizes = [1, 14, 20], strides = [1, 1, 1]} : vector<4x20x20xf32> to vector<1x14x20xf32>
    %255 = vector.shape_cast %254 : vector<1x14x20xf32> to vector<14x20xf32>
    %c51 = arith.constant 51 : index
    %256 = memref.load %arg2[%c51] : memref<108xf32, #tpu.memory_space<smem>>
    %257 = vector.extract_strided_slice %255 {offsets = [0, 1], sizes = [14, 14], strides = [1, 1]} : vector<14x20xf32> to vector<14x14xf32>
    %258 = vector.broadcast %256 : f32 to vector<14x14xf32>
    %259 = arith.mulf %257, %258 : vector<14x14xf32>
    %260 = arith.addf %253, %259 : vector<14x14xf32>
    %c52 = arith.constant 52 : index
    %261 = memref.load %arg2[%c52] : memref<108xf32, #tpu.memory_space<smem>>
    %262 = vector.extract_strided_slice %255 {offsets = [0, 3], sizes = [14, 14], strides = [1, 1]} : vector<14x20xf32> to vector<14x14xf32>
    %263 = vector.broadcast %261 : f32 to vector<14x14xf32>
    %264 = arith.mulf %262, %263 : vector<14x14xf32>
    %265 = arith.addf %260, %264 : vector<14x14xf32>
    %c53 = arith.constant 53 : index
    %266 = memref.load %arg2[%c53] : memref<108xf32, #tpu.memory_space<smem>>
    %267 = vector.extract_strided_slice %255 {offsets = [0, 5], sizes = [14, 14], strides = [1, 1]} : vector<14x20xf32> to vector<14x14xf32>
    %268 = vector.broadcast %266 : f32 to vector<14x14xf32>
    %269 = arith.mulf %267, %268 : vector<14x14xf32>
    %270 = arith.addf %265, %269 : vector<14x14xf32>
    %271 = vector.extract_strided_slice %5 {offsets = [1, 0, 0], sizes = [1, 14, 20], strides = [1, 1, 1]} : vector<4x20x20xf32> to vector<1x14x20xf32>
    %272 = vector.shape_cast %271 : vector<1x14x20xf32> to vector<14x20xf32>
    %c81 = arith.constant 81 : index
    %273 = memref.load %arg2[%c81] : memref<108xf32, #tpu.memory_space<smem>>
    %274 = vector.extract_strided_slice %272 {offsets = [0, 0], sizes = [14, 14], strides = [1, 1]} : vector<14x20xf32> to vector<14x14xf32>
    %275 = vector.broadcast %273 : f32 to vector<14x14xf32>
    %276 = arith.mulf %274, %275 : vector<14x14xf32>
    %277 = arith.addf %270, %276 : vector<14x14xf32>
    %c82 = arith.constant 82 : index
    %278 = memref.load %arg2[%c82] : memref<108xf32, #tpu.memory_space<smem>>
    %279 = vector.extract_strided_slice %272 {offsets = [0, 3], sizes = [14, 14], strides = [1, 1]} : vector<14x20xf32> to vector<14x14xf32>
    %280 = vector.broadcast %278 : f32 to vector<14x14xf32>
    %281 = arith.mulf %279, %280 : vector<14x14xf32>
    %282 = arith.addf %277, %281 : vector<14x14xf32>
    %c83 = arith.constant 83 : index
    %283 = memref.load %arg2[%c83] : memref<108xf32, #tpu.memory_space<smem>>
    %284 = vector.extract_strided_slice %272 {offsets = [0, 6], sizes = [14, 14], strides = [1, 1]} : vector<14x20xf32> to vector<14x14xf32>
    %285 = vector.broadcast %283 : f32 to vector<14x14xf32>
    %286 = arith.mulf %284, %285 : vector<14x14xf32>
    %287 = arith.addf %282, %286 : vector<14x14xf32>
    %288 = vector.extract_strided_slice %5 {offsets = [1, 6, 0], sizes = [1, 14, 20], strides = [1, 1, 1]} : vector<4x20x20xf32> to vector<1x14x20xf32>
    %289 = vector.shape_cast %288 : vector<1x14x20xf32> to vector<14x20xf32>
    %c87 = arith.constant 87 : index
    %290 = memref.load %arg2[%c87] : memref<108xf32, #tpu.memory_space<smem>>
    %291 = vector.extract_strided_slice %289 {offsets = [0, 0], sizes = [14, 14], strides = [1, 1]} : vector<14x20xf32> to vector<14x14xf32>
    %292 = vector.broadcast %290 : f32 to vector<14x14xf32>
    %293 = arith.mulf %291, %292 : vector<14x14xf32>
    %294 = arith.addf %287, %293 : vector<14x14xf32>
    %c88 = arith.constant 88 : index
    %295 = memref.load %arg2[%c88] : memref<108xf32, #tpu.memory_space<smem>>
    %296 = vector.extract_strided_slice %289 {offsets = [0, 3], sizes = [14, 14], strides = [1, 1]} : vector<14x20xf32> to vector<14x14xf32>
    %297 = vector.broadcast %295 : f32 to vector<14x14xf32>
    %298 = arith.mulf %296, %297 : vector<14x14xf32>
    %299 = arith.addf %294, %298 : vector<14x14xf32>
    %c89 = arith.constant 89 : index
    %300 = memref.load %arg2[%c89] : memref<108xf32, #tpu.memory_space<smem>>
    %301 = vector.extract_strided_slice %289 {offsets = [0, 6], sizes = [14, 14], strides = [1, 1]} : vector<14x20xf32> to vector<14x14xf32>
    %302 = vector.broadcast %300 : f32 to vector<14x14xf32>
    %303 = arith.mulf %301, %302 : vector<14x14xf32>
    %304 = arith.addf %299, %303 : vector<14x14xf32>
    %c1_16 = arith.constant 1 : index
    %c0_17 = arith.constant 0 : index
    %c0_18 = arith.constant 0 : index
    %305 = vector.load %arg10[%c1_16, %c0_17, %c0_18] : memref<4x14x14xf32, #tpu.memory_space<vmem>>, vector<1x14x14xf32>
    %306 = vector.shape_cast %305 : vector<1x14x14xf32> to vector<14x14xf32>
    %307 = vector.shape_cast %304 : vector<14x14xf32> to vector<1x14x14xf32>
    tpu.vector_store %arg10[%c1_16, %c0_17, %c0_18], %307 {strides = array<i32>} : memref<4x14x14xf32, #tpu.memory_space<vmem>>, vector<1x14x14xf32>,
    %308 = vector.extract_strided_slice %5 {offsets = [2, 2, 0], sizes = [1, 14, 20], strides = [1, 1, 1]} : vector<4x20x20xf32> to vector<1x14x20xf32>
    %309 = vector.shape_cast %308 : vector<1x14x20xf32> to vector<14x20xf32>
    %c18 = arith.constant 18 : index
    %310 = memref.load %arg2[%c18] : memref<108xf32, #tpu.memory_space<smem>>
    %311 = vector.extract_strided_slice %309 {offsets = [0, 2], sizes = [14, 14], strides = [1, 1]} : vector<14x20xf32> to vector<14x14xf32>
    %312 = vector.broadcast %310 : f32 to vector<14x14xf32>
    %313 = arith.mulf %311, %312 : vector<14x14xf32>
    %c19 = arith.constant 19 : index
    %314 = memref.load %arg2[%c19] : memref<108xf32, #tpu.memory_space<smem>>
    %315 = vector.extract_strided_slice %309 {offsets = [0, 3], sizes = [14, 14], strides = [1, 1]} : vector<14x20xf32> to vector<14x14xf32>
    %316 = vector.broadcast %314 : f32 to vector<14x14xf32>
    %317 = arith.mulf %315, %316 : vector<14x14xf32>
    %318 = arith.addf %313, %317 : vector<14x14xf32>
    %c20 = arith.constant 20 : index
    %319 = memref.load %arg2[%c20] : memref<108xf32, #tpu.memory_space<smem>>
    %320 = vector.extract_strided_slice %309 {offsets = [0, 4], sizes = [14, 14], strides = [1, 1]} : vector<14x20xf32> to vector<14x14xf32>
    %321 = vector.broadcast %319 : f32 to vector<14x14xf32>
    %322 = arith.mulf %320, %321 : vector<14x14xf32>
    %323 = arith.addf %318, %322 : vector<14x14xf32>
    %324 = vector.extract_strided_slice %5 {offsets = [2, 3, 0], sizes = [1, 14, 20], strides = [1, 1, 1]} : vector<4x20x20xf32> to vector<1x14x20xf32>
    %325 = vector.shape_cast %324 : vector<1x14x20xf32> to vector<14x20xf32>
    %c21 = arith.constant 21 : index
    %326 = memref.load %arg2[%c21] : memref<108xf32, #tpu.memory_space<smem>>
    %327 = vector.extract_strided_slice %325 {offsets = [0, 2], sizes = [14, 14], strides = [1, 1]} : vector<14x20xf32> to vector<14x14xf32>
    %328 = vector.broadcast %326 : f32 to vector<14x14xf32>
    %329 = arith.mulf %327, %328 : vector<14x14xf32>
    %330 = arith.addf %323, %329 : vector<14x14xf32>
    %c22 = arith.constant 22 : index
    %331 = memref.load %arg2[%c22] : memref<108xf32, #tpu.memory_space<smem>>
    %332 = vector.extract_strided_slice %325 {offsets = [0, 3], sizes = [14, 14], strides = [1, 1]} : vector<14x20xf32> to vector<14x14xf32>
    %333 = vector.broadcast %331 : f32 to vector<14x14xf32>
    %334 = arith.mulf %332, %333 : vector<14x14xf32>
    %335 = arith.addf %330, %334 : vector<14x14xf32>
    %c23 = arith.constant 23 : index
    %336 = memref.load %arg2[%c23] : memref<108xf32, #tpu.memory_space<smem>>
    %337 = vector.extract_strided_slice %325 {offsets = [0, 4], sizes = [14, 14], strides = [1, 1]} : vector<14x20xf32> to vector<14x14xf32>
    %338 = vector.broadcast %336 : f32 to vector<14x14xf32>
    %339 = arith.mulf %337, %338 : vector<14x14xf32>
    %340 = arith.addf %335, %339 : vector<14x14xf32>
    %c57 = arith.constant 57 : index
    %341 = memref.load %arg2[%c57] : memref<108xf32, #tpu.memory_space<smem>>
    %342 = vector.extract_strided_slice %325 {offsets = [0, 1], sizes = [14, 14], strides = [1, 1]} : vector<14x20xf32> to vector<14x14xf32>
    %343 = vector.broadcast %341 : f32 to vector<14x14xf32>
    %344 = arith.mulf %342, %343 : vector<14x14xf32>
    %345 = arith.addf %340, %344 : vector<14x14xf32>
    %c58 = arith.constant 58 : index
    %346 = memref.load %arg2[%c58] : memref<108xf32, #tpu.memory_space<smem>>
    %347 = vector.extract_strided_slice %325 {offsets = [0, 3], sizes = [14, 14], strides = [1, 1]} : vector<14x20xf32> to vector<14x14xf32>
    %348 = vector.broadcast %346 : f32 to vector<14x14xf32>
    %349 = arith.mulf %347, %348 : vector<14x14xf32>
    %350 = arith.addf %345, %349 : vector<14x14xf32>
    %c59 = arith.constant 59 : index
    %351 = memref.load %arg2[%c59] : memref<108xf32, #tpu.memory_space<smem>>
    %352 = vector.extract_strided_slice %325 {offsets = [0, 5], sizes = [14, 14], strides = [1, 1]} : vector<14x20xf32> to vector<14x14xf32>
    %353 = vector.broadcast %351 : f32 to vector<14x14xf32>
    %354 = arith.mulf %352, %353 : vector<14x14xf32>
    %355 = arith.addf %350, %354 : vector<14x14xf32>
    %c93 = arith.constant 93 : index
    %356 = memref.load %arg2[%c93] : memref<108xf32, #tpu.memory_space<smem>>
    %357 = vector.extract_strided_slice %325 {offsets = [0, 0], sizes = [14, 14], strides = [1, 1]} : vector<14x20xf32> to vector<14x14xf32>
    %358 = vector.broadcast %356 : f32 to vector<14x14xf32>
    %359 = arith.mulf %357, %358 : vector<14x14xf32>
    %360 = arith.addf %355, %359 : vector<14x14xf32>
    %c94 = arith.constant 94 : index
    %361 = memref.load %arg2[%c94] : memref<108xf32, #tpu.memory_space<smem>>
    %362 = vector.extract_strided_slice %325 {offsets = [0, 3], sizes = [14, 14], strides = [1, 1]} : vector<14x20xf32> to vector<14x14xf32>
    %363 = vector.broadcast %361 : f32 to vector<14x14xf32>
    %364 = arith.mulf %362, %363 : vector<14x14xf32>
    %365 = arith.addf %360, %364 : vector<14x14xf32>
    %c95 = arith.constant 95 : index
    %366 = memref.load %arg2[%c95] : memref<108xf32, #tpu.memory_space<smem>>
    %367 = vector.extract_strided_slice %325 {offsets = [0, 6], sizes = [14, 14], strides = [1, 1]} : vector<14x20xf32> to vector<14x14xf32>
    %368 = vector.broadcast %366 : f32 to vector<14x14xf32>
    %369 = arith.mulf %367, %368 : vector<14x14xf32>
    %370 = arith.addf %365, %369 : vector<14x14xf32>
    %371 = vector.extract_strided_slice %5 {offsets = [2, 4, 0], sizes = [1, 14, 20], strides = [1, 1, 1]} : vector<4x20x20xf32> to vector<1x14x20xf32>
    %372 = vector.shape_cast %371 : vector<1x14x20xf32> to vector<14x20xf32>
    %c24 = arith.constant 24 : index
    %373 = memref.load %arg2[%c24] : memref<108xf32, #tpu.memory_space<smem>>
    %374 = vector.extract_strided_slice %372 {offsets = [0, 2], sizes = [14, 14], strides = [1, 1]} : vector<14x20xf32> to vector<14x14xf32>
    %375 = vector.broadcast %373 : f32 to vector<14x14xf32>
    %376 = arith.mulf %374, %375 : vector<14x14xf32>
    %377 = arith.addf %370, %376 : vector<14x14xf32>
    %c25 = arith.constant 25 : index
    %378 = memref.load %arg2[%c25] : memref<108xf32, #tpu.memory_space<smem>>
    %379 = vector.extract_strided_slice %372 {offsets = [0, 3], sizes = [14, 14], strides = [1, 1]} : vector<14x20xf32> to vector<14x14xf32>
    %380 = vector.broadcast %378 : f32 to vector<14x14xf32>
    %381 = arith.mulf %379, %380 : vector<14x14xf32>
    %382 = arith.addf %377, %381 : vector<14x14xf32>
    %c26 = arith.constant 26 : index
    %383 = memref.load %arg2[%c26] : memref<108xf32, #tpu.memory_space<smem>>
    %384 = vector.extract_strided_slice %372 {offsets = [0, 4], sizes = [14, 14], strides = [1, 1]} : vector<14x20xf32> to vector<14x14xf32>
    %385 = vector.broadcast %383 : f32 to vector<14x14xf32>
    %386 = arith.mulf %384, %385 : vector<14x14xf32>
    %387 = arith.addf %382, %386 : vector<14x14xf32>
    %388 = vector.extract_strided_slice %5 {offsets = [2, 1, 0], sizes = [1, 14, 20], strides = [1, 1, 1]} : vector<4x20x20xf32> to vector<1x14x20xf32>
    %389 = vector.shape_cast %388 : vector<1x14x20xf32> to vector<14x20xf32>
    %c54 = arith.constant 54 : index
    %390 = memref.load %arg2[%c54] : memref<108xf32, #tpu.memory_space<smem>>
    %391 = vector.extract_strided_slice %389 {offsets = [0, 1], sizes = [14, 14], strides = [1, 1]} : vector<14x20xf32> to vector<14x14xf32>
    %392 = vector.broadcast %390 : f32 to vector<14x14xf32>
    %393 = arith.mulf %391, %392 : vector<14x14xf32>
    %394 = arith.addf %387, %393 : vector<14x14xf32>
    %c55 = arith.constant 55 : index
    %395 = memref.load %arg2[%c55] : memref<108xf32, #tpu.memory_space<smem>>
    %396 = vector.extract_strided_slice %389 {offsets = [0, 3], sizes = [14, 14], strides = [1, 1]} : vector<14x20xf32> to vector<14x14xf32>
    %397 = vector.broadcast %395 : f32 to vector<14x14xf32>
    %398 = arith.mulf %396, %397 : vector<14x14xf32>
    %399 = arith.addf %394, %398 : vector<14x14xf32>
    %c56 = arith.constant 56 : index
    %400 = memref.load %arg2[%c56] : memref<108xf32, #tpu.memory_space<smem>>
    %401 = vector.extract_strided_slice %389 {offsets = [0, 5], sizes = [14, 14], strides = [1, 1]} : vector<14x20xf32> to vector<14x14xf32>
    %402 = vector.broadcast %400 : f32 to vector<14x14xf32>
    %403 = arith.mulf %401, %402 : vector<14x14xf32>
    %404 = arith.addf %399, %403 : vector<14x14xf32>
    %405 = vector.extract_strided_slice %5 {offsets = [2, 5, 0], sizes = [1, 14, 20], strides = [1, 1, 1]} : vector<4x20x20xf32> to vector<1x14x20xf32>
    %406 = vector.shape_cast %405 : vector<1x14x20xf32> to vector<14x20xf32>
    %c60 = arith.constant 60 : index
    %407 = memref.load %arg2[%c60] : memref<108xf32, #tpu.memory_space<smem>>
    %408 = vector.extract_strided_slice %406 {offsets = [0, 1], sizes = [14, 14], strides = [1, 1]} : vector<14x20xf32> to vector<14x14xf32>
    %409 = vector.broadcast %407 : f32 to vector<14x14xf32>
    %410 = arith.mulf %408, %409 : vector<14x14xf32>
    %411 = arith.addf %404, %410 : vector<14x14xf32>
    %c61 = arith.constant 61 : index
    %412 = memref.load %arg2[%c61] : memref<108xf32, #tpu.memory_space<smem>>
    %413 = vector.extract_strided_slice %406 {offsets = [0, 3], sizes = [14, 14], strides = [1, 1]} : vector<14x20xf32> to vector<14x14xf32>
    %414 = vector.broadcast %412 : f32 to vector<14x14xf32>
    %415 = arith.mulf %413, %414 : vector<14x14xf32>
    %416 = arith.addf %411, %415 : vector<14x14xf32>
    %c62 = arith.constant 62 : index
    %417 = memref.load %arg2[%c62] : memref<108xf32, #tpu.memory_space<smem>>
    %418 = vector.extract_strided_slice %406 {offsets = [0, 5], sizes = [14, 14], strides = [1, 1]} : vector<14x20xf32> to vector<14x14xf32>
    %419 = vector.broadcast %417 : f32 to vector<14x14xf32>
    %420 = arith.mulf %418, %419 : vector<14x14xf32>
    %421 = arith.addf %416, %420 : vector<14x14xf32>
    %422 = vector.extract_strided_slice %5 {offsets = [2, 0, 0], sizes = [1, 14, 20], strides = [1, 1, 1]} : vector<4x20x20xf32> to vector<1x14x20xf32>
    %423 = vector.shape_cast %422 : vector<1x14x20xf32> to vector<14x20xf32>
    %c90 = arith.constant 90 : index
    %424 = memref.load %arg2[%c90] : memref<108xf32, #tpu.memory_space<smem>>
    %425 = vector.extract_strided_slice %423 {offsets = [0, 0], sizes = [14, 14], strides = [1, 1]} : vector<14x20xf32> to vector<14x14xf32>
    %426 = vector.broadcast %424 : f32 to vector<14x14xf32>
    %427 = arith.mulf %425, %426 : vector<14x14xf32>
    %428 = arith.addf %421, %427 : vector<14x14xf32>
    %c91 = arith.constant 91 : index
    %429 = memref.load %arg2[%c91] : memref<108xf32, #tpu.memory_space<smem>>
    %430 = vector.extract_strided_slice %423 {offsets = [0, 3], sizes = [14, 14], strides = [1, 1]} : vector<14x20xf32> to vector<14x14xf32>
    %431 = vector.broadcast %429 : f32 to vector<14x14xf32>
    %432 = arith.mulf %430, %431 : vector<14x14xf32>
    %433 = arith.addf %428, %432 : vector<14x14xf32>
    %c92 = arith.constant 92 : index
    %434 = memref.load %arg2[%c92] : memref<108xf32, #tpu.memory_space<smem>>
    %435 = vector.extract_strided_slice %423 {offsets = [0, 6], sizes = [14, 14], strides = [1, 1]} : vector<14x20xf32> to vector<14x14xf32>
    %436 = vector.broadcast %434 : f32 to vector<14x14xf32>
    %437 = arith.mulf %435, %436 : vector<14x14xf32>
    %438 = arith.addf %433, %437 : vector<14x14xf32>
    %439 = vector.extract_strided_slice %5 {offsets = [2, 6, 0], sizes = [1, 14, 20], strides = [1, 1, 1]} : vector<4x20x20xf32> to vector<1x14x20xf32>
    %440 = vector.shape_cast %439 : vector<1x14x20xf32> to vector<14x20xf32>
    %c96 = arith.constant 96 : index
    %441 = memref.load %arg2[%c96] : memref<108xf32, #tpu.memory_space<smem>>
    %442 = vector.extract_strided_slice %440 {offsets = [0, 0], sizes = [14, 14], strides = [1, 1]} : vector<14x20xf32> to vector<14x14xf32>
    %443 = vector.broadcast %441 : f32 to vector<14x14xf32>
    %444 = arith.mulf %442, %443 : vector<14x14xf32>
    %445 = arith.addf %438, %444 : vector<14x14xf32>
    %c97 = arith.constant 97 : index
    %446 = memref.load %arg2[%c97] : memref<108xf32, #tpu.memory_space<smem>>
    %447 = vector.extract_strided_slice %440 {offsets = [0, 3], sizes = [14, 14], strides = [1, 1]} : vector<14x20xf32> to vector<14x14xf32>
    %448 = vector.broadcast %446 : f32 to vector<14x14xf32>
    %449 = arith.mulf %447, %448 : vector<14x14xf32>
    %450 = arith.addf %445, %449 : vector<14x14xf32>
    %c98 = arith.constant 98 : index
    %451 = memref.load %arg2[%c98] : memref<108xf32, #tpu.memory_space<smem>>
    %452 = vector.extract_strided_slice %440 {offsets = [0, 6], sizes = [14, 14], strides = [1, 1]} : vector<14x20xf32> to vector<14x14xf32>
    %453 = vector.broadcast %451 : f32 to vector<14x14xf32>
    %454 = arith.mulf %452, %453 : vector<14x14xf32>
    %455 = arith.addf %450, %454 : vector<14x14xf32>
    %c2_19 = arith.constant 2 : index
    %c0_20 = arith.constant 0 : index
    %c0_21 = arith.constant 0 : index
    %456 = vector.load %arg10[%c2_19, %c0_20, %c0_21] : memref<4x14x14xf32, #tpu.memory_space<vmem>>, vector<1x14x14xf32>
    %457 = vector.shape_cast %456 : vector<1x14x14xf32> to vector<14x14xf32>
    %458 = vector.shape_cast %455 : vector<14x14xf32> to vector<1x14x14xf32>
    tpu.vector_store %arg10[%c2_19, %c0_20, %c0_21], %458 {strides = array<i32>} : memref<4x14x14xf32, #tpu.memory_space<vmem>>, vector<1x14x14xf32>,
    %459 = vector.extract_strided_slice %5 {offsets = [3, 2, 0], sizes = [1, 14, 20], strides = [1, 1, 1]} : vector<4x20x20xf32> to vector<1x14x20xf32>
    %460 = vector.shape_cast %459 : vector<1x14x20xf32> to vector<14x20xf32>
    %c27 = arith.constant 27 : index
    %461 = memref.load %arg2[%c27] : memref<108xf32, #tpu.memory_space<smem>>
    %462 = vector.extract_strided_slice %460 {offsets = [0, 2], sizes = [14, 14], strides = [1, 1]} : vector<14x20xf32> to vector<14x14xf32>
    %463 = vector.broadcast %461 : f32 to vector<14x14xf32>
    %464 = arith.mulf %462, %463 : vector<14x14xf32>
    %c28 = arith.constant 28 : index
    %465 = memref.load %arg2[%c28] : memref<108xf32, #tpu.memory_space<smem>>
    %466 = vector.extract_strided_slice %460 {offsets = [0, 3], sizes = [14, 14], strides = [1, 1]} : vector<14x20xf32> to vector<14x14xf32>
    %467 = vector.broadcast %465 : f32 to vector<14x14xf32>
    %468 = arith.mulf %466, %467 : vector<14x14xf32>
    %469 = arith.addf %464, %468 : vector<14x14xf32>
    %c29 = arith.constant 29 : index
    %470 = memref.load %arg2[%c29] : memref<108xf32, #tpu.memory_space<smem>>
    %471 = vector.extract_strided_slice %460 {offsets = [0, 4], sizes = [14, 14], strides = [1, 1]} : vector<14x20xf32> to vector<14x14xf32>
    %472 = vector.broadcast %470 : f32 to vector<14x14xf32>
    %473 = arith.mulf %471, %472 : vector<14x14xf32>
    %474 = arith.addf %469, %473 : vector<14x14xf32>
    %475 = vector.extract_strided_slice %5 {offsets = [3, 3, 0], sizes = [1, 14, 20], strides = [1, 1, 1]} : vector<4x20x20xf32> to vector<1x14x20xf32>
    %476 = vector.shape_cast %475 : vector<1x14x20xf32> to vector<14x20xf32>
    %c30 = arith.constant 30 : index
    %477 = memref.load %arg2[%c30] : memref<108xf32, #tpu.memory_space<smem>>
    %478 = vector.extract_strided_slice %476 {offsets = [0, 2], sizes = [14, 14], strides = [1, 1]} : vector<14x20xf32> to vector<14x14xf32>
    %479 = vector.broadcast %477 : f32 to vector<14x14xf32>
    %480 = arith.mulf %478, %479 : vector<14x14xf32>
    %481 = arith.addf %474, %480 : vector<14x14xf32>
    %c31 = arith.constant 31 : index
    %482 = memref.load %arg2[%c31] : memref<108xf32, #tpu.memory_space<smem>>
    %483 = vector.extract_strided_slice %476 {offsets = [0, 3], sizes = [14, 14], strides = [1, 1]} : vector<14x20xf32> to vector<14x14xf32>
    %484 = vector.broadcast %482 : f32 to vector<14x14xf32>
    %485 = arith.mulf %483, %484 : vector<14x14xf32>
    %486 = arith.addf %481, %485 : vector<14x14xf32>
    %c32 = arith.constant 32 : index
    %487 = memref.load %arg2[%c32] : memref<108xf32, #tpu.memory_space<smem>>
    %488 = vector.extract_strided_slice %476 {offsets = [0, 4], sizes = [14, 14], strides = [1, 1]} : vector<14x20xf32> to vector<14x14xf32>
    %489 = vector.broadcast %487 : f32 to vector<14x14xf32>
    %490 = arith.mulf %488, %489 : vector<14x14xf32>
    %491 = arith.addf %486, %490 : vector<14x14xf32>
    %c66 = arith.constant 66 : index
    %492 = memref.load %arg2[%c66] : memref<108xf32, #tpu.memory_space<smem>>
    %493 = vector.extract_strided_slice %476 {offsets = [0, 1], sizes = [14, 14], strides = [1, 1]} : vector<14x20xf32> to vector<14x14xf32>
    %494 = vector.broadcast %492 : f32 to vector<14x14xf32>
    %495 = arith.mulf %493, %494 : vector<14x14xf32>
    %496 = arith.addf %491, %495 : vector<14x14xf32>
    %c67 = arith.constant 67 : index
    %497 = memref.load %arg2[%c67] : memref<108xf32, #tpu.memory_space<smem>>
    %498 = vector.extract_strided_slice %476 {offsets = [0, 3], sizes = [14, 14], strides = [1, 1]} : vector<14x20xf32> to vector<14x14xf32>
    %499 = vector.broadcast %497 : f32 to vector<14x14xf32>
    %500 = arith.mulf %498, %499 : vector<14x14xf32>
    %501 = arith.addf %496, %500 : vector<14x14xf32>
    %c68 = arith.constant 68 : index
    %502 = memref.load %arg2[%c68] : memref<108xf32, #tpu.memory_space<smem>>
    %503 = vector.extract_strided_slice %476 {offsets = [0, 5], sizes = [14, 14], strides = [1, 1]} : vector<14x20xf32> to vector<14x14xf32>
    %504 = vector.broadcast %502 : f32 to vector<14x14xf32>
    %505 = arith.mulf %503, %504 : vector<14x14xf32>
    %506 = arith.addf %501, %505 : vector<14x14xf32>
    %c102 = arith.constant 102 : index
    %507 = memref.load %arg2[%c102] : memref<108xf32, #tpu.memory_space<smem>>
    %508 = vector.extract_strided_slice %476 {offsets = [0, 0], sizes = [14, 14], strides = [1, 1]} : vector<14x20xf32> to vector<14x14xf32>
    %509 = vector.broadcast %507 : f32 to vector<14x14xf32>
    %510 = arith.mulf %508, %509 : vector<14x14xf32>
    %511 = arith.addf %506, %510 : vector<14x14xf32>
    %c103 = arith.constant 103 : index
    %512 = memref.load %arg2[%c103] : memref<108xf32, #tpu.memory_space<smem>>
    %513 = vector.extract_strided_slice %476 {offsets = [0, 3], sizes = [14, 14], strides = [1, 1]} : vector<14x20xf32> to vector<14x14xf32>
    %514 = vector.broadcast %512 : f32 to vector<14x14xf32>
    %515 = arith.mulf %513, %514 : vector<14x14xf32>
    %516 = arith.addf %511, %515 : vector<14x14xf32>
    %c104 = arith.constant 104 : index
    %517 = memref.load %arg2[%c104] : memref<108xf32, #tpu.memory_space<smem>>
    %518 = vector.extract_strided_slice %476 {offsets = [0, 6], sizes = [14, 14], strides = [1, 1]} : vector<14x20xf32> to vector<14x14xf32>
    %519 = vector.broadcast %517 : f32 to vector<14x14xf32>
    %520 = arith.mulf %518, %519 : vector<14x14xf32>
    %521 = arith.addf %516, %520 : vector<14x14xf32>
    %522 = vector.extract_strided_slice %5 {offsets = [3, 4, 0], sizes = [1, 14, 20], strides = [1, 1, 1]} : vector<4x20x20xf32> to vector<1x14x20xf32>
    %523 = vector.shape_cast %522 : vector<1x14x20xf32> to vector<14x20xf32>
    %c33 = arith.constant 33 : index
    %524 = memref.load %arg2[%c33] : memref<108xf32, #tpu.memory_space<smem>>
    %525 = vector.extract_strided_slice %523 {offsets = [0, 2], sizes = [14, 14], strides = [1, 1]} : vector<14x20xf32> to vector<14x14xf32>
    %526 = vector.broadcast %524 : f32 to vector<14x14xf32>
    %527 = arith.mulf %525, %526 : vector<14x14xf32>
    %528 = arith.addf %521, %527 : vector<14x14xf32>
    %c34 = arith.constant 34 : index
    %529 = memref.load %arg2[%c34] : memref<108xf32, #tpu.memory_space<smem>>
    %530 = vector.extract_strided_slice %523 {offsets = [0, 3], sizes = [14, 14], strides = [1, 1]} : vector<14x20xf32> to vector<14x14xf32>
    %531 = vector.broadcast %529 : f32 to vector<14x14xf32>
    %532 = arith.mulf %530, %531 : vector<14x14xf32>
    %533 = arith.addf %528, %532 : vector<14x14xf32>
    %c35 = arith.constant 35 : index
    %534 = memref.load %arg2[%c35] : memref<108xf32, #tpu.memory_space<smem>>
    %535 = vector.extract_strided_slice %523 {offsets = [0, 4], sizes = [14, 14], strides = [1, 1]} : vector<14x20xf32> to vector<14x14xf32>
    %536 = vector.broadcast %534 : f32 to vector<14x14xf32>
    %537 = arith.mulf %535, %536 : vector<14x14xf32>
    %538 = arith.addf %533, %537 : vector<14x14xf32>
    %539 = vector.extract_strided_slice %5 {offsets = [3, 1, 0], sizes = [1, 14, 20], strides = [1, 1, 1]} : vector<4x20x20xf32> to vector<1x14x20xf32>
    %540 = vector.shape_cast %539 : vector<1x14x20xf32> to vector<14x20xf32>
    %c63 = arith.constant 63 : index
    %541 = memref.load %arg2[%c63] : memref<108xf32, #tpu.memory_space<smem>>
    %542 = vector.extract_strided_slice %540 {offsets = [0, 1], sizes = [14, 14], strides = [1, 1]} : vector<14x20xf32> to vector<14x14xf32>
    %543 = vector.broadcast %541 : f32 to vector<14x14xf32>
    %544 = arith.mulf %542, %543 : vector<14x14xf32>
    %545 = arith.addf %538, %544 : vector<14x14xf32>
    %c64 = arith.constant 64 : index
    %546 = memref.load %arg2[%c64] : memref<108xf32, #tpu.memory_space<smem>>
    %547 = vector.extract_strided_slice %540 {offsets = [0, 3], sizes = [14, 14], strides = [1, 1]} : vector<14x20xf32> to vector<14x14xf32>
    %548 = vector.broadcast %546 : f32 to vector<14x14xf32>
    %549 = arith.mulf %547, %548 : vector<14x14xf32>
    %550 = arith.addf %545, %549 : vector<14x14xf32>
    %c65 = arith.constant 65 : index
    %551 = memref.load %arg2[%c65] : memref<108xf32, #tpu.memory_space<smem>>
    %552 = vector.extract_strided_slice %540 {offsets = [0, 5], sizes = [14, 14], strides = [1, 1]} : vector<14x20xf32> to vector<14x14xf32>
    %553 = vector.broadcast %551 : f32 to vector<14x14xf32>
    %554 = arith.mulf %552, %553 : vector<14x14xf32>
    %555 = arith.addf %550, %554 : vector<14x14xf32>
    %556 = vector.extract_strided_slice %5 {offsets = [3, 5, 0], sizes = [1, 14, 20], strides = [1, 1, 1]} : vector<4x20x20xf32> to vector<1x14x20xf32>
    %557 = vector.shape_cast %556 : vector<1x14x20xf32> to vector<14x20xf32>
    %c69 = arith.constant 69 : index
    %558 = memref.load %arg2[%c69] : memref<108xf32, #tpu.memory_space<smem>>
    %559 = vector.extract_strided_slice %557 {offsets = [0, 1], sizes = [14, 14], strides = [1, 1]} : vector<14x20xf32> to vector<14x14xf32>
    %560 = vector.broadcast %558 : f32 to vector<14x14xf32>
    %561 = arith.mulf %559, %560 : vector<14x14xf32>
    %562 = arith.addf %555, %561 : vector<14x14xf32>
    %c70 = arith.constant 70 : index
    %563 = memref.load %arg2[%c70] : memref<108xf32, #tpu.memory_space<smem>>
    %564 = vector.extract_strided_slice %557 {offsets = [0, 3], sizes = [14, 14], strides = [1, 1]} : vector<14x20xf32> to vector<14x14xf32>
    %565 = vector.broadcast %563 : f32 to vector<14x14xf32>
    %566 = arith.mulf %564, %565 : vector<14x14xf32>
    %567 = arith.addf %562, %566 : vector<14x14xf32>
    %c71 = arith.constant 71 : index
    %568 = memref.load %arg2[%c71] : memref<108xf32, #tpu.memory_space<smem>>
    %569 = vector.extract_strided_slice %557 {offsets = [0, 5], sizes = [14, 14], strides = [1, 1]} : vector<14x20xf32> to vector<14x14xf32>
    %570 = vector.broadcast %568 : f32 to vector<14x14xf32>
    %571 = arith.mulf %569, %570 : vector<14x14xf32>
    %572 = arith.addf %567, %571 : vector<14x14xf32>
    %573 = vector.extract_strided_slice %5 {offsets = [3, 0, 0], sizes = [1, 14, 20], strides = [1, 1, 1]} : vector<4x20x20xf32> to vector<1x14x20xf32>
    %574 = vector.shape_cast %573 : vector<1x14x20xf32> to vector<14x20xf32>
    %c99 = arith.constant 99 : index
    %575 = memref.load %arg2[%c99] : memref<108xf32, #tpu.memory_space<smem>>
    %576 = vector.extract_strided_slice %574 {offsets = [0, 0], sizes = [14, 14], strides = [1, 1]} : vector<14x20xf32> to vector<14x14xf32>
    %577 = vector.broadcast %575 : f32 to vector<14x14xf32>
    %578 = arith.mulf %576, %577 : vector<14x14xf32>
    %579 = arith.addf %572, %578 : vector<14x14xf32>
    %c100 = arith.constant 100 : index
    %580 = memref.load %arg2[%c100] : memref<108xf32, #tpu.memory_space<smem>>
    %581 = vector.extract_strided_slice %574 {offsets = [0, 3], sizes = [14, 14], strides = [1, 1]} : vector<14x20xf32> to vector<14x14xf32>
    %582 = vector.broadcast %580 : f32 to vector<14x14xf32>
    %583 = arith.mulf %581, %582 : vector<14x14xf32>
    %584 = arith.addf %579, %583 : vector<14x14xf32>
    %c101 = arith.constant 101 : index
    %585 = memref.load %arg2[%c101] : memref<108xf32, #tpu.memory_space<smem>>
    %586 = vector.extract_strided_slice %574 {offsets = [0, 6], sizes = [14, 14], strides = [1, 1]} : vector<14x20xf32> to vector<14x14xf32>
    %587 = vector.broadcast %585 : f32 to vector<14x14xf32>
    %588 = arith.mulf %586, %587 : vector<14x14xf32>
    %589 = arith.addf %584, %588 : vector<14x14xf32>
    %590 = vector.extract_strided_slice %5 {offsets = [3, 6, 0], sizes = [1, 14, 20], strides = [1, 1, 1]} : vector<4x20x20xf32> to vector<1x14x20xf32>
    %591 = vector.shape_cast %590 : vector<1x14x20xf32> to vector<14x20xf32>
    %c105 = arith.constant 105 : index
    %592 = memref.load %arg2[%c105] : memref<108xf32, #tpu.memory_space<smem>>
    %593 = vector.extract_strided_slice %591 {offsets = [0, 0], sizes = [14, 14], strides = [1, 1]} : vector<14x20xf32> to vector<14x14xf32>
    %594 = vector.broadcast %592 : f32 to vector<14x14xf32>
    %595 = arith.mulf %593, %594 : vector<14x14xf32>
    %596 = arith.addf %589, %595 : vector<14x14xf32>
    %c106 = arith.constant 106 : index
    %597 = memref.load %arg2[%c106] : memref<108xf32, #tpu.memory_space<smem>>
    %598 = vector.extract_strided_slice %591 {offsets = [0, 3], sizes = [14, 14], strides = [1, 1]} : vector<14x20xf32> to vector<14x14xf32>
    %599 = vector.broadcast %597 : f32 to vector<14x14xf32>
    %600 = arith.mulf %598, %599 : vector<14x14xf32>
    %601 = arith.addf %596, %600 : vector<14x14xf32>
    %c107 = arith.constant 107 : index
    %602 = memref.load %arg2[%c107] : memref<108xf32, #tpu.memory_space<smem>>
    %603 = vector.extract_strided_slice %591 {offsets = [0, 6], sizes = [14, 14], strides = [1, 1]} : vector<14x20xf32> to vector<14x14xf32>
    %604 = vector.broadcast %602 : f32 to vector<14x14xf32>
    %605 = arith.mulf %603, %604 : vector<14x14xf32>
    %606 = arith.addf %601, %605 : vector<14x14xf32>
    %c3_22 = arith.constant 3 : index
    %c0_23 = arith.constant 0 : index
    %c0_24 = arith.constant 0 : index
    %607 = vector.load %arg10[%c3_22, %c0_23, %c0_24] : memref<4x14x14xf32, #tpu.memory_space<vmem>>, vector<1x14x14xf32>
    %608 = vector.shape_cast %607 : vector<1x14x14xf32> to vector<14x14xf32>
    %609 = vector.shape_cast %606 : vector<14x14xf32> to vector<1x14x14xf32>
    tpu.vector_store %arg10[%c3_22, %c0_23, %c0_24], %609 {strides = array<i32>} : memref<4x14x14xf32, #tpu.memory_space<vmem>>, vector<1x14x14xf32>,
    %c0_25 = arith.constant 0 : index
    %c0_26 = arith.constant 0 : index
    %c0_27 = arith.constant 0 : index
    %610 = vector.load %arg10[%c0_25, %c0_26, %c0_27] : memref<4x14x14xf32, #tpu.memory_space<vmem>>, vector<4x1x14xf32>
    %611 = vector.shape_cast %610 : vector<4x1x14xf32> to vector<4x14xf32>
    %c0_28 = arith.constant 0 : index
    %c0_29 = arith.constant 0 : index
    %612 = vector.load %arg11[%c0_28, %c0_29] : memref<4x196xf32, #tpu.memory_space<vmem>>, vector<4x14xf32>
    tpu.vector_store %arg11[%c0_28, %c0_29], %611 {strides = array<i32>} : memref<4x196xf32, #tpu.memory_space<vmem>>, vector<4x14xf32>,
    %c0_30 = arith.constant 0 : index
    %c1_31 = arith.constant 1 : index
    %c0_32 = arith.constant 0 : index
    %613 = vector.load %arg10[%c0_30, %c1_31, %c0_32] : memref<4x14x14xf32, #tpu.memory_space<vmem>>, vector<4x1x14xf32>
    %614 = vector.shape_cast %613 : vector<4x1x14xf32> to vector<4x14xf32>
    %c0_33 = arith.constant 0 : index
    %c14_34 = arith.constant 14 : index
    %615 = vector.load %arg11[%c0_33, %c14_34] : memref<4x196xf32, #tpu.memory_space<vmem>>, vector<4x14xf32>
    tpu.vector_store %arg11[%c0_33, %c14_34], %614 {strides = array<i32>} : memref<4x196xf32, #tpu.memory_space<vmem>>, vector<4x14xf32>,
    %c0_35 = arith.constant 0 : index
    %c2_36 = arith.constant 2 : index
    %c0_37 = arith.constant 0 : index
    %616 = vector.load %arg10[%c0_35, %c2_36, %c0_37] : memref<4x14x14xf32, #tpu.memory_space<vmem>>, vector<4x1x14xf32>
    %617 = vector.shape_cast %616 : vector<4x1x14xf32> to vector<4x14xf32>
    %c0_38 = arith.constant 0 : index
    %c28_39 = arith.constant 28 : index
    %618 = vector.load %arg11[%c0_38, %c28_39] : memref<4x196xf32, #tpu.memory_space<vmem>>, vector<4x14xf32>
    tpu.vector_store %arg11[%c0_38, %c28_39], %617 {strides = array<i32>} : memref<4x196xf32, #tpu.memory_space<vmem>>, vector<4x14xf32>,
    %c0_40 = arith.constant 0 : index
    %c3_41 = arith.constant 3 : index
    %c0_42 = arith.constant 0 : index
    %619 = vector.load %arg10[%c0_40, %c3_41, %c0_42] : memref<4x14x14xf32, #tpu.memory_space<vmem>>, vector<4x1x14xf32>
    %620 = vector.shape_cast %619 : vector<4x1x14xf32> to vector<4x14xf32>
    %c0_43 = arith.constant 0 : index
    %c42_44 = arith.constant 42 : index
    %621 = vector.load %arg11[%c0_43, %c42_44] : memref<4x196xf32, #tpu.memory_space<vmem>>, vector<4x14xf32>
    tpu.vector_store %arg11[%c0_43, %c42_44], %620 {strides = array<i32>} : memref<4x196xf32, #tpu.memory_space<vmem>>, vector<4x14xf32>,
    %c0_45 = arith.constant 0 : index
    %c4_46 = arith.constant 4 : index
    %c0_47 = arith.constant 0 : index
    %622 = vector.load %arg10[%c0_45, %c4_46, %c0_47] : memref<4x14x14xf32, #tpu.memory_space<vmem>>, vector<4x1x14xf32>
    %623 = vector.shape_cast %622 : vector<4x1x14xf32> to vector<4x14xf32>
    %c0_48 = arith.constant 0 : index
    %c56_49 = arith.constant 56 : index
    %624 = vector.load %arg11[%c0_48, %c56_49] : memref<4x196xf32, #tpu.memory_space<vmem>>, vector<4x14xf32>
    tpu.vector_store %arg11[%c0_48, %c56_49], %623 {strides = array<i32>} : memref<4x196xf32, #tpu.memory_space<vmem>>, vector<4x14xf32>,
    %c0_50 = arith.constant 0 : index
    %c5_51 = arith.constant 5 : index
    %c0_52 = arith.constant 0 : index
    %625 = vector.load %arg10[%c0_50, %c5_51, %c0_52] : memref<4x14x14xf32, #tpu.memory_space<vmem>>, vector<4x1x14xf32>
    %626 = vector.shape_cast %625 : vector<4x1x14xf32> to vector<4x14xf32>
    %c0_53 = arith.constant 0 : index
    %c70_54 = arith.constant 70 : index
    %627 = vector.load %arg11[%c0_53, %c70_54] : memref<4x196xf32, #tpu.memory_space<vmem>>, vector<4x14xf32>
    tpu.vector_store %arg11[%c0_53, %c70_54], %626 {strides = array<i32>} : memref<4x196xf32, #tpu.memory_space<vmem>>, vector<4x14xf32>,
    %c0_55 = arith.constant 0 : index
    %c6_56 = arith.constant 6 : index
    %c0_57 = arith.constant 0 : index
    %628 = vector.load %arg10[%c0_55, %c6_56, %c0_57] : memref<4x14x14xf32, #tpu.memory_space<vmem>>, vector<4x1x14xf32>
    %629 = vector.shape_cast %628 : vector<4x1x14xf32> to vector<4x14xf32>
    %c0_58 = arith.constant 0 : index
    %c84_59 = arith.constant 84 : index
    %630 = vector.load %arg11[%c0_58, %c84_59] : memref<4x196xf32, #tpu.memory_space<vmem>>, vector<4x14xf32>
    tpu.vector_store %arg11[%c0_58, %c84_59], %629 {strides = array<i32>} : memref<4x196xf32, #tpu.memory_space<vmem>>, vector<4x14xf32>,
    %c0_60 = arith.constant 0 : index
    %c7_61 = arith.constant 7 : index
    %c0_62 = arith.constant 0 : index
    %631 = vector.load %arg10[%c0_60, %c7_61, %c0_62] : memref<4x14x14xf32, #tpu.memory_space<vmem>>, vector<4x1x14xf32>
    %632 = vector.shape_cast %631 : vector<4x1x14xf32> to vector<4x14xf32>
    %c0_63 = arith.constant 0 : index
    %c98_64 = arith.constant 98 : index
    %633 = vector.load %arg11[%c0_63, %c98_64] : memref<4x196xf32, #tpu.memory_space<vmem>>, vector<4x14xf32>
    tpu.vector_store %arg11[%c0_63, %c98_64], %632 {strides = array<i32>} : memref<4x196xf32, #tpu.memory_space<vmem>>, vector<4x14xf32>,
    %c0_65 = arith.constant 0 : index
    %c8_66 = arith.constant 8 : index
    %c0_67 = arith.constant 0 : index
    %634 = vector.load %arg10[%c0_65, %c8_66, %c0_67] : memref<4x14x14xf32, #tpu.memory_space<vmem>>, vector<4x1x14xf32>
    %635 = vector.shape_cast %634 : vector<4x1x14xf32> to vector<4x14xf32>
    %c0_68 = arith.constant 0 : index
    %c112 = arith.constant 112 : index
    %636 = vector.load %arg11[%c0_68, %c112] : memref<4x196xf32, #tpu.memory_space<vmem>>, vector<4x14xf32>
    tpu.vector_store %arg11[%c0_68, %c112], %635 {strides = array<i32>} : memref<4x196xf32, #tpu.memory_space<vmem>>, vector<4x14xf32>,
    %c0_69 = arith.constant 0 : index
    %c9_70 = arith.constant 9 : index
    %c0_71 = arith.constant 0 : index
    %637 = vector.load %arg10[%c0_69, %c9_70, %c0_71] : memref<4x14x14xf32, #tpu.memory_space<vmem>>, vector<4x1x14xf32>
    %638 = vector.shape_cast %637 : vector<4x1x14xf32> to vector<4x14xf32>
    %c0_72 = arith.constant 0 : index
    %c126 = arith.constant 126 : index
    %639 = vector.load %arg11[%c0_72, %c126] : memref<4x196xf32, #tpu.memory_space<vmem>>, vector<4x14xf32>
    tpu.vector_store %arg11[%c0_72, %c126], %638 {strides = array<i32>} : memref<4x196xf32, #tpu.memory_space<vmem>>, vector<4x14xf32>,
    %c0_73 = arith.constant 0 : index
    %c10_74 = arith.constant 10 : index
    %c0_75 = arith.constant 0 : index
    %640 = vector.load %arg10[%c0_73, %c10_74, %c0_75] : memref<4x14x14xf32, #tpu.memory_space<vmem>>, vector<4x1x14xf32>
    %641 = vector.shape_cast %640 : vector<4x1x14xf32> to vector<4x14xf32>
    %c0_76 = arith.constant 0 : index
    %c140 = arith.constant 140 : index
    %642 = vector.load %arg11[%c0_76, %c140] : memref<4x196xf32, #tpu.memory_space<vmem>>, vector<4x14xf32>
    tpu.vector_store %arg11[%c0_76, %c140], %641 {strides = array<i32>} : memref<4x196xf32, #tpu.memory_space<vmem>>, vector<4x14xf32>,
    %c0_77 = arith.constant 0 : index
    %c11_78 = arith.constant 11 : index
    %c0_79 = arith.constant 0 : index
    %643 = vector.load %arg10[%c0_77, %c11_78, %c0_79] : memref<4x14x14xf32, #tpu.memory_space<vmem>>, vector<4x1x14xf32>
    %644 = vector.shape_cast %643 : vector<4x1x14xf32> to vector<4x14xf32>
    %c0_80 = arith.constant 0 : index
    %c154 = arith.constant 154 : index
    %645 = vector.load %arg11[%c0_80, %c154] : memref<4x196xf32, #tpu.memory_space<vmem>>, vector<4x14xf32>
    tpu.vector_store %arg11[%c0_80, %c154], %644 {strides = array<i32>} : memref<4x196xf32, #tpu.memory_space<vmem>>, vector<4x14xf32>,
    %c0_81 = arith.constant 0 : index
    %c12_82 = arith.constant 12 : index
    %c0_83 = arith.constant 0 : index
    %646 = vector.load %arg10[%c0_81, %c12_82, %c0_83] : memref<4x14x14xf32, #tpu.memory_space<vmem>>, vector<4x1x14xf32>
    %647 = vector.shape_cast %646 : vector<4x1x14xf32> to vector<4x14xf32>
    %c0_84 = arith.constant 0 : index
    %c168 = arith.constant 168 : index
    %648 = vector.load %arg11[%c0_84, %c168] : memref<4x196xf32, #tpu.memory_space<vmem>>, vector<4x14xf32>
    tpu.vector_store %arg11[%c0_84, %c168], %647 {strides = array<i32>} : memref<4x196xf32, #tpu.memory_space<vmem>>, vector<4x14xf32>,
    %c0_85 = arith.constant 0 : index
    %c13_86 = arith.constant 13 : index
    %c0_87 = arith.constant 0 : index
    %649 = vector.load %arg10[%c0_85, %c13_86, %c0_87] : memref<4x14x14xf32, #tpu.memory_space<vmem>>, vector<4x1x14xf32>
    %650 = vector.shape_cast %649 : vector<4x1x14xf32> to vector<4x14xf32>
    %c0_88 = arith.constant 0 : index
    %c182 = arith.constant 182 : index
    %651 = vector.load %arg11[%c0_88, %c182] : memref<4x196xf32, #tpu.memory_space<vmem>>, vector<4x14xf32>
    tpu.vector_store %arg11[%c0_88, %c182], %650 {strides = array<i32>} : memref<4x196xf32, #tpu.memory_space<vmem>>, vector<4x14xf32>,
    %c0_89 = arith.constant 0 : index
    %c0_90 = arith.constant 0 : index
    %652 = vector.load %arg3[%c0_89, %c0_90] : memref<8x4xf32, #tpu.memory_space<vmem>>, vector<8x4xf32>
    %c0_91 = arith.constant 0 : index
    %c0_92 = arith.constant 0 : index
    %653 = vector.load %arg11[%c0_91, %c0_92] : memref<4x196xf32, #tpu.memory_space<vmem>>, vector<4x196xf32>
    %cst_93 = arith.constant dense<0.000000e+00> : vector<8x196xf32>
    %654 = tpu.matmul %652, %653, %cst_93 {dimension_numbers = #tpu.dot_dimension_numbers<[1], [0], [0], [1], [0, 0, 1, 1], [], []>, precision = #tpu.contract_precision<fp32>} : vector<8x4xf32>, vector<4x196xf32>, vector<8x196xf32> -> vector<8x196xf32>
    %c0_94 = arith.constant 0 : index
    %c0_95 = arith.constant 0 : index
    %655 = vector.load %arg4[%c0_94, %c0_95] : memref<8x1xf32, #tpu.memory_space<vmem>>, vector<8x1xf32>
    %656 = vector.broadcast %655 : vector<8x1xf32> to vector<8x196xf32>
    %657 = arith.addf %654, %656 : vector<8x196xf32>
    %cst_96 = arith.constant 0.000000e+00 : f32
    %658 = vector.broadcast %cst_96 : f32 to vector<8x196xf32>
    %659 = arith.cmpf ogt, %657, %658 : vector<8x196xf32>
    %c0_97 = arith.constant 0 : index
    %c0_98 = arith.constant 0 : index
    %660 = vector.load %arg5[%c0_97, %c0_98] : memref<8x1xf32, #tpu.memory_space<vmem>>, vector<8x1xf32>
    %c0_99 = arith.constant 0 : index
    %c0_100 = arith.constant 0 : index
    %661 = vector.load %arg6[%c0_99, %c0_100] : memref<8x1xf32, #tpu.memory_space<vmem>>, vector<8x1xf32>
    %662 = vector.shape_cast %660 : vector<8x1xf32> to vector<8x1xf32>
    %663 = vector.broadcast %662 : vector<8x1xf32> to vector<8x196xf32>
    %664 = vector.shape_cast %661 : vector<8x1xf32> to vector<8x1xf32>
    %665 = vector.broadcast %664 : vector<8x1xf32> to vector<8x196xf32>
    %666 = arith.select %659, %663, %665 : vector<8x196xi1>, vector<8x196xf32>
    %667 = arith.mulf %666, %657 : vector<8x196xf32>
    %c0_101 = arith.constant 0 : index
    %c0_102 = arith.constant 0 : index
    %668 = vector.load %arg7[%c0_101, %c0_102] : memref<8x1xf32, #tpu.memory_space<vmem>>, vector<8x1xf32>
    %669 = vector.broadcast %668 : vector<8x1xf32> to vector<8x196xf32>
    %670 = arith.addf %667, %669 : vector<8x196xf32>
    %c0_103 = arith.constant 0 : index
    %c0_104 = arith.constant 0 : index
    %c0_105 = arith.constant 0 : index
    %671 = vector.load %arg8[%c0_103, %c0_104, %c0_105] : memref<1x8x196xf32, #tpu.memory_space<vmem>>, vector<1x8x196xf32>
    %672 = vector.shape_cast %671 : vector<1x8x196xf32> to vector<8x196xf32>
    %673 = vector.shape_cast %670 : vector<8x196xf32> to vector<1x8x196xf32>
    tpu.vector_store %arg8[%c0_103, %c0_104, %c0_105], %673 {strides = array<i32>} : memref<1x8x196xf32, #tpu.memory_space<vmem>>, vector<1x8x196xf32>,
    return
  }
  func.func @transform_0(%arg0: i32) -> (i32, i32, i32, i32) {
    %c0_i32 = arith.constant 0 : i32
    %c0_i32_0 = arith.constant 0 : i32
    %c0_i32_1 = arith.constant 0 : i32
    %c0_i32_2 = arith.constant 0 : i32
    return %arg0, %c0_i32, %c0_i32_0, %c0_i32_1 : i32, i32, i32, i32
  }
  func.func @transform_1(%arg0: i32) -> i32 {
    %c0_i32 = arith.constant 0 : i32
    %c0_i32_0 = arith.constant 0 : i32
    return %c0_i32 : i32
  }
  func.func @transform_2(%arg0: i32) -> (i32, i32) {
    %c0_i32 = arith.constant 0 : i32
    %c0_i32_0 = arith.constant 0 : i32
    %c0_i32_1 = arith.constant 0 : i32
    return %c0_i32, %c0_i32_0 : i32, i32
  }
  func.func @transform_3(%arg0: i32) -> (i32, i32) {
    %c0_i32 = arith.constant 0 : i32
    %c0_i32_0 = arith.constant 0 : i32
    %c0_i32_1 = arith.constant 0 : i32
    return %c0_i32, %c0_i32_0 : i32, i32
  }
  func.func @transform_4(%arg0: i32) -> (i32, i32) {
    %c0_i32 = arith.constant 0 : i32
    %c0_i32_0 = arith.constant 0 : i32
    %c0_i32_1 = arith.constant 0 : i32
    return %c0_i32, %c0_i32_0 : i32, i32
  }
  func.func @transform_5(%arg0: i32) -> (i32, i32) {
    %c0_i32 = arith.constant 0 : i32
    %c0_i32_0 = arith.constant 0 : i32
    %c0_i32_1 = arith.constant 0 : i32
    return %c0_i32, %c0_i32_0 : i32, i32
  }
  func.func @transform_6(%arg0: i32) -> (i32, i32) {
    %c0_i32 = arith.constant 0 : i32
    %c0_i32_0 = arith.constant 0 : i32
    %c0_i32_1 = arith.constant 0 : i32
    return %c0_i32, %c0_i32_0 : i32, i32
  }
  func.func @transform_7(%arg0: i32) -> (i32, i32, i32) {
    %c0_i32 = arith.constant 0 : i32
    %c0_i32_0 = arith.constant 0 : i32
    %c0_i32_1 = arith.constant 0 : i32
    return %arg0, %c0_i32, %c0_i32_0 : i32, i32, i32
  }
}

</mosaic_0001>

<llo_original>
// kernel: acff_forward.1
$region0: #{acff_forward.1}
  #allocation0 [shape = 'u32[]', space=smem, size = 0x4, offset = 0x4, fixed_abs, tag = 'smem constant byte address 0x4 - core index']
  #allocation1 [shape = 'u32[144,128]{1,0:T(1,128)}', space=vmem, size = 0x12000, scoped, tag = 'internal scratch']
  #allocation2 [shape = 'f32[4,20,20]{2,1,0:T(8,128)}', space=vmem, size = 0xc000, scoped, tag = 'scratch operand']
  #allocation3 [shape = 'f32[4,14,14]{2,1,0:T(8,128)}', space=vmem, size = 0x8000, scoped, tag = 'scratch operand']
  #allocation4 [shape = 'f32[4,196]{1,0:T(4,128)}', space=vmem, size = 0x1000, scoped, tag = 'scratch operand']
  %s0 = inlined_call_operand.vmem [shape: f32[2,4,16,16], index: 0, kind: input, shape index: {}]
  %s1 = inlined_call_operand.vmem [shape: f32[108], index: 1, kind: input, shape index: {}]
  %s2 = inlined_call_operand.vmem [shape: f32[8,4], index: 2, kind: input, shape index: {}]
  %s3 = inlined_call_operand.vmem [shape: f32[8,1], index: 3, kind: input, shape index: {}]
  %s4 = inlined_call_operand.vmem [shape: f32[8,1], index: 4, kind: input, shape index: {}]
  %s5 = inlined_call_operand.vmem [shape: f32[8,1], index: 5, kind: input, shape index: {}]
  %s6 = inlined_call_operand.vmem [shape: f32[8,1], index: 6, kind: input, shape index: {}]
  %s7 = inlined_call_operand.vmem [shape: f32[2,8,196], index: 7, kind: output, shape index: {}]
  %s8 = sld [smem:[#allocation0]]
  $region65: #{acff_forward.1} parent=0
    _
  %s10 = ssub.s32 1, %s8
  %s11 = scalar_select 0, %s10, %s8
  $region1: #{acff_forward.1} parent=0
    #allocation5 [shape = 'u8[512]{0}', space=smem, size = 0x200, scoped, tag = 'input window, operand 1, single buffered']
    #allocation6 [shape = 's32[2]{0}', space=sflag, size = 0x8, scoped, tag = 'scoped memory for acff_forward.1']
    %12 = vsyncpa [#allocation6], 0
    loop: start=0, step=1, limit=4
    $region2: #{acff_forward.1} parent=1 // loop_pre_header
      _
    $region3: #{acff_forward.1} parent=1 // loop_header
      %s14 = sphi 0, %s18
      %p15 = scmp.ge.s32.totalorder %s14, 4
      %s24 = sphi 0, %s26
      %s27 = sphi 0, %s24
      %s28 = sphi 0, %s27
      %s44 = sphi 0, %s28
      %s48 = sphi 0, %s48
      %s50 = sphi 0, %s48
      %s51 = sphi 0, %s50
      %s65 = sphi 0, %s51
      %s69 = sphi 0, %s69
      %s71 = sphi 0, %s69
      %s72 = sphi 0, %s71
      %s86 = sphi 0, %s72
      %s90 = sphi 0, %s90
      %s92 = sphi 0, %s90
      %s93 = sphi 0, %s92
      %s107 = sphi 0, %s93
      %s111 = sphi 0, %s111
      %s113 = sphi 0, %s111
      %s114 = sphi 0, %s113
      %s128 = sphi 0, %s114
      %s132 = sphi 0, %s132
      %s134 = sphi 0, %s132
      %s135 = sphi 0, %s134
      %s149 = sphi 0, %s135
      %s153 = sphi 0, %s153
      %s155 = sphi 0, %s153
      %s156 = sphi 0, %s155
      %s170 = sphi 0, %s156
      %s176 = sphi 0, %s178
      %s179 = sphi 0, %s176
      %s180 = sphi 0, %s179
      %s196 = sphi 0, %s180
    $region4: #{acff_forward.1} parent=1 // loop_header_branch
      %17 = sbr.rel (%p15) target = $region8
    $region5: #{acff_forward.1} parent=1 // loop_body
      %s19 = ssub.s32 %s14, 1
      %s20 = ssub.s32 %s14, 2
      %s21 = sadd.s32 %s14, 1
      %s22 = ssub.s32 %s14, %s21
      %p23 = scmp.eq.s32.totalorder %s22, 0
      %s25 = sadd.s32 %s24, 1
      %s26 = scalar_select %p23, %s24, %s25
      %p29 = pneg %p23
      %p30 = scmp.eq.s32.totalorder %s14, 1
      %p31 = por %p29, %p30
      %p32 = scmp.ne.s32.totalorder %s24, %s27
      %p33 = scmp.eq.s32.totalorder %s14, 0
      %p34 = por %p32, %p33
      %p35 = scmp.ne.s32.totalorder %s24, %s27
      %p36 = scmp.eq.s32.totalorder %s19, 1
      %p37 = por %p35, %p36
      %p38 = scmp.ne.s32.totalorder %s27, %s28
      %p39 = scmp.eq.s32.totalorder %s19, 0
      %p40 = por %p38, %p39
      %p41 = scmp.ne.s32.totalorder %s27, %s28
      %p42 = scmp.eq.s32.totalorder %s20, 1
      %p43 = por %p41, %p42
      %p45 = scmp.ne.s32.totalorder %s28, %s44
      %p46 = scmp.eq.s32.totalorder %s20, 0
      %p47 = por %p45, %p46
      %s49 = sadd.s32 %s48, 1
      %p52 = scmp.eq.s32.totalorder %s14, 1
      %p53 = scmp.ne.s32.totalorder %s48, %s50
      %p54 = scmp.eq.s32.totalorder %s14, 0
      %p55 = por %p53, %p54
      %p56 = scmp.ne.s32.totalorder %s48, %s50
      %p57 = scmp.eq.s32.totalorder %s19, 1
      %p58 = por %p56, %p57
      %p59 = scmp.ne.s32.totalorder %s50, %s51
      %p60 = scmp.eq.s32.totalorder %s19, 0
      %p61 = por %p59, %p60
      %p62 = scmp.ne.s32.totalorder %s50, %s51
      %p63 = scmp.eq.s32.totalorder %s20, 1
      %p64 = por %p62, %p63
      %p66 = scmp.ne.s32.totalorder %s51, %s65
      %p67 = scmp.eq.s32.totalorder %s20, 0
      %p68 = por %p66, %p67
      %s70 = sadd.s32 %s69, 1
      %p73 = scmp.eq.s32.totalorder %s14, 1
      %p74 = scmp.ne.s32.totalorder %s69, %s71
      %p75 = scmp.eq.s32.totalorder %s14, 0
      %p76 = por %p74, %p75
      %p77 = scmp.ne.s32.totalorder %s69, %s71
      %p78 = scmp.eq.s32.totalorder %s19, 1
      %p79 = por %p77, %p78
      %p80 = scmp.ne.s32.totalorder %s71, %s72
      %p81 = scmp.eq.s32.totalorder %s19, 0
      %p82 = por %p80, %p81
      %p83 = scmp.ne.s32.totalorder %s71, %s72
      %p84 = scmp.eq.s32.totalorder %s20, 1
      %p85 = por %p83, %p84
      %p87 = scmp.ne.s32.totalorder %s72, %s86
      %p88 = scmp.eq.s32.totalorder %s20, 0
      %p89 = por %p87, %p88
      %s91 = sadd.s32 %s90, 1
      %p94 = scmp.eq.s32.totalorder %s14, 1
      %p95 = scmp.ne.s32.totalorder %s90, %s92
      %p96 = scmp.eq.s32.totalorder %s14, 0
      %p97 = por %p95, %p96
      %p98 = scmp.ne.s32.totalorder %s90, %s92
      %p99 = scmp.eq.s32.totalorder %s19, 1
      %p100 = por %p98, %p99
      %p101 = scmp.ne.s32.totalorder %s92, %s93
      %p102 = scmp.eq.s32.totalorder %s19, 0
      %p103 = por %p101, %p102
      %p104 = scmp.ne.s32.totalorder %s92, %s93
      %p105 = scmp.eq.s32.totalorder %s20, 1
      %p106 = por %p104, %p105
      %p108 = scmp.ne.s32.totalorder %s93, %s107
      %p109 = scmp.eq.s32.totalorder %s20, 0
      %p110 = por %p108, %p109
      %s112 = sadd.s32 %s111, 1
      %p115 = scmp.eq.s32.totalorder %s14, 1
      %p116 = scmp.ne.s32.totalorder %s111, %s113
      %p117 = scmp.eq.s32.totalorder %s14, 0
      %p118 = por %p116, %p117
      %p119 = scmp.ne.s32.totalorder %s111, %s113
      %p120 = scmp.eq.s32.totalorder %s19, 1
      %p121 = por %p119, %p120
      %p122 = scmp.ne.s32.totalorder %s113, %s114
      %p123 = scmp.eq.s32.totalorder %s19, 0
      %p124 = por %p122, %p123
      %p125 = scmp.ne.s32.totalorder %s113, %s114
      %p126 = scmp.eq.s32.totalorder %s20, 1
      %p127 = por %p125, %p126
      %p129 = scmp.ne.s32.totalorder %s114, %s128
      %p130 = scmp.eq.s32.totalorder %s20, 0
      %p131 = por %p129, %p130
      %s133 = sadd.s32 %s132, 1
      %p136 = scmp.eq.s32.totalorder %s14, 1
      %p137 = scmp.ne.s32.totalorder %s132, %s134
      %p138 = scmp.eq.s32.totalorder %s14, 0
      %p139 = por %p137, %p138
      %p140 = scmp.ne.s32.totalorder %s132, %s134
      %p141 = scmp.eq.s32.totalorder %s19, 1
      %p142 = por %p140, %p141
      %p143 = scmp.ne.s32.totalorder %s134, %s135
      %p144 = scmp.eq.s32.totalorder %s19, 0
      %p145 = por %p143, %p144
      %p146 = scmp.ne.s32.totalorder %s134, %s135
      %p147 = scmp.eq.s32.totalorder %s20, 1
      %p148 = por %p146, %p147
      %p150 = scmp.ne.s32.totalorder %s135, %s149
      %p151 = scmp.eq.s32.totalorder %s20, 0
      %p152 = por %p150, %p151
      %s154 = sadd.s32 %s153, 1
      %p157 = scmp.eq.s32.totalorder %s14, 1
      %p158 = scmp.ne.s32.totalorder %s153, %s155
      %p159 = scmp.eq.s32.totalorder %s14, 0
      %p160 = por %p158, %p159
      %p161 = scmp.ne.s32.totalorder %s153, %s155
      %p162 = scmp.eq.s32.totalorder %s19, 1
      %p163 = por %p161, %p162
      %p164 = scmp.ne.s32.totalorder %s155, %s156
      %p165 = scmp.eq.s32.totalorder %s19, 0
      %p166 = por %p164, %p165
      %p167 = scmp.ne.s32.totalorder %s155, %s156
      %p168 = scmp.eq.s32.totalorder %s20, 1
      %p169 = por %p167, %p168
      %p171 = scmp.ne.s32.totalorder %s156, %s170
      %p172 = scmp.eq.s32.totalorder %s20, 0
      %p173 = por %p171, %p172
      %s174 = ssub.s32 %s14, %s21
      %p175 = scmp.eq.s32.totalorder %s174, 0
      %s177 = sadd.s32 %s176, 1
      %s178 = scalar_select %p175, %s176, %s177
      %p181 = pneg %p175
      %p182 = scmp.eq.s32.totalorder %s14, 1
      %p183 = por %p181, %p182
      %p184 = scmp.ne.s32.totalorder %s176, %s179
      %p185 = scmp.eq.s32.totalorder %s14, 0
      %p186 = por %p184, %p185
      %p187 = scmp.ne.s32.totalorder %s176, %s179
      %p188 = scmp.eq.s32.totalorder %s19, 1
      %p189 = por %p187, %p188
      %p190 = scmp.ne.s32.totalorder %s179, %s180
      %p191 = scmp.eq.s32.totalorder %s19, 0
      %p192 = por %p190, %p191
      %p193 = scmp.ne.s32.totalorder %s179, %s180
      %p194 = scmp.eq.s32.totalorder %s20, 1
      %p195 = por %p193, %p194
      %p197 = scmp.ne.s32.totalorder %s180, %s196
      %p198 = scmp.eq.s32.totalorder %s20, 0
      %p199 = por %p197, %p198
      %p200 = scmp.le.s32.totalorder 1, %s14
      %p201 = scmp.lt.s32.totalorder %s14, 3
      %p202 = pnand %p200, %p201
      %p203 = pneg %p202
      // Predicated region
      $region9: #{acff_forward.1} parent=5 // pred_check
        _
      $region10: #{acff_forward.1} parent=5 // pred_check_branch
        %205 = sbr.rel (%p202) target = $region12
      $region11: #{acff_forward.1} parent=5 // pred_region
        %s206 = ssub.s32 %s14, 1
        // Predicated region
        $region13: #{acff_forward.1} parent=11 // pred_check
          %p207 = pneg %p61
        $region14: #{acff_forward.1} parent=11 // pred_check_branch
          %209 = sbr.rel (%p207) target = $region16
        $region15: #{acff_forward.1} parent=11 // pred_region
          %s211 = ssub.s32 16, 16
          %212 = vsyncadd [#allocation6], %s211
          %s214 = sshll.u32 %s1, 4
          %s215 = int_to_ptr.vmem [resolvable:$true] %s214
          %217 = dma.vmem_to_smem %s215, 16, [#allocation5], [#allocation6]
        $region16: #{acff_forward.1} parent=11 // pred_fallthru
          _
        // Predicated region
        $region17: #{acff_forward.1} parent=11 // pred_check
          %p218 = pneg %p82
        $region18: #{acff_forward.1} parent=11 // pred_check_branch
          %220 = sbr.rel (%p218) target = $region20
        $region19: #{acff_forward.1} parent=11 // pred_region
          _
        $region20: #{acff_forward.1} parent=11 // pred_fallthru
          _
        // Predicated region
        $region21: #{acff_forward.1} parent=11 // pred_check
          %p221 = pneg %p103
        $region22: #{acff_forward.1} parent=11 // pred_check_branch
          %223 = sbr.rel (%p221) target = $region24
        $region23: #{acff_forward.1} parent=11 // pred_region
          _
        $region24: #{acff_forward.1} parent=11 // pred_fallthru
          _
        // Predicated region
        $region25: #{acff_forward.1} parent=11 // pred_check
          %p224 = pneg %p124
        $region26: #{acff_forward.1} parent=11 // pred_check_branch
          %226 = sbr.rel (%p224) target = $region28
        $region27: #{acff_forward.1} parent=11 // pred_region
          _
        $region28: #{acff_forward.1} parent=11 // pred_fallthru
          _
        // Predicated region
        $region29: #{acff_forward.1} parent=11 // pred_check
          %p227 = pneg %p145
        $region30: #{acff_forward.1} parent=11 // pred_check_branch
          %229 = sbr.rel (%p227) target = $region32
        $region31: #{acff_forward.1} parent=11 // pred_region
          _
        $region32: #{acff_forward.1} parent=11 // pred_fallthru
          _
        // Predicated region
        $region33: #{acff_forward.1} parent=11 // pred_check
          %p230 = pneg %p166
        $region34: #{acff_forward.1} parent=11 // pred_check_branch
          %232 = sbr.rel (%p230) target = $region36
        $region35: #{acff_forward.1} parent=11 // pred_region
          _
        $region36: #{acff_forward.1} parent=11 // pred_fallthru
          _
      $region12: #{acff_forward.1} parent=5 // pred_fallthru
        _
      %p233 = scmp.lt.s32.totalorder %s14, 2
      // Predicated region
      $region37: #{acff_forward.1} parent=5 // pred_check
        %p234 = pneg %p233
      $region38: #{acff_forward.1} parent=5 // pred_check_branch
        %236 = sbr.rel (%p234) target = $region40
      $region39: #{acff_forward.1} parent=5 // pred_region
        // Predicated region
        $region41: #{acff_forward.1} parent=39 // pred_check
          %p237 = pneg %p34
        $region42: #{acff_forward.1} parent=39 // pred_check_branch
          %239 = sbr.rel (%p237) target = $region44
        $region43: #{acff_forward.1} parent=39 // pred_region
          %p240 = scmp.lt.s32.totalorder %s14, 1
          %s241 = scalar_select %p240, %s14, 1
          %s242 = smul.addr %s241, 8
          %s243 = smul.addr %s242, 8
          %s244 = scalar_lea.vmem %s0, %s243
        $region44: #{acff_forward.1} parent=39 // pred_fallthru
          _
      $region40: #{acff_forward.1} parent=5 // pred_fallthru
        _
      %p245 = scmp.le.s32.totalorder 1, %s14
      %p246 = scmp.lt.s32.totalorder %s14, 3
      %p247 = pnand %p245, %p246
      %p248 = pneg %p247
      // Predicated region
      $region45: #{acff_forward.1} parent=5 // pred_check
        _
      $region46: #{acff_forward.1} parent=5 // pred_check_branch
        %250 = sbr.rel (%p247) target = $region48
      $region47: #{acff_forward.1} parent=5 // pred_region
        %s251 = ssub.s32 %s14, 1
        // Predicated region
        $region49: #{acff_forward.1} parent=47 // pred_check
          %p252 = pneg %p61
        $region50: #{acff_forward.1} parent=47 // pred_check_branch
          %254 = sbr.rel (%p252) target = $region52
        $region51: #{acff_forward.1} parent=47 // pred_region
          %255 = dma.done [#allocation6], 16
        $region52: #{acff_forward.1} parent=47 // pred_fallthru
          _
        %256 = sfence
        %p257 = scmp.lt.s32.totalorder %s19, 1
        %s258 = scalar_select %p257, %s19, 1
        %s259 = smul.addr %s258, 8
        %s260 = smul.addr %s259, 8
        %s261 = scalar_lea.vmem %s0, %s260
        %p262 = pneg %p40
        %p263 = pneg %p37
        %p264 = pneg %p61
        %p265 = pneg %p58
        %p266 = pneg %p82
        %p267 = pneg %p79
        %p268 = pneg %p103
        %p269 = pneg %p100
        %p270 = pneg %p124
        %p271 = pneg %p121
        %p272 = pneg %p145
        %p273 = pneg %p142
        %p274 = pneg %p166
        %p275 = pneg %p163
        %p276 = pneg %p192
        %p277 = pneg %p189
        %p278 = scmp.lt.s32.totalorder %s19, 1
        %s279 = scalar_select %p278, %s19, 1
        %s280 = smul.addr %s279, 2
        %s281 = smul.addr %s280, 8
        %s282 = scalar_lea.vmem %s7, %s281
        %p283 = scmp.lt.s32.totalorder %s19, 1
        %s284 = scalar_select %p283, %s19, 1
        %s285 = smul.addr %s284, 8
        %s286 = smul.addr %s285, 8
        %s287 = scalar_lea.vmem %s0, %s286
        %p288 = scmp.lt.s32.totalorder %s19, 1
        %s289 = scalar_select %p288, %s19, 1
        %s290 = smul.addr %s289, 2
        %s291 = smul.addr %s290, 8
        %s292 = scalar_lea.vmem %s7, %s291
        %vm293 = vcmask 162816
        %294 = vst.msk [vmem:[#allocation2] sm:$0xff] %vm293, 0.0
        %295 = vst.msk [vmem:[#allocation2 + $0x8] sm:$0xff] %vm293, 0.0
        %vm296 = vcmask 158720
        %297 = vst.msk [vmem:[#allocation2 + $0x10] sm:$0xf] %vm296, 0.0
        %298 = vst.msk [vmem:[#allocation2 + $0x18] sm:$0xff] %vm293, 0.0
        %299 = vst.msk [vmem:[#allocation2 + $0x20] sm:$0xff] %vm293, 0.0
        %300 = vst.msk [vmem:[#allocation2 + $0x28] sm:$0xf] %vm296, 0.0
        %301 = vst.msk [vmem:[#allocation2 + $0x30] sm:$0xff] %vm293, 0.0
        %302 = vst.msk [vmem:[#allocation2 + $0x38] sm:$0xff] %vm293, 0.0
        %303 = vst.msk [vmem:[#allocation2 + $0x40] sm:$0xf] %vm296, 0.0
        %304 = vst.msk [vmem:[#allocation2 + $0x48] sm:$0xff] %vm293, 0.0
        %305 = vst.msk [vmem:[#allocation2 + $0x50] sm:$0xff] %vm293, 0.0
        %306 = vst.msk [vmem:[#allocation2 + $0x58] sm:$0xf] %vm296, 0.0
        %v307 = vld [vmem:[%s287] sm:$0xff]
        %v308 = vld [vmem:[%s287 + $0x8] sm:$0xff]
        %v309 = vld [vmem:[%s287 + $0x10] sm:$0xff]
        %v310 = vld [vmem:[%s287 + $0x18] sm:$0xff]
        %v311 = vld [vmem:[%s287 + $0x20] sm:$0xff]
        %v312 = vld [vmem:[%s287 + $0x28] sm:$0xff]
        %v313 = vld [vmem:[%s287 + $0x30] sm:$0xff]
        %v314 = vld [vmem:[%s287 + $0x38] sm:$0xff]
        %323 = vrot.lane.b32.xlu0 %v307, 2
        %v324 = vpop.permute.xlu0 %323
        %325 = vrot.lane.b32.xlu0 %v308, 2
        %v326 = vpop.permute.xlu0 %325
        %327 = vrot.lane.b32.xlu0 %v309, 2
        %v328 = vpop.permute.xlu0 %327
        %329 = vrot.lane.b32.xlu0 %v310, 2
        %v330 = vpop.permute.xlu0 %329
        %331 = vrot.lane.b32.xlu0 %v311, 2
        %v332 = vpop.permute.xlu0 %331
        %333 = vrot.lane.b32.xlu0 %v312, 2
        %v334 = vpop.permute.xlu0 %333
        %335 = vrot.lane.b32.xlu0 %v313, 2
        %v336 = vpop.permute.xlu0 %335
        %337 = vrot.lane.b32.xlu0 %v314, 2
        %v338 = vpop.permute.xlu0 %337
        %vm347 = vcmask 146448
        %348 = vst.msk [vmem:[#allocation2 + $0x2] sm:$0xff] %vm347, %v324
        %349 = vst.msk [vmem:[#allocation2 + $0xa] sm:$0xff] %vm347, %v326
        %350 = vst.msk [vmem:[#allocation2 + $0x1a] sm:$0xff] %vm347, %v328
        %351 = vst.msk [vmem:[#allocation2 + $0x22] sm:$0xff] %vm347, %v330
        %352 = vst.msk [vmem:[#allocation2 + $0x32] sm:$0xff] %vm347, %v332
        %353 = vst.msk [vmem:[#allocation2 + $0x3a] sm:$0xff] %vm347, %v334
        %354 = vst.msk [vmem:[#allocation2 + $0x4a] sm:$0xff] %vm347, %v336
        %355 = vst.msk [vmem:[#allocation2 + $0x52] sm:$0xff] %vm347, %v338
        %v356 = vld [vmem:[#allocation2] sm:$0xff]
        %v357 = vld [vmem:[#allocation2 + $0x8] sm:$0xff]
        %v358 = vld [vmem:[#allocation2 + $0x10] sm:$0xf]
        %v359 = vld [vmem:[#allocation2 + $0x18] sm:$0xff]
        %v360 = vld [vmem:[#allocation2 + $0x20] sm:$0xff]
        %v361 = vld [vmem:[#allocation2 + $0x28] sm:$0xf]
        %v362 = vld [vmem:[#allocation2 + $0x30] sm:$0xff]
        %v363 = vld [vmem:[#allocation2 + $0x38] sm:$0xff]
        %v364 = vld [vmem:[#allocation2 + $0x40] sm:$0xf]
        %v365 = vld [vmem:[#allocation2 + $0x48] sm:$0xff]
        %v366 = vld [vmem:[#allocation2 + $0x50] sm:$0xff]
        %v367 = vld [vmem:[#allocation2 + $0x58] sm:$0xf]
        %s368 = sld [smem:[#allocation5]]
        %v369 = vstv %s368
        %v370 = vmul.f32 %v356, %v369
        %v371 = vmul.f32 %v357, %v369
        %s372 = sld [smem:[#allocation5 + $0x1]]
        %v373 = vstv %s372
        %v374 = vmul.f32 %v356, %v373
        %v375 = vmul.f32 %v357, %v373
        %378 = vrot.lane.b32.xlu0 %v374, 127
        %v379 = vpop.permute.xlu0 %378
        %380 = vrot.lane.b32.xlu0 %v375, 127
        %v381 = vpop.permute.xlu0 %380
        %v384 = vadd.f32 %v370, %v379
        %v385 = vadd.f32 %v371, %v381
        %s386 = sld [smem:[#allocation5 + $0x2]]
        %v387 = vstv %s386
        %v388 = vmul.f32 %v356, %v387
        %v389 = vmul.f32 %v357, %v387
        %392 = vrot.lane.b32.xlu0 %v388, 126
        %v393 = vpop.permute.xlu0 %392
        %394 = vrot.lane.b32.xlu0 %v389, 126
        %v395 = vpop.permute.xlu0 %394
        %v398 = vadd.f32 %v384, %v393
        %v399 = vadd.f32 %v385, %v395
        %s400 = sld [smem:[#allocation5 + $0x3]]
        %v401 = vstv %s400
        %v402 = vmul.f32 %v356, %v401
        %v403 = vmul.f32 %v357, %v401
        %v404 = vmul.f32 %v358, %v401
        %vm408 = vcmask 1046528
        %v409 = vrot.slane %v402, 1
        %v410 = vrot.slane %v403, 1
        %v411 = vsel %vm408, %v409, %v410
        %v412 = vrot.slane %v404, 1
        %v413 = vsel %vm408, %v410, %v412
        %v416 = vadd.f32 %v398, %v411
        %v417 = vadd.f32 %v399, %v413
        %s418 = sld [smem:[#allocation5 + $0x4]]
        %v419 = vstv %s418
        %v420 = vmul.f32 %v356, %v419
        %v421 = vmul.f32 %v357, %v419
        %v422 = vmul.f32 %v358, %v419
        %v426 = vrot.slane %v420, 1
        %v427 = vrot.slane %v421, 1
        %v428 = vsel %vm408, %v426, %v427
        %v429 = vrot.slane %v422, 1
        %v430 = vsel %vm408, %v427, %v429
        %431 = vrot.lane.b32.xlu0 %v428, 127
        %v432 = vpop.permute.xlu0 %431
        %433 = vrot.lane.b32.xlu0 %v430, 127
        %v434 = vpop.permute.xlu0 %433
        %v437 = vadd.f32 %v416, %v432
        %v438 = vadd.f32 %v417, %v434
        %s439 = sld [smem:[#allocation5 + $0x5]]
        %v440 = vstv %s439
        %v441 = vmul.f32 %v356, %v440
        %v442 = vmul.f32 %v357, %v440
        %v443 = vmul.f32 %v358, %v440
        %v447 = vrot.slane %v441, 1
        %v448 = vrot.slane %v442, 1
        %v449 = vsel %vm408, %v447, %v448
        %v450 = vrot.slane %v443, 1
        %v451 = vsel %vm408, %v448, %v450
        %452 = vrot.lane.b32.xlu0 %v449, 126
        %v453 = vpop.permute.xlu0 %452
        %454 = vrot.lane.b32.xlu0 %v451, 126
        %v455 = vpop.permute.xlu0 %454
        %v458 = vadd.f32 %v437, %v453
        %v459 = vadd.f32 %v438, %v455
        %s460 = sld [smem:[#allocation5 + $0x27]]
        %v461 = vstv %s460
        %v462 = vmul.f32 %v356, %v461
        %v463 = vmul.f32 %v357, %v461
        %v464 = vmul.f32 %v358, %v461
        %v468 = vrot.slane %v462, 1
        %v469 = vrot.slane %v463, 1
        %v470 = vsel %vm408, %v468, %v469
        %v471 = vrot.slane %v464, 1
        %v472 = vsel %vm408, %v469, %v471
        %473 = vrot.lane.b32.xlu0 %v470, 1
        %v474 = vpop.permute.xlu0 %473
        %475 = vrot.lane.b32.xlu0 %v472, 1
        %v476 = vpop.permute.xlu0 %475
        %v479 = vadd.f32 %v458, %v474
        %v480 = vadd.f32 %v459, %v476
        %s481 = sld [smem:[#allocation5 + $0x28]]
        %v482 = vstv %s481
        %v483 = vmul.f32 %v356, %v482
        %v484 = vmul.f32 %v357, %v482
        %v485 = vmul.f32 %v358, %v482
        %v489 = vrot.slane %v483, 1
        %v490 = vrot.slane %v484, 1
        %v491 = vsel %vm408, %v489, %v490
        %v492 = vrot.slane %v485, 1
        %v493 = vsel %vm408, %v490, %v492
        %494 = vrot.lane.b32.xlu0 %v491, 127
        %v495 = vpop.permute.xlu0 %494
        %496 = vrot.lane.b32.xlu0 %v493, 127
        %v497 = vpop.permute.xlu0 %496
        %v500 = vadd.f32 %v479, %v495
        %v501 = vadd.f32 %v480, %v497
        %s502 = sld [smem:[#allocation5 + $0x29]]
        %v503 = vstv %s502
        %v504 = vmul.f32 %v356, %v503
        %v505 = vmul.f32 %v357, %v503
        %v506 = vmul.f32 %v358, %v503
        %v510 = vrot.slane %v504, 1
        %v511 = vrot.slane %v505, 1
        %v512 = vsel %vm408, %v510, %v511
        %v513 = vrot.slane %v506, 1
        %v514 = vsel %vm408, %v511, %v513
        %515 = vrot.lane.b32.xlu0 %v512, 125
        %v516 = vpop.permute.xlu0 %515
        %517 = vrot.lane.b32.xlu0 %v514, 125
        %v518 = vpop.permute.xlu0 %517
        %v521 = vadd.f32 %v500, %v516
        %v522 = vadd.f32 %v501, %v518
        %s523 = sld [smem:[#allocation5 + $0x4b]]
        %v524 = vstv %s523
        %v525 = vmul.f32 %v356, %v524
        %v526 = vmul.f32 %v357, %v524
        %v527 = vmul.f32 %v358, %v524
        %v531 = vrot.slane %v525, 1
        %v532 = vrot.slane %v526, 1
        %v533 = vsel %vm408, %v531, %v532
        %v534 = vrot.slane %v527, 1
        %v535 = vsel %vm408, %v532, %v534
        %536 = vrot.lane.b32.xlu0 %v533, 2
        %v537 = vpop.permute.xlu0 %536
        %538 = vrot.lane.b32.xlu0 %v535, 2
        %v539 = vpop.permute.xlu0 %538
        %v542 = vadd.f32 %v521, %v537
        %v543 = vadd.f32 %v522, %v539
        %s544 = sld [smem:[#allocation5 + $0x4c]]
        %v545 = vstv %s544
        %v546 = vmul.f32 %v356, %v545
        %v547 = vmul.f32 %v357, %v545
        %v548 = vmul.f32 %v358, %v545
        %v552 = vrot.slane %v546, 1
        %v553 = vrot.slane %v547, 1
        %v554 = vsel %vm408, %v552, %v553
        %v555 = vrot.slane %v548, 1
        %v556 = vsel %vm408, %v553, %v555
        %557 = vrot.lane.b32.xlu0 %v554, 127
        %v558 = vpop.permute.xlu0 %557
        %559 = vrot.lane.b32.xlu0 %v556, 127
        %v560 = vpop.permute.xlu0 %559
        %v563 = vadd.f32 %v542, %v558
        %v564 = vadd.f32 %v543, %v560
        %s565 = sld [smem:[#allocation5 + $0x4d]]
        %v566 = vstv %s565
        %v567 = vmul.f32 %v356, %v566
        %v568 = vmul.f32 %v357, %v566
        %v569 = vmul.f32 %v358, %v566
        %v573 = vrot.slane %v567, 1
        %v574 = vrot.slane %v568, 1
        %v575 = vsel %vm408, %v573, %v574
        %v576 = vrot.slane %v569, 1
        %v577 = vsel %vm408, %v574, %v576
        %578 = vrot.lane.b32.xlu0 %v575, 124
        %v579 = vpop.permute.xlu0 %578
        %580 = vrot.lane.b32.xlu0 %v577, 124
        %v581 = vpop.permute.xlu0 %580
        %v584 = vadd.f32 %v563, %v579
        %v585 = vadd.f32 %v564, %v581
        %s586 = sld [smem:[#allocation5 + $0x6]]
        %v587 = vstv %s586
        %v588 = vmul.f32 %v356, %v587
        %v589 = vmul.f32 %v357, %v587
        %v590 = vmul.f32 %v358, %v587
        %vm594 = vcmask 1045504
        %v595 = vrot.slane %v588, 2
        %v596 = vrot.slane %v589, 2
        %v597 = vsel %vm594, %v595, %v596
        %v598 = vrot.slane %v590, 2
        %v599 = vsel %vm594, %v596, %v598
        %v602 = vadd.f32 %v584, %v597
        %v603 = vadd.f32 %v585, %v599
        %s604 = sld [smem:[#allocation5 + $0x7]]
        %v605 = vstv %s604
        %v606 = vmul.f32 %v356, %v605
        %v607 = vmul.f32 %v357, %v605
        %v608 = vmul.f32 %v358, %v605
        %v612 = vrot.slane %v606, 2
        %v613 = vrot.slane %v607, 2
        %v614 = vsel %vm594, %v612, %v613
        %v615 = vrot.slane %v608, 2
        %v616 = vsel %vm594, %v613, %v615
        %617 = vrot.lane.b32.xlu0 %v614, 127
        %v618 = vpop.permute.xlu0 %617
        %619 = vrot.lane.b32.xlu0 %v616, 127
        %v620 = vpop.permute.xlu0 %619
        %v623 = vadd.f32 %v602, %v618
        %v624 = vadd.f32 %v603, %v620
        %s625 = sld [smem:[#allocation5 + $0x8]]
        %v626 = vstv %s625
        %v627 = vmul.f32 %v356, %v626
        %v628 = vmul.f32 %v357, %v626
        %v629 = vmul.f32 %v358, %v626
        %v633 = vrot.slane %v627, 2
        %v634 = vrot.slane %v628, 2
        %v635 = vsel %vm594, %v633, %v634
        %v636 = vrot.slane %v629, 2
        %v637 = vsel %vm594, %v634, %v636
        %638 = vrot.lane.b32.xlu0 %v635, 126
        %v639 = vpop.permute.xlu0 %638
        %640 = vrot.lane.b32.xlu0 %v637, 126
        %v641 = vpop.permute.xlu0 %640
        %v644 = vadd.f32 %v623, %v639
        %v645 = vadd.f32 %v624, %v641
        %s646 = sld [smem:[#allocation5 + $0x24]]
        %v647 = vstv %s646
        %v648 = vmul.f32 %v356, %v647
        %v649 = vmul.f32 %v357, %v647
        %vm652 = vcmask 1040384
        %v653 = vrot.slane %v648, 7
        %v654 = vrot.slane %v649, 7
        %v655 = vsel %vm652, %v653, %v654
        %656 = vrot.lane.b32.xlu0 %v653, 1
        %v657 = vpop.permute.xlu0 %656
        %658 = vrot.lane.b32.xlu0 %v655, 1
        %v659 = vpop.permute.xlu0 %658
        %v662 = vadd.f32 %v644, %v657
        %v663 = vadd.f32 %v645, %v659
        %s664 = sld [smem:[#allocation5 + $0x25]]
        %v665 = vstv %s664
        %v666 = vmul.f32 %v356, %v665
        %v667 = vmul.f32 %v357, %v665
        %v670 = vrot.slane %v666, 7
        %v671 = vrot.slane %v667, 7
        %v672 = vsel %vm652, %v670, %v671
        %673 = vrot.lane.b32.xlu0 %v670, 127
        %v674 = vpop.permute.xlu0 %673
        %675 = vrot.lane.b32.xlu0 %v672, 127
        %v676 = vpop.permute.xlu0 %675
        %v679 = vadd.f32 %v662, %v674
        %v680 = vadd.f32 %v663, %v676
        %s681 = sld [smem:[#allocation5 + $0x26]]
        %v682 = vstv %s681
        %v683 = vmul.f32 %v356, %v682
        %v684 = vmul.f32 %v357, %v682
        %v687 = vrot.slane %v683, 7
        %v688 = vrot.slane %v684, 7
        %v689 = vsel %vm652, %v687, %v688
        %690 = vrot.lane.b32.xlu0 %v687, 125
        %v691 = vpop.permute.xlu0 %690
        %692 = vrot.lane.b32.xlu0 %v689, 125
        %v693 = vpop.permute.xlu0 %692
        %v696 = vadd.f32 %v679, %v691
        %v697 = vadd.f32 %v680, %v693
        %s698 = sld [smem:[#allocation5 + $0x2a]]
        %v699 = vstv %s698
        %v700 = vmul.f32 %v356, %v699
        %v701 = vmul.f32 %v357, %v699
        %v702 = vmul.f32 %v358, %v699
        %vm706 = vcmask 1044480
        %v707 = vrot.slane %v700, 3
        %v708 = vrot.slane %v701, 3
        %v709 = vsel %vm706, %v707, %v708
        %v710 = vrot.slane %v702, 3
        %v711 = vsel %vm706, %v708, %v710
        %712 = vrot.lane.b32.xlu0 %v709, 1
        %v713 = vpop.permute.xlu0 %712
        %714 = vrot.lane.b32.xlu0 %v711, 1
        %v715 = vpop.permute.xlu0 %714
        %v718 = vadd.f32 %v696, %v713
        %v719 = vadd.f32 %v697, %v715
        %s720 = sld [smem:[#allocation5 + $0x2b]]
        %v721 = vstv %s720
        %v722 = vmul.f32 %v356, %v721
        %v723 = vmul.f32 %v357, %v721
        %v724 = vmul.f32 %v358, %v721
        %v728 = vrot.slane %v722, 3
        %v729 = vrot.slane %v723, 3
        %v730 = vsel %vm706, %v728, %v729
        %v731 = vrot.slane %v724, 3
        %v732 = vsel %vm706, %v729, %v731
        %733 = vrot.lane.b32.xlu0 %v730, 127
        %v734 = vpop.permute.xlu0 %733
        %735 = vrot.lane.b32.xlu0 %v732, 127
        %v736 = vpop.permute.xlu0 %735
        %v739 = vadd.f32 %v718, %v734
        %v740 = vadd.f32 %v719, %v736
        %s741 = sld [smem:[#allocation5 + $0x2c]]
        %v742 = vstv %s741
        %v743 = vmul.f32 %v356, %v742
        %v744 = vmul.f32 %v357, %v742
        %v745 = vmul.f32 %v358, %v742
        %v749 = vrot.slane %v743, 3
        %v750 = vrot.slane %v744, 3
        %v751 = vsel %vm706, %v749, %v750
        %v752 = vrot.slane %v745, 3
        %v753 = vsel %vm706, %v750, %v752
        %754 = vrot.lane.b32.xlu0 %v751, 125
        %v755 = vpop.permute.xlu0 %754
        %756 = vrot.lane.b32.xlu0 %v753, 125
        %v757 = vpop.permute.xlu0 %756
        %v760 = vadd.f32 %v739, %v755
        %v761 = vadd.f32 %v740, %v757
        %s762 = sld [smem:[#allocation5 + $0x48]]
        %v763 = vstv %s762
        %v764 = vmul.f32 %v356, %v763
        %v765 = vmul.f32 %v357, %v763
        %vm768 = vcmask 1041408
        %v769 = vrot.slane %v764, 6
        %v770 = vrot.slane %v765, 6
        %v771 = vsel %vm768, %v769, %v770
        %772 = vrot.lane.b32.xlu0 %v769, 2
        %v773 = vpop.permute.xlu0 %772
        %774 = vrot.lane.b32.xlu0 %v771, 2
        %v775 = vpop.permute.xlu0 %774
        %v778 = vadd.f32 %v760, %v773
        %v779 = vadd.f32 %v761, %v775
        %s780 = sld [smem:[#allocation5 + $0x49]]
        %v781 = vstv %s780
        %v782 = vmul.f32 %v356, %v781
        %v783 = vmul.f32 %v357, %v781
        %v786 = vrot.slane %v782, 6
        %v787 = vrot.slane %v783, 6
        %v788 = vsel %vm768, %v786, %v787
        %789 = vrot.lane.b32.xlu0 %v786, 127
        %v790 = vpop.permute.xlu0 %789
        %791 = vrot.lane.b32.xlu0 %v788, 127
        %v792 = vpop.permute.xlu0 %791
        %v795 = vadd.f32 %v778, %v790
        %v796 = vadd.f32 %v779, %v792
        %s797 = sld [smem:[#allocation5 + $0x4a]]
        %v798 = vstv %s797
        %v799 = vmul.f32 %v356, %v798
        %v800 = vmul.f32 %v357, %v798
        %v803 = vrot.slane %v799, 6
        %v804 = vrot.slane %v800, 6
        %v805 = vsel %vm768, %v803, %v804
        %806 = vrot.lane.b32.xlu0 %v803, 124
        %v807 = vpop.permute.xlu0 %806
        %808 = vrot.lane.b32.xlu0 %v805, 124
        %v809 = vpop.permute.xlu0 %808
        %v812 = vadd.f32 %v795, %v807
        %v813 = vadd.f32 %v796, %v809
        %s814 = sld [smem:[#allocation5 + $0x4e]]
        %v815 = vstv %s814
        %v816 = vmul.f32 %v356, %v815
        %v817 = vmul.f32 %v357, %v815
        %v818 = vmul.f32 %v358, %v815
        %vm822 = vcmask 1043456
        %v823 = vrot.slane %v816, 4
        %v824 = vrot.slane %v817, 4
        %v825 = vsel %vm822, %v823, %v824
        %v826 = vrot.slane %v818, 4
        %v827 = vsel %vm822, %v824, %v826
        %828 = vrot.lane.b32.xlu0 %v825, 2
        %v829 = vpop.permute.xlu0 %828
        %830 = vrot.lane.b32.xlu0 %v827, 2
        %v831 = vpop.permute.xlu0 %830
        %v834 = vadd.f32 %v812, %v829
        %v835 = vadd.f32 %v813, %v831
        %s836 = sld [smem:[#allocation5 + $0x4f]]
        %v837 = vstv %s836
        %v838 = vmul.f32 %v356, %v837
        %v839 = vmul.f32 %v357, %v837
        %v840 = vmul.f32 %v358, %v837
        %v844 = vrot.slane %v838, 4
        %v845 = vrot.slane %v839, 4
        %v846 = vsel %vm822, %v844, %v845
        %v847 = vrot.slane %v840, 4
        %v848 = vsel %vm822, %v845, %v847
        %849 = vrot.lane.b32.xlu0 %v846, 127
        %v850 = vpop.permute.xlu0 %849
        %851 = vrot.lane.b32.xlu0 %v848, 127
        %v852 = vpop.permute.xlu0 %851
        %v855 = vadd.f32 %v834, %v850
        %v856 = vadd.f32 %v835, %v852
        %s857 = sld [smem:[#allocation5 + $0x50]]
        %v858 = vstv %s857
        %v859 = vmul.f32 %v356, %v858
        %v860 = vmul.f32 %v357, %v858
        %v861 = vmul.f32 %v358, %v858
        %v865 = vrot.slane %v859, 4
        %v866 = vrot.slane %v860, 4
        %v867 = vsel %vm822, %v865, %v866
        %v868 = vrot.slane %v861, 4
        %v869 = vsel %vm822, %v866, %v868
        %870 = vrot.lane.b32.xlu0 %v867, 124
        %v871 = vpop.permute.xlu0 %870
        %872 = vrot.lane.b32.xlu0 %v869, 124
        %v873 = vpop.permute.xlu0 %872
        %v876 = vadd.f32 %v855, %v871
        %v877 = vadd.f32 %v856, %v873
        %880 = vrot.lane.b32.xlu0 %v876, 126
        %v881 = vpop.permute.xlu0 %880
        %882 = vrot.lane.b32.xlu0 %v877, 126
        %v883 = vpop.permute.xlu0 %882
        %vm886 = vcmask 113666
        %887 = vst.msk [vmem:[#allocation3 - $0x2] sm:$0xfc] %vm886, %v881
        %vm888 = vcmask 113664
        %889 = vst.msk [vmem:[#allocation3 + $0x6] sm:$0xff] %vm888, %v883
        %s890 = sld [smem:[#allocation5 + $0x9]]
        %v891 = vstv %s890
        %v892 = vmul.f32 %v359, %v891
        %v893 = vmul.f32 %v360, %v891
        %s894 = sld [smem:[#allocation5 + $0xa]]
        %v895 = vstv %s894
        %v896 = vmul.f32 %v359, %v895
        %v897 = vmul.f32 %v360, %v895
        %900 = vrot.lane.b32.xlu0 %v896, 127
        %v901 = vpop.permute.xlu0 %900
        %902 = vrot.lane.b32.xlu0 %v897, 127
        %v903 = vpop.permute.xlu0 %902
        %v906 = vadd.f32 %v892, %v901
        %v907 = vadd.f32 %v893, %v903
        %s908 = sld [smem:[#allocation5 + $0xb]]
        %v909 = vstv %s908
        %v910 = vmul.f32 %v359, %v909
        %v911 = vmul.f32 %v360, %v909
        %914 = vrot.lane.b32.xlu0 %v910, 126
        %v915 = vpop.permute.xlu0 %914
        %916 = vrot.lane.b32.xlu0 %v911, 126
        %v917 = vpop.permute.xlu0 %916
        %v920 = vadd.f32 %v906, %v915
        %v921 = vadd.f32 %v907, %v917
        %s922 = sld [smem:[#allocation5 + $0xc]]
        %v923 = vstv %s922
        %v924 = vmul.f32 %v359, %v923
        %v925 = vmul.f32 %v360, %v923
        %v926 = vmul.f32 %v361, %v923
        %v930 = vrot.slane %v924, 1
        %v931 = vrot.slane %v925, 1
        %v932 = vsel %vm408, %v930, %v931
        %v933 = vrot.slane %v926, 1
        %v934 = vsel %vm408, %v931, %v933
        %v937 = vadd.f32 %v920, %v932
        %v938 = vadd.f32 %v921, %v934
        %s939 = sld [smem:[#allocation5 + $0xd]]
        %v940 = vstv %s939
        %v941 = vmul.f32 %v359, %v940
        %v942 = vmul.f32 %v360, %v940
        %v943 = vmul.f32 %v361, %v940
        %v947 = vrot.slane %v941, 1
        %v948 = vrot.slane %v942, 1
        %v949 = vsel %vm408, %v947, %v948
        %v950 = vrot.slane %v943, 1
        %v951 = vsel %vm408, %v948, %v950
        %952 = vrot.lane.b32.xlu0 %v949, 127
        %v953 = vpop.permute.xlu0 %952
        %954 = vrot.lane.b32.xlu0 %v951, 127
        %v955 = vpop.permute.xlu0 %954
        %v958 = vadd.f32 %v937, %v953
        %v959 = vadd.f32 %v938, %v955
        %s960 = sld [smem:[#allocation5 + $0xe]]
        %v961 = vstv %s960
        %v962 = vmul.f32 %v359, %v961
        %v963 = vmul.f32 %v360, %v961
        %v964 = vmul.f32 %v361, %v961
        %v968 = vrot.slane %v962, 1
        %v969 = vrot.slane %v963, 1
        %v970 = vsel %vm408, %v968, %v969
        %v971 = vrot.slane %v964, 1
        %v972 = vsel %vm408, %v969, %v971
        %973 = vrot.lane.b32.xlu0 %v970, 126
        %v974 = vpop.permute.xlu0 %973
        %975 = vrot.lane.b32.xlu0 %v972, 126
        %v976 = vpop.permute.xlu0 %975
        %v979 = vadd.f32 %v958, %v974
        %v980 = vadd.f32 %v959, %v976
        %s981 = sld [smem:[#allocation5 + $0x30]]
        %v982 = vstv %s981
        %v983 = vmul.f32 %v359, %v982
        %v984 = vmul.f32 %v360, %v982
        %v985 = vmul.f32 %v361, %v982
        %v989 = vrot.slane %v983, 1
        %v990 = vrot.slane %v984, 1
        %v991 = vsel %vm408, %v989, %v990
        %v992 = vrot.slane %v985, 1
        %v993 = vsel %vm408, %v990, %v992
        %994 = vrot.lane.b32.xlu0 %v991, 1
        %v995 = vpop.permute.xlu0 %994
        %996 = vrot.lane.b32.xlu0 %v993, 1
        %v997 = vpop.permute.xlu0 %996
        %v1000 = vadd.f32 %v979, %v995
        %v1001 = vadd.f32 %v980, %v997
        %s1002 = sld [smem:[#allocation5 + $0x31]]
        %v1003 = vstv %s1002
        %v1004 = vmul.f32 %v359, %v1003
        %v1005 = vmul.f32 %v360, %v1003
        %v1006 = vmul.f32 %v361, %v1003
        %v1010 = vrot.slane %v1004, 1
        %v1011 = vrot.slane %v1005, 1
        %v1012 = vsel %vm408, %v1010, %v1011
        %v1013 = vrot.slane %v1006, 1
        %v1014 = vsel %vm408, %v1011, %v1013
        %1015 = vrot.lane.b32.xlu0 %v1012, 127
        %v1016 = vpop.permute.xlu0 %1015
        %1017 = vrot.lane.b32.xlu0 %v1014, 127
        %v1018 = vpop.permute.xlu0 %1017
        %v1021 = vadd.f32 %v1000, %v1016
        %v1022 = vadd.f32 %v1001, %v1018
        %s1023 = sld [smem:[#allocation5 + $0x32]]
        %v1024 = vstv %s1023
        %v1025 = vmul.f32 %v359, %v1024
        %v1026 = vmul.f32 %v360, %v1024
        %v1027 = vmul.f32 %v361, %v1024
        %v1031 = vrot.slane %v1025, 1
        %v1032 = vrot.slane %v1026, 1
        %v1033 = vsel %vm408, %v1031, %v1032
        %v1034 = vrot.slane %v1027, 1
        %v1035 = vsel %vm408, %v1032, %v1034
        %1036 = vrot.lane.b32.xlu0 %v1033, 125
        %v1037 = vpop.permute.xlu0 %1036
        %1038 = vrot.lane.b32.xlu0 %v1035, 125
        %v1039 = vpop.permute.xlu0 %1038
        %v1042 = vadd.f32 %v1021, %v1037
        %v1043 = vadd.f32 %v1022, %v1039
        %s1044 = sld [smem:[#allocation5 + $0x54]]
        %v1045 = vstv %s1044
        %v1046 = vmul.f32 %v359, %v1045
        %v1047 = vmul.f32 %v360, %v1045
        %v1048 = vmul.f32 %v361, %v1045
        %v1052 = vrot.slane %v1046, 1
        %v1053 = vrot.slane %v1047, 1
        %v1054 = vsel %vm408, %v1052, %v1053
        %v1055 = vrot.slane %v1048, 1
        %v1056 = vsel %vm408, %v1053, %v1055
        %1057 = vrot.lane.b32.xlu0 %v1054, 2
        %v1058 = vpop.permute.xlu0 %1057
        %1059 = vrot.lane.b32.xlu0 %v1056, 2
        %v1060 = vpop.permute.xlu0 %1059
        %v1063 = vadd.f32 %v1042, %v1058
        %v1064 = vadd.f32 %v1043, %v1060
        %s1065 = sld [smem:[#allocation5 + $0x55]]
        %v1066 = vstv %s1065
        %v1067 = vmul.f32 %v359, %v1066
        %v1068 = vmul.f32 %v360, %v1066
        %v1069 = vmul.f32 %v361, %v1066
        %v1073 = vrot.slane %v1067, 1
        %v1074 = vrot.slane %v1068, 1
        %v1075 = vsel %vm408, %v1073, %v1074
        %v1076 = vrot.slane %v1069, 1
        %v1077 = vsel %vm408, %v1074, %v1076
        %1078 = vrot.lane.b32.xlu0 %v1075, 127
        %v1079 = vpop.permute.xlu0 %1078
        %1080 = vrot.lane.b32.xlu0 %v1077, 127
        %v1081 = vpop.permute.xlu0 %1080
        %v1084 = vadd.f32 %v1063, %v1079
        %v1085 = vadd.f32 %v1064, %v1081
        %s1086 = sld [smem:[#allocation5 + $0x56]]
        %v1087 = vstv %s1086
        %v1088 = vmul.f32 %v359, %v1087
        %v1089 = vmul.f32 %v360, %v1087
        %v1090 = vmul.f32 %v361, %v1087
        %v1094 = vrot.slane %v1088, 1
        %v1095 = vrot.slane %v1089, 1
        %v1096 = vsel %vm408, %v1094, %v1095
        %v1097 = vrot.slane %v1090, 1
        %v1098 = vsel %vm408, %v1095, %v1097
        %1099 = vrot.lane.b32.xlu0 %v1096, 124
        %v1100 = vpop.permute.xlu0 %1099
        %1101 = vrot.lane.b32.xlu0 %v1098, 124
        %v1102 = vpop.permute.xlu0 %1101
        %v1105 = vadd.f32 %v1084, %v1100
        %v1106 = vadd.f32 %v1085, %v1102
        %s1107 = sld [smem:[#allocation5 + $0xf]]
        %v1108 = vstv %s1107
        %v1109 = vmul.f32 %v359, %v1108
        %v1110 = vmul.f32 %v360, %v1108
        %v1111 = vmul.f32 %v361, %v1108
        %v1115 = vrot.slane %v1109, 2
        %v1116 = vrot.slane %v1110, 2
        %v1117 = vsel %vm594, %v1115, %v1116
        %v1118 = vrot.slane %v1111, 2
        %v1119 = vsel %vm594, %v1116, %v1118
        %v1122 = vadd.f32 %v1105, %v1117
        %v1123 = vadd.f32 %v1106, %v1119
        %s1124 = sld [smem:[#allocation5 + $0x10]]
        %v1125 = vstv %s1124
        %v1126 = vmul.f32 %v359, %v1125
        %v1127 = vmul.f32 %v360, %v1125
        %v1128 = vmul.f32 %v361, %v1125
        %v1132 = vrot.slane %v1126, 2
        %v1133 = vrot.slane %v1127, 2
        %v1134 = vsel %vm594, %v1132, %v1133
        %v1135 = vrot.slane %v1128, 2
        %v1136 = vsel %vm594, %v1133, %v1135
        %1137 = vrot.lane.b32.xlu0 %v1134, 127
        %v1138 = vpop.permute.xlu0 %1137
        %1139 = vrot.lane.b32.xlu0 %v1136, 127
        %v1140 = vpop.permute.xlu0 %1139
        %v1143 = vadd.f32 %v1122, %v1138
        %v1144 = vadd.f32 %v1123, %v1140
        %s1145 = sld [smem:[#allocation5 + $0x11]]
        %v1146 = vstv %s1145
        %v1147 = vmul.f32 %v359, %v1146
        %v1148 = vmul.f32 %v360, %v1146
        %v1149 = vmul.f32 %v361, %v1146
        %v1153 = vrot.slane %v1147, 2
        %v1154 = vrot.slane %v1148, 2
        %v1155 = vsel %vm594, %v1153, %v1154
        %v1156 = vrot.slane %v1149, 2
        %v1157 = vsel %vm594, %v1154, %v1156
        %1158 = vrot.lane.b32.xlu0 %v1155, 126
        %v1159 = vpop.permute.xlu0 %1158
        %1160 = vrot.lane.b32.xlu0 %v1157, 126
        %v1161 = vpop.permute.xlu0 %1160
        %v1164 = vadd.f32 %v1143, %v1159
        %v1165 = vadd.f32 %v1144, %v1161
        %s1166 = sld [smem:[#allocation5 + $0x2d]]
        %v1167 = vstv %s1166
        %v1168 = vmul.f32 %v359, %v1167
        %v1169 = vmul.f32 %v360, %v1167
        %v1172 = vrot.slane %v1168, 7
        %v1173 = vrot.slane %v1169, 7
        %v1174 = vsel %vm652, %v1172, %v1173
        %1175 = vrot.lane.b32.xlu0 %v1172, 1
        %v1176 = vpop.permute.xlu0 %1175
        %1177 = vrot.lane.b32.xlu0 %v1174, 1
        %v1178 = vpop.permute.xlu0 %1177
        %v1181 = vadd.f32 %v1164, %v1176
        %v1182 = vadd.f32 %v1165, %v1178
        %s1183 = sld [smem:[#allocation5 + $0x2e]]
        %v1184 = vstv %s1183
        %v1185 = vmul.f32 %v359, %v1184
        %v1186 = vmul.f32 %v360, %v1184
        %v1189 = vrot.slane %v1185, 7
        %v1190 = vrot.slane %v1186, 7
        %v1191 = vsel %vm652, %v1189, %v1190
        %1192 = vrot.lane.b32.xlu0 %v1189, 127
        %v1193 = vpop.permute.xlu0 %1192
        %1194 = vrot.lane.b32.xlu0 %v1191, 127
        %v1195 = vpop.permute.xlu0 %1194
        %v1198 = vadd.f32 %v1181, %v1193
        %v1199 = vadd.f32 %v1182, %v1195
        %s1200 = sld [smem:[#allocation5 + $0x2f]]
        %v1201 = vstv %s1200
        %v1202 = vmul.f32 %v359, %v1201
        %v1203 = vmul.f32 %v360, %v1201
        %v1206 = vrot.slane %v1202, 7
        %v1207 = vrot.slane %v1203, 7
        %v1208 = vsel %vm652, %v1206, %v1207
        %1209 = vrot.lane.b32.xlu0 %v1206, 125
        %v1210 = vpop.permute.xlu0 %1209
        %1211 = vrot.lane.b32.xlu0 %v1208, 125
        %v1212 = vpop.permute.xlu0 %1211
        %v1215 = vadd.f32 %v1198, %v1210
        %v1216 = vadd.f32 %v1199, %v1212
        %s1217 = sld [smem:[#allocation5 + $0x33]]
        %v1218 = vstv %s1217
        %v1219 = vmul.f32 %v359, %v1218
        %v1220 = vmul.f32 %v360, %v1218
        %v1221 = vmul.f32 %v361, %v1218
        %v1225 = vrot.slane %v1219, 3
        %v1226 = vrot.slane %v1220, 3
        %v1227 = vsel %vm706, %v1225, %v1226
        %v1228 = vrot.slane %v1221, 3
        %v1229 = vsel %vm706, %v1226, %v1228
        %1230 = vrot.lane.b32.xlu0 %v1227, 1
        %v1231 = vpop.permute.xlu0 %1230
        %1232 = vrot.lane.b32.xlu0 %v1229, 1
        %v1233 = vpop.permute.xlu0 %1232
        %v1236 = vadd.f32 %v1215, %v1231
        %v1237 = vadd.f32 %v1216, %v1233
        %s1238 = sld [smem:[#allocation5 + $0x34]]
        %v1239 = vstv %s1238
        %v1240 = vmul.f32 %v359, %v1239
        %v1241 = vmul.f32 %v360, %v1239
        %v1242 = vmul.f32 %v361, %v1239
        %v1246 = vrot.slane %v1240, 3
        %v1247 = vrot.slane %v1241, 3
        %v1248 = vsel %vm706, %v1246, %v1247
        %v1249 = vrot.slane %v1242, 3
        %v1250 = vsel %vm706, %v1247, %v1249
        %1251 = vrot.lane.b32.xlu0 %v1248, 127
        %v1252 = vpop.permute.xlu0 %1251
        %1253 = vrot.lane.b32.xlu0 %v1250, 127
        %v1254 = vpop.permute.xlu0 %1253
        %v1257 = vadd.f32 %v1236, %v1252
        %v1258 = vadd.f32 %v1237, %v1254
        %s1259 = sld [smem:[#allocation5 + $0x35]]
        %v1260 = vstv %s1259
        %v1261 = vmul.f32 %v359, %v1260
        %v1262 = vmul.f32 %v360, %v1260
        %v1263 = vmul.f32 %v361, %v1260
        %v1267 = vrot.slane %v1261, 3
        %v1268 = vrot.slane %v1262, 3
        %v1269 = vsel %vm706, %v1267, %v1268
        %v1270 = vrot.slane %v1263, 3
        %v1271 = vsel %vm706, %v1268, %v1270
        %1272 = vrot.lane.b32.xlu0 %v1269, 125
        %v1273 = vpop.permute.xlu0 %1272
        %1274 = vrot.lane.b32.xlu0 %v1271, 125
        %v1275 = vpop.permute.xlu0 %1274
        %v1278 = vadd.f32 %v1257, %v1273
        %v1279 = vadd.f32 %v1258, %v1275
        %s1280 = sld [smem:[#allocation5 + $0x51]]
        %v1281 = vstv %s1280
        %v1282 = vmul.f32 %v359, %v1281
        %v1283 = vmul.f32 %v360, %v1281
        %v1286 = vrot.slane %v1282, 6
        %v1287 = vrot.slane %v1283, 6
        %v1288 = vsel %vm768, %v1286, %v1287
        %1289 = vrot.lane.b32.xlu0 %v1286, 2
        %v1290 = vpop.permute.xlu0 %1289
        %1291 = vrot.lane.b32.xlu0 %v1288, 2
        %v1292 = vpop.permute.xlu0 %1291
        %v1295 = vadd.f32 %v1278, %v1290
        %v1296 = vadd.f32 %v1279, %v1292
        %s1297 = sld [smem:[#allocation5 + $0x52]]
        %v1298 = vstv %s1297
        %v1299 = vmul.f32 %v359, %v1298
        %v1300 = vmul.f32 %v360, %v1298
        %v1303 = vrot.slane %v1299, 6
        %v1304 = vrot.slane %v1300, 6
        %v1305 = vsel %vm768, %v1303, %v1304
        %1306 = vrot.lane.b32.xlu0 %v1303, 127
        %v1307 = vpop.permute.xlu0 %1306
        %1308 = vrot.lane.b32.xlu0 %v1305, 127
        %v1309 = vpop.permute.xlu0 %1308
        %v1312 = vadd.f32 %v1295, %v1307
        %v1313 = vadd.f32 %v1296, %v1309
        %s1314 = sld [smem:[#allocation5 + $0x53]]
        %v1315 = vstv %s1314
        %v1316 = vmul.f32 %v359, %v1315
        %v1317 = vmul.f32 %v360, %v1315
        %v1320 = vrot.slane %v1316, 6
        %v1321 = vrot.slane %v1317, 6
        %v1322 = vsel %vm768, %v1320, %v1321
        %1323 = vrot.lane.b32.xlu0 %v1320, 124
        %v1324 = vpop.permute.xlu0 %1323
        %1325 = vrot.lane.b32.xlu0 %v1322, 124
        %v1326 = vpop.permute.xlu0 %1325
        %v1329 = vadd.f32 %v1312, %v1324
        %v1330 = vadd.f32 %v1313, %v1326
        %s1331 = sld [smem:[#allocation5 + $0x57]]
        %v1332 = vstv %s1331
        %v1333 = vmul.f32 %v359, %v1332
        %v1334 = vmul.f32 %v360, %v1332
        %v1335 = vmul.f32 %v361, %v1332
        %v1339 = vrot.slane %v1333, 4
        %v1340 = vrot.slane %v1334, 4
        %v1341 = vsel %vm822, %v1339, %v1340
        %v1342 = vrot.slane %v1335, 4
        %v1343 = vsel %vm822, %v1340, %v1342
        %1344 = vrot.lane.b32.xlu0 %v1341, 2
        %v1345 = vpop.permute.xlu0 %1344
        %1346 = vrot.lane.b32.xlu0 %v1343, 2
        %v1347 = vpop.permute.xlu0 %1346
        %v1350 = vadd.f32 %v1329, %v1345
        %v1351 = vadd.f32 %v1330, %v1347
        %s1352 = sld [smem:[#allocation5 + $0x58]]
        %v1353 = vstv %s1352
        %v1354 = vmul.f32 %v359, %v1353
        %v1355 = vmul.f32 %v360, %v1353
        %v1356 = vmul.f32 %v361, %v1353
        %v1360 = vrot.slane %v1354, 4
        %v1361 = vrot.slane %v1355, 4
        %v1362 = vsel %vm822, %v1360, %v1361
        %v1363 = vrot.slane %v1356, 4
        %v1364 = vsel %vm822, %v1361, %v1363
        %1365 = vrot.lane.b32.xlu0 %v1362, 127
        %v1366 = vpop.permute.xlu0 %1365
        %1367 = vrot.lane.b32.xlu0 %v1364, 127
        %v1368 = vpop.permute.xlu0 %1367
        %v1371 = vadd.f32 %v1350, %v1366
        %v1372 = vadd.f32 %v1351, %v1368
        %s1373 = sld [smem:[#allocation5 + $0x59]]
        %v1374 = vstv %s1373
        %v1375 = vmul.f32 %v359, %v1374
        %v1376 = vmul.f32 %v360, %v1374
        %v1377 = vmul.f32 %v361, %v1374
        %v1381 = vrot.slane %v1375, 4
        %v1382 = vrot.slane %v1376, 4
        %v1383 = vsel %vm822, %v1381, %v1382
        %v1384 = vrot.slane %v1377, 4
        %v1385 = vsel %vm822, %v1382, %v1384
        %1386 = vrot.lane.b32.xlu0 %v1383, 124
        %v1387 = vpop.permute.xlu0 %1386
        %1388 = vrot.lane.b32.xlu0 %v1385, 124
        %v1389 = vpop.permute.xlu0 %1388
        %v1392 = vadd.f32 %v1371, %v1387
        %v1393 = vadd.f32 %v1372, %v1389
        %1396 = vrot.lane.b32.xlu0 %v1392, 126
        %v1397 = vpop.permute.xlu0 %1396
        %1398 = vrot.lane.b32.xlu0 %v1393, 126
        %v1399 = vpop.permute.xlu0 %1398
        %s1402 = scalar_lea.vmem [#allocation3], 16
        %1403 = vst.msk [vmem:[%s1402 - $0x2] sm:$0xfc] %vm886, %v1397
        %1404 = vst.msk [vmem:[%s1402 + $0x6] sm:$0xff] %vm888, %v1399
        %s1405 = sld [smem:[#allocation5 + $0x12]]
        %v1406 = vstv %s1405
        %v1407 = vmul.f32 %v362, %v1406
        %v1408 = vmul.f32 %v363, %v1406
        %s1409 = sld [smem:[#allocation5 + $0x13]]
        %v1410 = vstv %s1409
        %v1411 = vmul.f32 %v362, %v1410
        %v1412 = vmul.f32 %v363, %v1410
        %1415 = vrot.lane.b32.xlu0 %v1411, 127
        %v1416 = vpop.permute.xlu0 %1415
        %1417 = vrot.lane.b32.xlu0 %v1412, 127
        %v1418 = vpop.permute.xlu0 %1417
        %v1421 = vadd.f32 %v1407, %v1416
        %v1422 = vadd.f32 %v1408, %v1418
        %s1423 = sld [smem:[#allocation5 + $0x14]]
        %v1424 = vstv %s1423
        %v1425 = vmul.f32 %v362, %v1424
        %v1426 = vmul.f32 %v363, %v1424
        %1429 = vrot.lane.b32.xlu0 %v1425, 126
        %v1430 = vpop.permute.xlu0 %1429
        %1431 = vrot.lane.b32.xlu0 %v1426, 126
        %v1432 = vpop.permute.xlu0 %1431
        %v1435 = vadd.f32 %v1421, %v1430
        %v1436 = vadd.f32 %v1422, %v1432
        %s1437 = sld [smem:[#allocation5 + $0x15]]
        %v1438 = vstv %s1437
        %v1439 = vmul.f32 %v362, %v1438
        %v1440 = vmul.f32 %v363, %v1438
        %v1441 = vmul.f32 %v364, %v1438
        %v1445 = vrot.slane %v1439, 1
        %v1446 = vrot.slane %v1440, 1
        %v1447 = vsel %vm408, %v1445, %v1446
        %v1448 = vrot.slane %v1441, 1
        %v1449 = vsel %vm408, %v1446, %v1448
        %v1452 = vadd.f32 %v1435, %v1447
        %v1453 = vadd.f32 %v1436, %v1449
        %s1454 = sld [smem:[#allocation5 + $0x16]]
        %v1455 = vstv %s1454
        %v1456 = vmul.f32 %v362, %v1455
        %v1457 = vmul.f32 %v363, %v1455
        %v1458 = vmul.f32 %v364, %v1455
        %v1462 = vrot.slane %v1456, 1
        %v1463 = vrot.slane %v1457, 1
        %v1464 = vsel %vm408, %v1462, %v1463
        %v1465 = vrot.slane %v1458, 1
        %v1466 = vsel %vm408, %v1463, %v1465
        %1467 = vrot.lane.b32.xlu0 %v1464, 127
        %v1468 = vpop.permute.xlu0 %1467
        %1469 = vrot.lane.b32.xlu0 %v1466, 127
        %v1470 = vpop.permute.xlu0 %1469
        %v1473 = vadd.f32 %v1452, %v1468
        %v1474 = vadd.f32 %v1453, %v1470
        %s1475 = sld [smem:[#allocation5 + $0x17]]
        %v1476 = vstv %s1475
        %v1477 = vmul.f32 %v362, %v1476
        %v1478 = vmul.f32 %v363, %v1476
        %v1479 = vmul.f32 %v364, %v1476
        %v1483 = vrot.slane %v1477, 1
        %v1484 = vrot.slane %v1478, 1
        %v1485 = vsel %vm408, %v1483, %v1484
        %v1486 = vrot.slane %v1479, 1
        %v1487 = vsel %vm408, %v1484, %v1486
        %1488 = vrot.lane.b32.xlu0 %v1485, 126
        %v1489 = vpop.permute.xlu0 %1488
        %1490 = vrot.lane.b32.xlu0 %v1487, 126
        %v1491 = vpop.permute.xlu0 %1490
        %v1494 = vadd.f32 %v1473, %v1489
        %v1495 = vadd.f32 %v1474, %v1491
        %s1496 = sld [smem:[#allocation5 + $0x39]]
        %v1497 = vstv %s1496
        %v1498 = vmul.f32 %v362, %v1497
        %v1499 = vmul.f32 %v363, %v1497
        %v1500 = vmul.f32 %v364, %v1497
        %v1504 = vrot.slane %v1498, 1
        %v1505 = vrot.slane %v1499, 1
        %v1506 = vsel %vm408, %v1504, %v1505
        %v1507 = vrot.slane %v1500, 1
        %v1508 = vsel %vm408, %v1505, %v1507
        %1509 = vrot.lane.b32.xlu0 %v1506, 1
        %v1510 = vpop.permute.xlu0 %1509
        %1511 = vrot.lane.b32.xlu0 %v1508, 1
        %v1512 = vpop.permute.xlu0 %1511
        %v1515 = vadd.f32 %v1494, %v1510
        %v1516 = vadd.f32 %v1495, %v1512
        %s1517 = sld [smem:[#allocation5 + $0x3a]]
        %v1518 = vstv %s1517
        %v1519 = vmul.f32 %v362, %v1518
        %v1520 = vmul.f32 %v363, %v1518
        %v1521 = vmul.f32 %v364, %v1518
        %v1525 = vrot.slane %v1519, 1
        %v1526 = vrot.slane %v1520, 1
        %v1527 = vsel %vm408, %v1525, %v1526
        %v1528 = vrot.slane %v1521, 1
        %v1529 = vsel %vm408, %v1526, %v1528
        %1530 = vrot.lane.b32.xlu0 %v1527, 127
        %v1531 = vpop.permute.xlu0 %1530
        %1532 = vrot.lane.b32.xlu0 %v1529, 127
        %v1533 = vpop.permute.xlu0 %1532
        %v1536 = vadd.f32 %v1515, %v1531
        %v1537 = vadd.f32 %v1516, %v1533
        %s1538 = sld [smem:[#allocation5 + $0x3b]]
        %v1539 = vstv %s1538
        %v1540 = vmul.f32 %v362, %v1539
        %v1541 = vmul.f32 %v363, %v1539
        %v1542 = vmul.f32 %v364, %v1539
        %v1546 = vrot.slane %v1540, 1
        %v1547 = vrot.slane %v1541, 1
        %v1548 = vsel %vm408, %v1546, %v1547
        %v1549 = vrot.slane %v1542, 1
        %v1550 = vsel %vm408, %v1547, %v1549
        %1551 = vrot.lane.b32.xlu0 %v1548, 125
        %v1552 = vpop.permute.xlu0 %1551
        %1553 = vrot.lane.b32.xlu0 %v1550, 125
        %v1554 = vpop.permute.xlu0 %1553
        %v1557 = vadd.f32 %v1536, %v1552
        %v1558 = vadd.f32 %v1537, %v1554
        %s1559 = sld [smem:[#allocation5 + $0x5d]]
        %v1560 = vstv %s1559
        %v1561 = vmul.f32 %v362, %v1560
        %v1562 = vmul.f32 %v363, %v1560
        %v1563 = vmul.f32 %v364, %v1560
        %v1567 = vrot.slane %v1561, 1
        %v1568 = vrot.slane %v1562, 1
        %v1569 = vsel %vm408, %v1567, %v1568
        %v1570 = vrot.slane %v1563, 1
        %v1571 = vsel %vm408, %v1568, %v1570
        %1572 = vrot.lane.b32.xlu0 %v1569, 2
        %v1573 = vpop.permute.xlu0 %1572
        %1574 = vrot.lane.b32.xlu0 %v1571, 2
        %v1575 = vpop.permute.xlu0 %1574
        %v1578 = vadd.f32 %v1557, %v1573
        %v1579 = vadd.f32 %v1558, %v1575
        %s1580 = sld [smem:[#allocation5 + $0x5e]]
        %v1581 = vstv %s1580
        %v1582 = vmul.f32 %v362, %v1581
        %v1583 = vmul.f32 %v363, %v1581
        %v1584 = vmul.f32 %v364, %v1581
        %v1588 = vrot.slane %v1582, 1
        %v1589 = vrot.slane %v1583, 1
        %v1590 = vsel %vm408, %v1588, %v1589
        %v1591 = vrot.slane %v1584, 1
        %v1592 = vsel %vm408, %v1589, %v1591
        %1593 = vrot.lane.b32.xlu0 %v1590, 127
        %v1594 = vpop.permute.xlu0 %1593
        %1595 = vrot.lane.b32.xlu0 %v1592, 127
        %v1596 = vpop.permute.xlu0 %1595
        %v1599 = vadd.f32 %v1578, %v1594
        %v1600 = vadd.f32 %v1579, %v1596
        %s1601 = sld [smem:[#allocation5 + $0x5f]]
        %v1602 = vstv %s1601
        %v1603 = vmul.f32 %v362, %v1602
        %v1604 = vmul.f32 %v363, %v1602
        %v1605 = vmul.f32 %v364, %v1602
        %v1609 = vrot.slane %v1603, 1
        %v1610 = vrot.slane %v1604, 1
        %v1611 = vsel %vm408, %v1609, %v1610
        %v1612 = vrot.slane %v1605, 1
        %v1613 = vsel %vm408, %v1610, %v1612
        %1614 = vrot.lane.b32.xlu0 %v1611, 124
        %v1615 = vpop.permute.xlu0 %1614
        %1616 = vrot.lane.b32.xlu0 %v1613, 124
        %v1617 = vpop.permute.xlu0 %1616
        %v1620 = vadd.f32 %v1599, %v1615
        %v1621 = vadd.f32 %v1600, %v1617
        %s1622 = sld [smem:[#allocation5 + $0x18]]
        %v1623 = vstv %s1622
        %v1624 = vmul.f32 %v362, %v1623
        %v1625 = vmul.f32 %v363, %v1623
        %v1626 = vmul.f32 %v364, %v1623
        %v1630 = vrot.slane %v1624, 2
        %v1631 = vrot.slane %v1625, 2
        %v1632 = vsel %vm594, %v1630, %v1631
        %v1633 = vrot.slane %v1626, 2
        %v1634 = vsel %vm594, %v1631, %v1633
        %v1637 = vadd.f32 %v1620, %v1632
        %v1638 = vadd.f32 %v1621, %v1634
        %s1639 = sld [smem:[#allocation5 + $0x19]]
        %v1640 = vstv %s1639
        %v1641 = vmul.f32 %v362, %v1640
        %v1642 = vmul.f32 %v363, %v1640
        %v1643 = vmul.f32 %v364, %v1640
        %v1647 = vrot.slane %v1641, 2
        %v1648 = vrot.slane %v1642, 2
        %v1649 = vsel %vm594, %v1647, %v1648
        %v1650 = vrot.slane %v1643, 2
        %v1651 = vsel %vm594, %v1648, %v1650
        %1652 = vrot.lane.b32.xlu0 %v1649, 127
        %v1653 = vpop.permute.xlu0 %1652
        %1654 = vrot.lane.b32.xlu0 %v1651, 127
        %v1655 = vpop.permute.xlu0 %1654
        %v1658 = vadd.f32 %v1637, %v1653
        %v1659 = vadd.f32 %v1638, %v1655
        %s1660 = sld [smem:[#allocation5 + $0x1a]]
        %v1661 = vstv %s1660
        %v1662 = vmul.f32 %v362, %v1661
        %v1663 = vmul.f32 %v363, %v1661
        %v1664 = vmul.f32 %v364, %v1661
        %v1668 = vrot.slane %v1662, 2
        %v1669 = vrot.slane %v1663, 2
        %v1670 = vsel %vm594, %v1668, %v1669
        %v1671 = vrot.slane %v1664, 2
        %v1672 = vsel %vm594, %v1669, %v1671
        %1673 = vrot.lane.b32.xlu0 %v1670, 126
        %v1674 = vpop.permute.xlu0 %1673
        %1675 = vrot.lane.b32.xlu0 %v1672, 126
        %v1676 = vpop.permute.xlu0 %1675
        %v1679 = vadd.f32 %v1658, %v1674
        %v1680 = vadd.f32 %v1659, %v1676
        %s1681 = sld [smem:[#allocation5 + $0x36]]
        %v1682 = vstv %s1681
        %v1683 = vmul.f32 %v362, %v1682
        %v1684 = vmul.f32 %v363, %v1682
        %v1687 = vrot.slane %v1683, 7
        %v1688 = vrot.slane %v1684, 7
        %v1689 = vsel %vm652, %v1687, %v1688
        %1690 = vrot.lane.b32.xlu0 %v1687, 1
        %v1691 = vpop.permute.xlu0 %1690
        %1692 = vrot.lane.b32.xlu0 %v1689, 1
        %v1693 = vpop.permute.xlu0 %1692
        %v1696 = vadd.f32 %v1679, %v1691
        %v1697 = vadd.f32 %v1680, %v1693
        %s1698 = sld [smem:[#allocation5 + $0x37]]
        %v1699 = vstv %s1698
        %v1700 = vmul.f32 %v362, %v1699
        %v1701 = vmul.f32 %v363, %v1699
        %v1704 = vrot.slane %v1700, 7
        %v1705 = vrot.slane %v1701, 7
        %v1706 = vsel %vm652, %v1704, %v1705
        %1707 = vrot.lane.b32.xlu0 %v1704, 127
        %v1708 = vpop.permute.xlu0 %1707
        %1709 = vrot.lane.b32.xlu0 %v1706, 127
        %v1710 = vpop.permute.xlu0 %1709
        %v1713 = vadd.f32 %v1696, %v1708
        %v1714 = vadd.f32 %v1697, %v1710
        %s1715 = sld [smem:[#allocation5 + $0x38]]
        %v1716 = vstv %s1715
        %v1717 = vmul.f32 %v362, %v1716
        %v1718 = vmul.f32 %v363, %v1716
        %v1721 = vrot.slane %v1717, 7
        %v1722 = vrot.slane %v1718, 7
        %v1723 = vsel %vm652, %v1721, %v1722
        %1724 = vrot.lane.b32.xlu0 %v1721, 125
        %v1725 = vpop.permute.xlu0 %1724
        %1726 = vrot.lane.b32.xlu0 %v1723, 125
        %v1727 = vpop.permute.xlu0 %1726
        %v1730 = vadd.f32 %v1713, %v1725
        %v1731 = vadd.f32 %v1714, %v1727
        %s1732 = sld [smem:[#allocation5 + $0x3c]]
        %v1733 = vstv %s1732
        %v1734 = vmul.f32 %v362, %v1733
        %v1735 = vmul.f32 %v363, %v1733
        %v1736 = vmul.f32 %v364, %v1733
        %v1740 = vrot.slane %v1734, 3
        %v1741 = vrot.slane %v1735, 3
        %v1742 = vsel %vm706, %v1740, %v1741
        %v1743 = vrot.slane %v1736, 3
        %v1744 = vsel %vm706, %v1741, %v1743
        %1745 = vrot.lane.b32.xlu0 %v1742, 1
        %v1746 = vpop.permute.xlu0 %1745
        %1747 = vrot.lane.b32.xlu0 %v1744, 1
        %v1748 = vpop.permute.xlu0 %1747
        %v1751 = vadd.f32 %v1730, %v1746
        %v1752 = vadd.f32 %v1731, %v1748
        %s1753 = sld [smem:[#allocation5 + $0x3d]]
        %v1754 = vstv %s1753
        %v1755 = vmul.f32 %v362, %v1754
        %v1756 = vmul.f32 %v363, %v1754
        %v1757 = vmul.f32 %v364, %v1754
        %v1761 = vrot.slane %v1755, 3
        %v1762 = vrot.slane %v1756, 3
        %v1763 = vsel %vm706, %v1761, %v1762
        %v1764 = vrot.slane %v1757, 3
        %v1765 = vsel %vm706, %v1762, %v1764
        %1766 = vrot.lane.b32.xlu0 %v1763, 127
        %v1767 = vpop.permute.xlu0 %1766
        %1768 = vrot.lane.b32.xlu0 %v1765, 127
        %v1769 = vpop.permute.xlu0 %1768
        %v1772 = vadd.f32 %v1751, %v1767
        %v1773 = vadd.f32 %v1752, %v1769
        %s1774 = sld [smem:[#allocation5 + $0x3e]]
        %v1775 = vstv %s1774
        %v1776 = vmul.f32 %v362, %v1775
        %v1777 = vmul.f32 %v363, %v1775
        %v1778 = vmul.f32 %v364, %v1775
        %v1782 = vrot.slane %v1776, 3
        %v1783 = vrot.slane %v1777, 3
        %v1784 = vsel %vm706, %v1782, %v1783
        %v1785 = vrot.slane %v1778, 3
        %v1786 = vsel %vm706, %v1783, %v1785
        %1787 = vrot.lane.b32.xlu0 %v1784, 125
        %v1788 = vpop.permute.xlu0 %1787
        %1789 = vrot.lane.b32.xlu0 %v1786, 125
        %v1790 = vpop.permute.xlu0 %1789
        %v1793 = vadd.f32 %v1772, %v1788
        %v1794 = vadd.f32 %v1773, %v1790
        %s1795 = sld [smem:[#allocation5 + $0x5a]]
        %v1796 = vstv %s1795
        %v1797 = vmul.f32 %v362, %v1796
        %v1798 = vmul.f32 %v363, %v1796
        %v1801 = vrot.slane %v1797, 6
        %v1802 = vrot.slane %v1798, 6
        %v1803 = vsel %vm768, %v1801, %v1802
        %1804 = vrot.lane.b32.xlu0 %v1801, 2
        %v1805 = vpop.permute.xlu0 %1804
        %1806 = vrot.lane.b32.xlu0 %v1803, 2
        %v1807 = vpop.permute.xlu0 %1806
        %v1810 = vadd.f32 %v1793, %v1805
        %v1811 = vadd.f32 %v1794, %v1807
        %s1812 = sld [smem:[#allocation5 + $0x5b]]
        %v1813 = vstv %s1812
        %v1814 = vmul.f32 %v362, %v1813
        %v1815 = vmul.f32 %v363, %v1813
        %v1818 = vrot.slane %v1814, 6
        %v1819 = vrot.slane %v1815, 6
        %v1820 = vsel %vm768, %v1818, %v1819
        %1821 = vrot.lane.b32.xlu0 %v1818, 127
        %v1822 = vpop.permute.xlu0 %1821
        %1823 = vrot.lane.b32.xlu0 %v1820, 127
        %v1824 = vpop.permute.xlu0 %1823
        %v1827 = vadd.f32 %v1810, %v1822
        %v1828 = vadd.f32 %v1811, %v1824
        %s1829 = sld [smem:[#allocation5 + $0x5c]]
        %v1830 = vstv %s1829
        %v1831 = vmul.f32 %v362, %v1830
        %v1832 = vmul.f32 %v363, %v1830
        %v1835 = vrot.slane %v1831, 6
        %v1836 = vrot.slane %v1832, 6
        %v1837 = vsel %vm768, %v1835, %v1836
        %1838 = vrot.lane.b32.xlu0 %v1835, 124
        %v1839 = vpop.permute.xlu0 %1838
        %1840 = vrot.lane.b32.xlu0 %v1837, 124
        %v1841 = vpop.permute.xlu0 %1840
        %v1844 = vadd.f32 %v1827, %v1839
        %v1845 = vadd.f32 %v1828, %v1841
        %s1846 = sld [smem:[#allocation5 + $0x60]]
        %v1847 = vstv %s1846
        %v1848 = vmul.f32 %v362, %v1847
        %v1849 = vmul.f32 %v363, %v1847
        %v1850 = vmul.f32 %v364, %v1847
        %v1854 = vrot.slane %v1848, 4
        %v1855 = vrot.slane %v1849, 4
        %v1856 = vsel %vm822, %v1854, %v1855
        %v1857 = vrot.slane %v1850, 4
        %v1858 = vsel %vm822, %v1855, %v1857
        %1859 = vrot.lane.b32.xlu0 %v1856, 2
        %v1860 = vpop.permute.xlu0 %1859
        %1861 = vrot.lane.b32.xlu0 %v1858, 2
        %v1862 = vpop.permute.xlu0 %1861
        %v1865 = vadd.f32 %v1844, %v1860
        %v1866 = vadd.f32 %v1845, %v1862
        %s1867 = sld [smem:[#allocation5 + $0x61]]
        %v1868 = vstv %s1867
        %v1869 = vmul.f32 %v362, %v1868
        %v1870 = vmul.f32 %v363, %v1868
        %v1871 = vmul.f32 %v364, %v1868
        %v1875 = vrot.slane %v1869, 4
        %v1876 = vrot.slane %v1870, 4
        %v1877 = vsel %vm822, %v1875, %v1876
        %v1878 = vrot.slane %v1871, 4
        %v1879 = vsel %vm822, %v1876, %v1878
        %1880 = vrot.lane.b32.xlu0 %v1877, 127
        %v1881 = vpop.permute.xlu0 %1880
        %1882 = vrot.lane.b32.xlu0 %v1879, 127
        %v1883 = vpop.permute.xlu0 %1882
        %v1886 = vadd.f32 %v1865, %v1881
        %v1887 = vadd.f32 %v1866, %v1883
        %s1888 = sld [smem:[#allocation5 + $0x62]]
        %v1889 = vstv %s1888
        %v1890 = vmul.f32 %v362, %v1889
        %v1891 = vmul.f32 %v363, %v1889
        %v1892 = vmul.f32 %v364, %v1889
        %v1896 = vrot.slane %v1890, 4
        %v1897 = vrot.slane %v1891, 4
        %v1898 = vsel %vm822, %v1896, %v1897
        %v1899 = vrot.slane %v1892, 4
        %v1900 = vsel %vm822, %v1897, %v1899
        %1901 = vrot.lane.b32.xlu0 %v1898, 124
        %v1902 = vpop.permute.xlu0 %1901
        %1903 = vrot.lane.b32.xlu0 %v1900, 124
        %v1904 = vpop.permute.xlu0 %1903
        %v1907 = vadd.f32 %v1886, %v1902
        %v1908 = vadd.f32 %v1887, %v1904
        %1911 = vrot.lane.b32.xlu0 %v1907, 126
        %v1912 = vpop.permute.xlu0 %1911
        %1913 = vrot.lane.b32.xlu0 %v1908, 126
        %v1914 = vpop.permute.xlu0 %1913
        %s1917 = scalar_lea.vmem [#allocation3], 32
        %1918 = vst.msk [vmem:[%s1917 - $0x2] sm:$0xfc] %vm886, %v1912
        %1919 = vst.msk [vmem:[%s1917 + $0x6] sm:$0xff] %vm888, %v1914
        %s1920 = sld [smem:[#allocation5 + $0x1b]]
        %v1921 = vstv %s1920
        %v1922 = vmul.f32 %v365, %v1921
        %v1923 = vmul.f32 %v366, %v1921
        %s1924 = sld [smem:[#allocation5 + $0x1c]]
        %v1925 = vstv %s1924
        %v1926 = vmul.f32 %v365, %v1925
        %v1927 = vmul.f32 %v366, %v1925
        %1930 = vrot.lane.b32.xlu0 %v1926, 127
        %v1931 = vpop.permute.xlu0 %1930
        %1932 = vrot.lane.b32.xlu0 %v1927, 127
        %v1933 = vpop.permute.xlu0 %1932
        %v1936 = vadd.f32 %v1922, %v1931
        %v1937 = vadd.f32 %v1923, %v1933
        %s1938 = sld [smem:[#allocation5 + $0x1d]]
        %v1939 = vstv %s1938
        %v1940 = vmul.f32 %v365, %v1939
        %v1941 = vmul.f32 %v366, %v1939
        %1944 = vrot.lane.b32.xlu0 %v1940, 126
        %v1945 = vpop.permute.xlu0 %1944
        %1946 = vrot.lane.b32.xlu0 %v1941, 126
        %v1947 = vpop.permute.xlu0 %1946
        %v1950 = vadd.f32 %v1936, %v1945
        %v1951 = vadd.f32 %v1937, %v1947
        %s1952 = sld [smem:[#allocation5 + $0x1e]]
        %v1953 = vstv %s1952
        %v1954 = vmul.f32 %v365, %v1953
        %v1955 = vmul.f32 %v366, %v1953
        %v1956 = vmul.f32 %v367, %v1953
        %v1960 = vrot.slane %v1954, 1
        %v1961 = vrot.slane %v1955, 1
        %v1962 = vsel %vm408, %v1960, %v1961
        %v1963 = vrot.slane %v1956, 1
        %v1964 = vsel %vm408, %v1961, %v1963
        %v1967 = vadd.f32 %v1950, %v1962
        %v1968 = vadd.f32 %v1951, %v1964
        %s1969 = sld [smem:[#allocation5 + $0x1f]]
        %v1970 = vstv %s1969
        %v1971 = vmul.f32 %v365, %v1970
        %v1972 = vmul.f32 %v366, %v1970
        %v1973 = vmul.f32 %v367, %v1970
        %v1977 = vrot.slane %v1971, 1
        %v1978 = vrot.slane %v1972, 1
        %v1979 = vsel %vm408, %v1977, %v1978
        %v1980 = vrot.slane %v1973, 1
        %v1981 = vsel %vm408, %v1978, %v1980
        %1982 = vrot.lane.b32.xlu0 %v1979, 127
        %v1983 = vpop.permute.xlu0 %1982
        %1984 = vrot.lane.b32.xlu0 %v1981, 127
        %v1985 = vpop.permute.xlu0 %1984
        %v1988 = vadd.f32 %v1967, %v1983
        %v1989 = vadd.f32 %v1968, %v1985
        %s1990 = sld [smem:[#allocation5 + $0x20]]
        %v1991 = vstv %s1990
        %v1992 = vmul.f32 %v365, %v1991
        %v1993 = vmul.f32 %v366, %v1991
        %v1994 = vmul.f32 %v367, %v1991
        %v1998 = vrot.slane %v1992, 1
        %v1999 = vrot.slane %v1993, 1
        %v2000 = vsel %vm408, %v1998, %v1999
        %v2001 = vrot.slane %v1994, 1
        %v2002 = vsel %vm408, %v1999, %v2001
        %2003 = vrot.lane.b32.xlu0 %v2000, 126
        %v2004 = vpop.permute.xlu0 %2003
        %2005 = vrot.lane.b32.xlu0 %v2002, 126
        %v2006 = vpop.permute.xlu0 %2005
        %v2009 = vadd.f32 %v1988, %v2004
        %v2010 = vadd.f32 %v1989, %v2006
        %s2011 = sld [smem:[#allocation5 + $0x42]]
        %v2012 = vstv %s2011
        %v2013 = vmul.f32 %v365, %v2012
        %v2014 = vmul.f32 %v366, %v2012
        %v2015 = vmul.f32 %v367, %v2012
        %v2019 = vrot.slane %v2013, 1
        %v2020 = vrot.slane %v2014, 1
        %v2021 = vsel %vm408, %v2019, %v2020
        %v2022 = vrot.slane %v2015, 1
        %v2023 = vsel %vm408, %v2020, %v2022
        %2024 = vrot.lane.b32.xlu0 %v2021, 1
        %v2025 = vpop.permute.xlu0 %2024
        %2026 = vrot.lane.b32.xlu0 %v2023, 1
        %v2027 = vpop.permute.xlu0 %2026
        %v2030 = vadd.f32 %v2009, %v2025
        %v2031 = vadd.f32 %v2010, %v2027
        %s2032 = sld [smem:[#allocation5 + $0x43]]
        %v2033 = vstv %s2032
        %v2034 = vmul.f32 %v365, %v2033
        %v2035 = vmul.f32 %v366, %v2033
        %v2036 = vmul.f32 %v367, %v2033
        %v2040 = vrot.slane %v2034, 1
        %v2041 = vrot.slane %v2035, 1
        %v2042 = vsel %vm408, %v2040, %v2041
        %v2043 = vrot.slane %v2036, 1
        %v2044 = vsel %vm408, %v2041, %v2043
        %2045 = vrot.lane.b32.xlu0 %v2042, 127
        %v2046 = vpop.permute.xlu0 %2045
        %2047 = vrot.lane.b32.xlu0 %v2044, 127
        %v2048 = vpop.permute.xlu0 %2047
        %v2051 = vadd.f32 %v2030, %v2046
        %v2052 = vadd.f32 %v2031, %v2048
        %s2053 = sld [smem:[#allocation5 + $0x44]]
        %v2054 = vstv %s2053
        %v2055 = vmul.f32 %v365, %v2054
        %v2056 = vmul.f32 %v366, %v2054
        %v2057 = vmul.f32 %v367, %v2054
        %v2061 = vrot.slane %v2055, 1
        %v2062 = vrot.slane %v2056, 1
        %v2063 = vsel %vm408, %v2061, %v2062
        %v2064 = vrot.slane %v2057, 1
        %v2065 = vsel %vm408, %v2062, %v2064
        %2066 = vrot.lane.b32.xlu0 %v2063, 125
        %v2067 = vpop.permute.xlu0 %2066
        %2068 = vrot.lane.b32.xlu0 %v2065, 125
        %v2069 = vpop.permute.xlu0 %2068
        %v2072 = vadd.f32 %v2051, %v2067
        %v2073 = vadd.f32 %v2052, %v2069
        %s2074 = sld [smem:[#allocation5 + $0x66]]
        %v2075 = vstv %s2074
        %v2076 = vmul.f32 %v365, %v2075
        %v2077 = vmul.f32 %v366, %v2075
        %v2078 = vmul.f32 %v367, %v2075
        %v2082 = vrot.slane %v2076, 1
        %v2083 = vrot.slane %v2077, 1
        %v2084 = vsel %vm408, %v2082, %v2083
        %v2085 = vrot.slane %v2078, 1
        %v2086 = vsel %vm408, %v2083, %v2085
        %2087 = vrot.lane.b32.xlu0 %v2084, 2
        %v2088 = vpop.permute.xlu0 %2087
        %2089 = vrot.lane.b32.xlu0 %v2086, 2
        %v2090 = vpop.permute.xlu0 %2089
        %v2093 = vadd.f32 %v2072, %v2088
        %v2094 = vadd.f32 %v2073, %v2090
        %s2095 = sld [smem:[#allocation5 + $0x67]]
        %v2096 = vstv %s2095
        %v2097 = vmul.f32 %v365, %v2096
        %v2098 = vmul.f32 %v366, %v2096
        %v2099 = vmul.f32 %v367, %v2096
        %v2103 = vrot.slane %v2097, 1
        %v2104 = vrot.slane %v2098, 1
        %v2105 = vsel %vm408, %v2103, %v2104
        %v2106 = vrot.slane %v2099, 1
        %v2107 = vsel %vm408, %v2104, %v2106
        %2108 = vrot.lane.b32.xlu0 %v2105, 127
        %v2109 = vpop.permute.xlu0 %2108
        %2110 = vrot.lane.b32.xlu0 %v2107, 127
        %v2111 = vpop.permute.xlu0 %2110
        %v2114 = vadd.f32 %v2093, %v2109
        %v2115 = vadd.f32 %v2094, %v2111
        %s2116 = sld [smem:[#allocation5 + $0x68]]
        %v2117 = vstv %s2116
        %v2118 = vmul.f32 %v365, %v2117
        %v2119 = vmul.f32 %v366, %v2117
        %v2120 = vmul.f32 %v367, %v2117
        %v2124 = vrot.slane %v2118, 1
        %v2125 = vrot.slane %v2119, 1
        %v2126 = vsel %vm408, %v2124, %v2125
        %v2127 = vrot.slane %v2120, 1
        %v2128 = vsel %vm408, %v2125, %v2127
        %2129 = vrot.lane.b32.xlu0 %v2126, 124
        %v2130 = vpop.permute.xlu0 %2129
        %2131 = vrot.lane.b32.xlu0 %v2128, 124
        %v2132 = vpop.permute.xlu0 %2131
        %v2135 = vadd.f32 %v2114, %v2130
        %v2136 = vadd.f32 %v2115, %v2132
        %s2137 = sld [smem:[#allocation5 + $0x21]]
        %v2138 = vstv %s2137
        %v2139 = vmul.f32 %v365, %v2138
        %v2140 = vmul.f32 %v366, %v2138
        %v2141 = vmul.f32 %v367, %v2138
        %v2145 = vrot.slane %v2139, 2
        %v2146 = vrot.slane %v2140, 2
        %v2147 = vsel %vm594, %v2145, %v2146
        %v2148 = vrot.slane %v2141, 2
        %v2149 = vsel %vm594, %v2146, %v2148
        %v2152 = vadd.f32 %v2135, %v2147
        %v2153 = vadd.f32 %v2136, %v2149
        %s2154 = sld [smem:[#allocation5 + $0x22]]
        %v2155 = vstv %s2154
        %v2156 = vmul.f32 %v365, %v2155
        %v2157 = vmul.f32 %v366, %v2155
        %v2158 = vmul.f32 %v367, %v2155
        %v2162 = vrot.slane %v2156, 2
        %v2163 = vrot.slane %v2157, 2
        %v2164 = vsel %vm594, %v2162, %v2163
        %v2165 = vrot.slane %v2158, 2
        %v2166 = vsel %vm594, %v2163, %v2165
        %2167 = vrot.lane.b32.xlu0 %v2164, 127
        %v2168 = vpop.permute.xlu0 %2167
        %2169 = vrot.lane.b32.xlu0 %v2166, 127
        %v2170 = vpop.permute.xlu0 %2169
        %v2173 = vadd.f32 %v2152, %v2168
        %v2174 = vadd.f32 %v2153, %v2170
        %s2175 = sld [smem:[#allocation5 + $0x23]]
        %v2176 = vstv %s2175
        %v2177 = vmul.f32 %v365, %v2176
        %v2178 = vmul.f32 %v366, %v2176
        %v2179 = vmul.f32 %v367, %v2176
        %v2183 = vrot.slane %v2177, 2
        %v2184 = vrot.slane %v2178, 2
        %v2185 = vsel %vm594, %v2183, %v2184
        %v2186 = vrot.slane %v2179, 2
        %v2187 = vsel %vm594, %v2184, %v2186
        %2188 = vrot.lane.b32.xlu0 %v2185, 126
        %v2189 = vpop.permute.xlu0 %2188
        %2190 = vrot.lane.b32.xlu0 %v2187, 126
        %v2191 = vpop.permute.xlu0 %2190
        %v2194 = vadd.f32 %v2173, %v2189
        %v2195 = vadd.f32 %v2174, %v2191
        %s2196 = sld [smem:[#allocation5 + $0x3f]]
        %v2197 = vstv %s2196
        %v2198 = vmul.f32 %v365, %v2197
        %v2199 = vmul.f32 %v366, %v2197
        %v2202 = vrot.slane %v2198, 7
        %v2203 = vrot.slane %v2199, 7
        %v2204 = vsel %vm652, %v2202, %v2203
        %2205 = vrot.lane.b32.xlu0 %v2202, 1
        %v2206 = vpop.permute.xlu0 %2205
        %2207 = vrot.lane.b32.xlu0 %v2204, 1
        %v2208 = vpop.permute.xlu0 %2207
        %v2211 = vadd.f32 %v2194, %v2206
        %v2212 = vadd.f32 %v2195, %v2208
        %s2213 = sld [smem:[#allocation5 + $0x40]]
        %v2214 = vstv %s2213
        %v2215 = vmul.f32 %v365, %v2214
        %v2216 = vmul.f32 %v366, %v2214
        %v2219 = vrot.slane %v2215, 7
        %v2220 = vrot.slane %v2216, 7
        %v2221 = vsel %vm652, %v2219, %v2220
        %2222 = vrot.lane.b32.xlu0 %v2219, 127
        %v2223 = vpop.permute.xlu0 %2222
        %2224 = vrot.lane.b32.xlu0 %v2221, 127
        %v2225 = vpop.permute.xlu0 %2224
        %v2228 = vadd.f32 %v2211, %v2223
        %v2229 = vadd.f32 %v2212, %v2225
        %s2230 = sld [smem:[#allocation5 + $0x41]]
        %v2231 = vstv %s2230
        %v2232 = vmul.f32 %v365, %v2231
        %v2233 = vmul.f32 %v366, %v2231
        %v2236 = vrot.slane %v2232, 7
        %v2237 = vrot.slane %v2233, 7
        %v2238 = vsel %vm652, %v2236, %v2237
        %2239 = vrot.lane.b32.xlu0 %v2236, 125
        %v2240 = vpop.permute.xlu0 %2239
        %2241 = vrot.lane.b32.xlu0 %v2238, 125
        %v2242 = vpop.permute.xlu0 %2241
        %v2245 = vadd.f32 %v2228, %v2240
        %v2246 = vadd.f32 %v2229, %v2242
        %s2247 = sld [smem:[#allocation5 + $0x45]]
        %v2248 = vstv %s2247
        %v2249 = vmul.f32 %v365, %v2248
        %v2250 = vmul.f32 %v366, %v2248
        %v2251 = vmul.f32 %v367, %v2248
        %v2255 = vrot.slane %v2249, 3
        %v2256 = vrot.slane %v2250, 3
        %v2257 = vsel %vm706, %v2255, %v2256
        %v2258 = vrot.slane %v2251, 3
        %v2259 = vsel %vm706, %v2256, %v2258
        %2260 = vrot.lane.b32.xlu0 %v2257, 1
        %v2261 = vpop.permute.xlu0 %2260
        %2262 = vrot.lane.b32.xlu0 %v2259, 1
        %v2263 = vpop.permute.xlu0 %2262
        %v2266 = vadd.f32 %v2245, %v2261
        %v2267 = vadd.f32 %v2246, %v2263
        %s2268 = sld [smem:[#allocation5 + $0x46]]
        %v2269 = vstv %s2268
        %v2270 = vmul.f32 %v365, %v2269
        %v2271 = vmul.f32 %v366, %v2269
        %v2272 = vmul.f32 %v367, %v2269
        %v2276 = vrot.slane %v2270, 3
        %v2277 = vrot.slane %v2271, 3
        %v2278 = vsel %vm706, %v2276, %v2277
        %v2279 = vrot.slane %v2272, 3
        %v2280 = vsel %vm706, %v2277, %v2279
        %2281 = vrot.lane.b32.xlu0 %v2278, 127
        %v2282 = vpop.permute.xlu0 %2281
        %2283 = vrot.lane.b32.xlu0 %v2280, 127
        %v2284 = vpop.permute.xlu0 %2283
        %v2287 = vadd.f32 %v2266, %v2282
        %v2288 = vadd.f32 %v2267, %v2284
        %s2289 = sld [smem:[#allocation5 + $0x47]]
        %v2290 = vstv %s2289
        %v2291 = vmul.f32 %v365, %v2290
        %v2292 = vmul.f32 %v366, %v2290
        %v2293 = vmul.f32 %v367, %v2290
        %v2297 = vrot.slane %v2291, 3
        %v2298 = vrot.slane %v2292, 3
        %v2299 = vsel %vm706, %v2297, %v2298
        %v2300 = vrot.slane %v2293, 3
        %v2301 = vsel %vm706, %v2298, %v2300
        %2302 = vrot.lane.b32.xlu0 %v2299, 125
        %v2303 = vpop.permute.xlu0 %2302
        %2304 = vrot.lane.b32.xlu0 %v2301, 125
        %v2305 = vpop.permute.xlu0 %2304
        %v2308 = vadd.f32 %v2287, %v2303
        %v2309 = vadd.f32 %v2288, %v2305
        %s2310 = sld [smem:[#allocation5 + $0x63]]
        %v2311 = vstv %s2310
        %v2312 = vmul.f32 %v365, %v2311
        %v2313 = vmul.f32 %v366, %v2311
        %v2316 = vrot.slane %v2312, 6
        %v2317 = vrot.slane %v2313, 6
        %v2318 = vsel %vm768, %v2316, %v2317
        %2319 = vrot.lane.b32.xlu0 %v2316, 2
        %v2320 = vpop.permute.xlu0 %2319
        %2321 = vrot.lane.b32.xlu0 %v2318, 2
        %v2322 = vpop.permute.xlu0 %2321
        %v2325 = vadd.f32 %v2308, %v2320
        %v2326 = vadd.f32 %v2309, %v2322
        %s2327 = sld [smem:[#allocation5 + $0x64]]
        %v2328 = vstv %s2327
        %v2329 = vmul.f32 %v365, %v2328
        %v2330 = vmul.f32 %v366, %v2328
        %v2333 = vrot.slane %v2329, 6
        %v2334 = vrot.slane %v2330, 6
        %v2335 = vsel %vm768, %v2333, %v2334
        %2336 = vrot.lane.b32.xlu0 %v2333, 127
        %v2337 = vpop.permute.xlu0 %2336
        %2338 = vrot.lane.b32.xlu0 %v2335, 127
        %v2339 = vpop.permute.xlu0 %2338
        %v2342 = vadd.f32 %v2325, %v2337
        %v2343 = vadd.f32 %v2326, %v2339
        %s2344 = sld [smem:[#allocation5 + $0x65]]
        %v2345 = vstv %s2344
        %v2346 = vmul.f32 %v365, %v2345
        %v2347 = vmul.f32 %v366, %v2345
        %v2350 = vrot.slane %v2346, 6
        %v2351 = vrot.slane %v2347, 6
        %v2352 = vsel %vm768, %v2350, %v2351
        %2353 = vrot.lane.b32.xlu0 %v2350, 124
        %v2354 = vpop.permute.xlu0 %2353
        %2355 = vrot.lane.b32.xlu0 %v2352, 124
        %v2356 = vpop.permute.xlu0 %2355
        %v2359 = vadd.f32 %v2342, %v2354
        %v2360 = vadd.f32 %v2343, %v2356
        %s2361 = sld [smem:[#allocation5 + $0x69]]
        %v2362 = vstv %s2361
        %v2363 = vmul.f32 %v365, %v2362
        %v2364 = vmul.f32 %v366, %v2362
        %v2365 = vmul.f32 %v367, %v2362
        %v2369 = vrot.slane %v2363, 4
        %v2370 = vrot.slane %v2364, 4
        %v2371 = vsel %vm822, %v2369, %v2370
        %v2372 = vrot.slane %v2365, 4
        %v2373 = vsel %vm822, %v2370, %v2372
        %2374 = vrot.lane.b32.xlu0 %v2371, 2
        %v2375 = vpop.permute.xlu0 %2374
        %2376 = vrot.lane.b32.xlu0 %v2373, 2
        %v2377 = vpop.permute.xlu0 %2376
        %v2380 = vadd.f32 %v2359, %v2375
        %v2381 = vadd.f32 %v2360, %v2377
        %s2382 = sld [smem:[#allocation5 + $0x6a]]
        %v2383 = vstv %s2382
        %v2384 = vmul.f32 %v365, %v2383
        %v2385 = vmul.f32 %v366, %v2383
        %v2386 = vmul.f32 %v367, %v2383
        %v2390 = vrot.slane %v2384, 4
        %v2391 = vrot.slane %v2385, 4
        %v2392 = vsel %vm822, %v2390, %v2391
        %v2393 = vrot.slane %v2386, 4
        %v2394 = vsel %vm822, %v2391, %v2393
        %2395 = vrot.lane.b32.xlu0 %v2392, 127
        %v2396 = vpop.permute.xlu0 %2395
        %2397 = vrot.lane.b32.xlu0 %v2394, 127
        %v2398 = vpop.permute.xlu0 %2397
        %v2401 = vadd.f32 %v2380, %v2396
        %v2402 = vadd.f32 %v2381, %v2398
        %s2403 = sld [smem:[#allocation5 + $0x6b]]
        %v2404 = vstv %s2403
        %v2405 = vmul.f32 %v365, %v2404
        %v2406 = vmul.f32 %v366, %v2404
        %v2407 = vmul.f32 %v367, %v2404
        %v2411 = vrot.slane %v2405, 4
        %v2412 = vrot.slane %v2406, 4
        %v2413 = vsel %vm822, %v2411, %v2412
        %v2414 = vrot.slane %v2407, 4
        %v2415 = vsel %vm822, %v2412, %v2414
        %2416 = vrot.lane.b32.xlu0 %v2413, 124
        %v2417 = vpop.permute.xlu0 %2416
        %2418 = vrot.lane.b32.xlu0 %v2415, 124
        %v2419 = vpop.permute.xlu0 %2418
        %v2422 = vadd.f32 %v2401, %v2417
        %v2423 = vadd.f32 %v2402, %v2419
        %2426 = vrot.lane.b32.xlu0 %v2422, 126
        %v2427 = vpop.permute.xlu0 %2426
        %2428 = vrot.lane.b32.xlu0 %v2423, 126
        %v2429 = vpop.permute.xlu0 %2428
        %s2432 = scalar_lea.vmem [#allocation3], 48
        %2433 = vst.msk [vmem:[%s2432 - $0x2] sm:$0xfc] %vm886, %v2427
        %2434 = vst.msk [vmem:[%s2432 + $0x6] sm:$0xff] %vm888, %v2429
        %v2435 = vld [vmem:[#allocation3] sm:$0x1]
        %v2436 = vld [vmem:[#allocation3 + $0x10] sm:$0x1]
        %v2437 = vld [vmem:[#allocation3 + $0x20] sm:$0x1]
        %v2438 = vld [vmem:[#allocation3 + $0x30] sm:$0x1]
        %v2443 = vrot.slane %v2436, 7
        %vm2444 = vcmask 1041409
        %v2445 = vsel %vm2444, %v2443, %v2435
        %vm2446 = vcmask 1045509
        %v2447 = vsel %vm2446, %v2443, %v2445
        %v2448 = vrot.slane %v2437, 6
        %vm2449 = vcmask 1042434
        %v2450 = vsel %vm2449, %v2448, %v2447
        %vm2451 = vcmask 1046534
        %v2452 = vsel %vm2451, %v2448, %v2450
        %v2453 = vrot.slane %v2438, 5
        %vm2454 = vcmask 1043459
        %v2455 = vsel %vm2454, %v2453, %v2452
        %vm2456 = vcmask 1047559
        %v2457 = vsel %vm2456, %v2453, %v2455
        %vm2459 = vcmask 109568
        %2460 = vst.msk [vmem:[#allocation4] sm:$0xf] %vm2459, %v2457
        %v2461 = vld [vmem:[#allocation3 + $0x1] sm:$0x1]
        %v2462 = vld [vmem:[#allocation3 + $0x11] sm:$0x1]
        %v2463 = vld [vmem:[#allocation3 + $0x21] sm:$0x1]
        %v2464 = vld [vmem:[#allocation3 + $0x31] sm:$0x1]
        %v2469 = vrot.slane %v2462, 7
        %v2470 = vsel %vm2444, %v2469, %v2461
        %v2471 = vsel %vm2446, %v2469, %v2470
        %v2472 = vrot.slane %v2463, 6
        %v2473 = vsel %vm2449, %v2472, %v2471
        %v2474 = vsel %vm2451, %v2472, %v2473
        %v2475 = vrot.slane %v2464, 5
        %v2476 = vsel %vm2454, %v2475, %v2474
        %v2477 = vsel %vm2456, %v2475, %v2476
        %2478 = vrot.lane.b32.xlu0 %v2477, 14
        %v2479 = vpop.permute.xlu0 %2478
        %vm2481 = vcmask 224368
        %2482 = vst.msk [vmem:[#allocation4] sm:$0xf] %vm2481, %v2479
        %v2483 = vld [vmem:[#allocation3 + $0x2] sm:$0x1]
        %v2484 = vld [vmem:[#allocation3 + $0x12] sm:$0x1]
        %v2485 = vld [vmem:[#allocation3 + $0x22] sm:$0x1]
        %v2486 = vld [vmem:[#allocation3 + $0x32] sm:$0x1]
        %v2491 = vrot.slane %v2484, 7
        %v2492 = vsel %vm2444, %v2491, %v2483
        %v2493 = vsel %vm2446, %v2491, %v2492
        %v2494 = vrot.slane %v2485, 6
        %v2495 = vsel %vm2449, %v2494, %v2493
        %v2496 = vsel %vm2451, %v2494, %v2495
        %v2497 = vrot.slane %v2486, 5
        %v2498 = vsel %vm2454, %v2497, %v2496
        %v2499 = vsel %vm2456, %v2497, %v2498
        %2500 = vrot.lane.b32.xlu0 %v2499, 28
        %v2501 = vpop.permute.xlu0 %2500
        %vm2503 = vcmask 339168
        %2504 = vst.msk [vmem:[#allocation4] sm:$0xf] %vm2503, %v2501
        %v2505 = vld [vmem:[#allocation3 + $0x3] sm:$0x1]
        %v2506 = vld [vmem:[#allocation3 + $0x13] sm:$0x1]
        %v2507 = vld [vmem:[#allocation3 + $0x23] sm:$0x1]
        %v2508 = vld [vmem:[#allocation3 + $0x33] sm:$0x1]
        %v2513 = vrot.slane %v2506, 7
        %v2514 = vsel %vm2444, %v2513, %v2505
        %v2515 = vsel %vm2446, %v2513, %v2514
        %v2516 = vrot.slane %v2507, 6
        %v2517 = vsel %vm2449, %v2516, %v2515
        %v2518 = vsel %vm2451, %v2516, %v2517
        %v2519 = vrot.slane %v2508, 5
        %v2520 = vsel %vm2454, %v2519, %v2518
        %v2521 = vsel %vm2456, %v2519, %v2520
        %2522 = vrot.lane.b32.xlu0 %v2521, 42
        %v2523 = vpop.permute.xlu0 %2522
        %vm2525 = vcmask 453968
        %2526 = vst.msk [vmem:[#allocation4] sm:$0xf] %vm2525, %v2523
        %v2527 = vld [vmem:[#allocation3 + $0x4] sm:$0x1]
        %v2528 = vld [vmem:[#allocation3 + $0x14] sm:$0x1]
        %v2529 = vld [vmem:[#allocation3 + $0x24] sm:$0x1]
        %v2530 = vld [vmem:[#allocation3 + $0x34] sm:$0x1]
        %v2535 = vrot.slane %v2528, 7
        %v2536 = vsel %vm2444, %v2535, %v2527
        %v2537 = vsel %vm2446, %v2535, %v2536
        %v2538 = vrot.slane %v2529, 6
        %v2539 = vsel %vm2449, %v2538, %v2537
        %v2540 = vsel %vm2451, %v2538, %v2539
        %v2541 = vrot.slane %v2530, 5
        %v2542 = vsel %vm2454, %v2541, %v2540
        %v2543 = vsel %vm2456, %v2541, %v2542
        %2544 = vrot.lane.b32.xlu0 %v2543, 56
        %v2545 = vpop.permute.xlu0 %2544
        %vm2547 = vcmask 568768
        %2548 = vst.msk [vmem:[#allocation4] sm:$0xf] %vm2547, %v2545
        %v2549 = vld [vmem:[#allocation3 + $0x5] sm:$0x1]
        %v2550 = vld [vmem:[#allocation3 + $0x15] sm:$0x1]
        %v2551 = vld [vmem:[#allocation3 + $0x25] sm:$0x1]
        %v2552 = vld [vmem:[#allocation3 + $0x35] sm:$0x1]
        %v2557 = vrot.slane %v2550, 7
        %v2558 = vsel %vm2444, %v2557, %v2549
        %v2559 = vsel %vm2446, %v2557, %v2558
        %v2560 = vrot.slane %v2551, 6
        %v2561 = vsel %vm2449, %v2560, %v2559
        %v2562 = vsel %vm2451, %v2560, %v2561
        %v2563 = vrot.slane %v2552, 5
        %v2564 = vsel %vm2454, %v2563, %v2562
        %v2565 = vsel %vm2456, %v2563, %v2564
        %2566 = vrot.lane.b32.xlu0 %v2565, 70
        %v2567 = vpop.permute.xlu0 %2566
        %vm2569 = vcmask 683568
        %2570 = vst.msk [vmem:[#allocation4] sm:$0xf] %vm2569, %v2567
        %v2571 = vld [vmem:[#allocation3 + $0x6] sm:$0x1]
        %v2572 = vld [vmem:[#allocation3 + $0x16] sm:$0x1]
        %v2573 = vld [vmem:[#allocation3 + $0x26] sm:$0x1]
        %v2574 = vld [vmem:[#allocation3 + $0x36] sm:$0x1]
        %v2579 = vrot.slane %v2572, 7
        %v2580 = vsel %vm2444, %v2579, %v2571
        %v2581 = vsel %vm2446, %v2579, %v2580
        %v2582 = vrot.slane %v2573, 6
        %v2583 = vsel %vm2449, %v2582, %v2581
        %v2584 = vsel %vm2451, %v2582, %v2583
        %v2585 = vrot.slane %v2574, 5
        %v2586 = vsel %vm2454, %v2585, %v2584
        %v2587 = vsel %vm2456, %v2585, %v2586
        %2588 = vrot.lane.b32.xlu0 %v2587, 84
        %v2589 = vpop.permute.xlu0 %2588
        %vm2591 = vcmask 798368
        %2592 = vst.msk [vmem:[#allocation4] sm:$0xf] %vm2591, %v2589
        %v2593 = vld [vmem:[#allocation3 + $0x7] sm:$0x1]
        %v2594 = vld [vmem:[#allocation3 + $0x17] sm:$0x1]
        %v2595 = vld [vmem:[#allocation3 + $0x27] sm:$0x1]
        %v2596 = vld [vmem:[#allocation3 + $0x37] sm:$0x1]
        %v2601 = vrot.slane %v2594, 7
        %v2602 = vsel %vm2444, %v2601, %v2593
        %v2603 = vsel %vm2446, %v2601, %v2602
        %v2604 = vrot.slane %v2595, 6
        %v2605 = vsel %vm2449, %v2604, %v2603
        %v2606 = vsel %vm2451, %v2604, %v2605
        %v2607 = vrot.slane %v2596, 5
        %v2608 = vsel %vm2454, %v2607, %v2606
        %v2609 = vsel %vm2456, %v2607, %v2608
        %2610 = vrot.lane.b32.xlu0 %v2609, 98
        %v2611 = vpop.permute.xlu0 %2610
        %vm2613 = vcmask 913168
        %2614 = vst.msk [vmem:[#allocation4] sm:$0xf] %vm2613, %v2611
        %v2615 = vld [vmem:[#allocation3 + $0x8] sm:$0x1]
        %v2616 = vld [vmem:[#allocation3 + $0x18] sm:$0x1]
        %v2617 = vld [vmem:[#allocation3 + $0x28] sm:$0x1]
        %v2618 = vld [vmem:[#allocation3 + $0x38] sm:$0x1]
        %v2623 = vrot.slane %v2616, 7
        %v2624 = vsel %vm2444, %v2623, %v2615
        %v2625 = vsel %vm2446, %v2623, %v2624
        %v2626 = vrot.slane %v2617, 6
        %v2627 = vsel %vm2449, %v2626, %v2625
        %v2628 = vsel %vm2451, %v2626, %v2627
        %v2629 = vrot.slane %v2618, 5
        %v2630 = vsel %vm2454, %v2629, %v2628
        %v2631 = vsel %vm2456, %v2629, %v2630
        %2632 = vrot.lane.b32.xlu0 %v2631, 112
        %v2633 = vpop.permute.xlu0 %2632
        %vm2635 = vcmask 1027968
        %2636 = vst.msk [vmem:[#allocation4] sm:$0xf] %vm2635, %v2633
        %v2637 = vld [vmem:[#allocation3 + $0x9] sm:$0x1]
        %v2638 = vld [vmem:[#allocation3 + $0x19] sm:$0x1]
        %v2639 = vld [vmem:[#allocation3 + $0x29] sm:$0x1]
        %v2640 = vld [vmem:[#allocation3 + $0x39] sm:$0x1]
        %v2645 = vrot.slane %v2638, 7
        %v2646 = vsel %vm2444, %v2645, %v2637
        %v2647 = vsel %vm2446, %v2645, %v2646
        %v2648 = vrot.slane %v2639, 6
        %v2649 = vsel %vm2449, %v2648, %v2647
        %v2650 = vsel %vm2451, %v2648, %v2649
        %v2651 = vrot.slane %v2640, 5
        %v2652 = vsel %vm2454, %v2651, %v2650
        %v2653 = vsel %vm2456, %v2651, %v2652
        %2654 = vrot.lane.b32.xlu0 %v2653, 126
        %v2655 = vpop.permute.xlu0 %2654
        %v2656 = vrot.slane %v2655, 4
        %vm2657 = vcmask 1031168
        %v2658 = vsel %vm2657, %v2656, %v2655
        %vm2660 = vcmask 1044464
        %vm2661 = vcmask 97284
        %vm2662 = vmor %vm2661, %vm2660
        %2663 = vst.msk [vmem:[#allocation4] sm:$0xff] %vm2662, %v2658
        %v2664 = vld [vmem:[#allocation3 + $0xa] sm:$0x1]
        %v2665 = vld [vmem:[#allocation3 + $0x1a] sm:$0x1]
        %v2666 = vld [vmem:[#allocation3 + $0x2a] sm:$0x1]
        %v2667 = vld [vmem:[#allocation3 + $0x3a] sm:$0x1]
        %v2672 = vrot.slane %v2665, 7
        %v2673 = vsel %vm2444, %v2672, %v2664
        %v2674 = vsel %vm2446, %v2672, %v2673
        %v2675 = vrot.slane %v2666, 6
        %v2676 = vsel %vm2449, %v2675, %v2674
        %v2677 = vsel %vm2451, %v2675, %v2676
        %v2678 = vrot.slane %v2667, 5
        %v2679 = vsel %vm2454, %v2678, %v2677
        %v2680 = vsel %vm2456, %v2678, %v2679
        %2681 = vrot.lane.b32.xlu0 %v2680, 12
        %v2682 = vpop.permute.xlu0 %2681
        %vm2684 = vcmask 207968
        %2685 = vst.msk [vmem:[#allocation4 + $0x4] sm:$0xf] %vm2684, %v2682
        %v2686 = vld [vmem:[#allocation3 + $0xb] sm:$0x1]
        %v2687 = vld [vmem:[#allocation3 + $0x1b] sm:$0x1]
        %v2688 = vld [vmem:[#allocation3 + $0x2b] sm:$0x1]
        %v2689 = vld [vmem:[#allocation3 + $0x3b] sm:$0x1]
        %v2694 = vrot.slane %v2687, 7
        %v2695 = vsel %vm2444, %v2694, %v2686
        %v2696 = vsel %vm2446, %v2694, %v2695
        %v2697 = vrot.slane %v2688, 6
        %v2698 = vsel %vm2449, %v2697, %v2696
        %v2699 = vsel %vm2451, %v2697, %v2698
        %v2700 = vrot.slane %v2689, 5
        %v2701 = vsel %vm2454, %v2700, %v2699
        %v2702 = vsel %vm2456, %v2700, %v2701
        %2703 = vrot.lane.b32.xlu0 %v2702, 26
        %v2704 = vpop.permute.xlu0 %2703
        %vm2706 = vcmask 322768
        %2707 = vst.msk [vmem:[#allocation4 + $0x4] sm:$0xf] %vm2706, %v2704
        %v2708 = vld [vmem:[#allocation3 + $0xc] sm:$0x1]
        %v2709 = vld [vmem:[#allocation3 + $0x1c] sm:$0x1]
        %v2710 = vld [vmem:[#allocation3 + $0x2c] sm:$0x1]
        %v2711 = vld [vmem:[#allocation3 + $0x3c] sm:$0x1]
        %v2716 = vrot.slane %v2709, 7
        %v2717 = vsel %vm2444, %v2716, %v2708
        %v2718 = vsel %vm2446, %v2716, %v2717
        %v2719 = vrot.slane %v2710, 6
        %v2720 = vsel %vm2449, %v2719, %v2718
        %v2721 = vsel %vm2451, %v2719, %v2720
        %v2722 = vrot.slane %v2711, 5
        %v2723 = vsel %vm2454, %v2722, %v2721
        %v2724 = vsel %vm2456, %v2722, %v2723
        %2725 = vrot.lane.b32.xlu0 %v2724, 40
        %v2726 = vpop.permute.xlu0 %2725
        %vm2728 = vcmask 437568
        %2729 = vst.msk [vmem:[#allocation4 + $0x4] sm:$0xf] %vm2728, %v2726
        %v2730 = vld [vmem:[#allocation3 + $0xd] sm:$0x1]
        %v2731 = vld [vmem:[#allocation3 + $0x1d] sm:$0x1]
        %v2732 = vld [vmem:[#allocation3 + $0x2d] sm:$0x1]
        %v2733 = vld [vmem:[#allocation3 + $0x3d] sm:$0x1]
        %v2738 = vrot.slane %v2731, 7
        %v2739 = vsel %vm2444, %v2738, %v2730
        %v2740 = vsel %vm2446, %v2738, %v2739
        %v2741 = vrot.slane %v2732, 6
        %v2742 = vsel %vm2449, %v2741, %v2740
        %v2743 = vsel %vm2451, %v2741, %v2742
        %v2744 = vrot.slane %v2733, 5
        %v2745 = vsel %vm2454, %v2744, %v2743
        %v2746 = vsel %vm2456, %v2744, %v2745
        %2747 = vrot.lane.b32.xlu0 %v2746, 54
        %v2748 = vpop.permute.xlu0 %2747
        %vm2750 = vcmask 552368
        %2751 = vst.msk [vmem:[#allocation4 + $0x4] sm:$0xf] %vm2750, %v2748
        %v2752 = vld [vmem:[%s2] sm:$0xff]
        %v2753 = vld [vmem:[#allocation4] sm:$0xff]
        %v2754 = vld [vmem:[%s3] sm:$0xff]
        %2756 = vset.pattern.permute.xlu0 0
        %2757 = vperm.xlu0 %2756, %v2754
        %v2758 = vpop.permute.xlu0 %2757
        %v2761 = vcombine.high %v2753, %v2753
        %vm2762 = vcmask 31744
        %v2764 = vsel %vm2762, %v2752, 0
        %v2766 = vsel %vm822, %v2753, 0
        %v2768 = vsel %vm822, %v2761, 0
        %2770 = vmatprep.subr.mxu0 0.0
        %2771 = vmatpush1.msra.mxu0 0.0
        %2772 = vmatprep.subr.mxu0 0.0
        %2773 = vmatpush1.msra.mxu0 0.0
        %2774 = vmatprep.subr.mxu0 0.0
        %2775 = vmatpush1.msra.mxu0 0.0
        %2776 = vmatprep.subr.mxu0 0.0
        %2777 = vmatpush1.msra.mxu0 0.0
        %2778 = vmatprep.subr.mxu0 0.0
        %2779 = vmatpush1.msra.mxu0 0.0
        %2780 = vmatprep.subr.mxu0 0.0
        %2781 = vmatpush1.msra.mxu0 0.0
        %2782 = vmatprep.subr.mxu0 0.0
        %2783 = vmatpush1.msra.mxu0 0.0
        %2784 = vmatprep.subr.mxu0 0.0
        %2785 = vmatpush1.msra.mxu0 0.0
        %2786 = vmatprep.subr.mxu0 0.0
        %2787 = vmatpush1.msra.mxu0 0.0
        %2788 = vmatprep.subr.mxu0 0.0
        %2789 = vmatpush1.msra.mxu0 0.0
        %2790 = vmatprep.subr.mxu0 0.0
        %2791 = vmatpush1.msra.mxu0 0.0
        %2792 = vmatprep.subr.mxu0 0.0
        %2793 = vmatpush1.msra.mxu0 0.0
        %2794 = vmatprep.subr.mxu0 0.0
        %2795 = vmatpush1.msra.mxu0 0.0
        %2796 = vmatprep.subr.mxu0 0.0
        %2797 = vmatpush1.msra.mxu0 0.0
        %2798 = vmatprep.subr.mxu0 0.0
        %2799 = vmatpush1.msra.mxu0 0.0
        %v2800 = vand.u32 %v2768, 4294901760
        %2801 = vmatprep.subr.mxu0 %v2800
        %v2802 = vand.u32 %v2766, 4294901760
        %2803 = vmatpush1.msra.mxu0 %v2802
        %2804 = vmatprep.subr.mxu0 0.0
        %2805 = vmatpush2.msra.mxu0 0.0
        %2806 = vmatprep.subr.mxu0 0.0
        %2807 = vmatpush2.msra.mxu0 0.0
        %2808 = vmatprep.subr.mxu0 0.0
        %2809 = vmatpush2.msra.mxu0 0.0
        %2810 = vmatprep.subr.mxu0 0.0
        %2811 = vmatpush2.msra.mxu0 0.0
        %2812 = vmatprep.subr.mxu0 0.0
        %2813 = vmatpush2.msra.mxu0 0.0
        %2814 = vmatprep.subr.mxu0 0.0
        %2815 = vmatpush2.msra.mxu0 0.0
        %2816 = vmatprep.subr.mxu0 0.0
        %2817 = vmatpush2.msra.mxu0 0.0
        %2818 = vmatprep.subr.mxu0 0.0
        %2819 = vmatpush2.msra.mxu0 0.0
        %2820 = vmatprep.subr.mxu0 0.0
        %2821 = vmatpush2.msra.mxu0 0.0
        %2822 = vmatprep.subr.mxu0 0.0
        %2823 = vmatpush2.msra.mxu0 0.0
        %2824 = vmatprep.subr.mxu0 0.0
        %2825 = vmatpush2.msra.mxu0 0.0
        %2826 = vmatprep.subr.mxu0 0.0
        %2827 = vmatpush2.msra.mxu0 0.0
        %2828 = vmatprep.subr.mxu0 0.0
        %2829 = vmatpush2.msra.mxu0 0.0
        %2830 = vmatprep.subr.mxu0 0.0
        %2831 = vmatpush2.msra.mxu0 0.0
        %2832 = vmatprep.subr.mxu0 0.0
        %2833 = vmatpush2.msra.mxu0 0.0
        %2834 = vmatprep.subr.mxu0 0.0
        %2835 = vmatpush2.msra.mxu0 0.0
        %2836 = vmatprep.mubr.f32.mxu0 0.0
        %v2837 = vand.u32 %v2764, 4294901760
        %v2838 = vsub.f32 %v2764, %v2837
        %v2839 = vand.u32 %v2838, 4294901760
        %v2840 = vsub.f32 %v2838, %v2839
        %v2841 = vand.u32 %v2840, 4294901760
        %2842 = vmatmul.mubr.f32.gmra.mxu0 %v2841
        %v2843 = vpop.f32.mrf.mxu0
        %v2844 = vadd.f32 %v2758, %v2843
        %v2845 = vpop.f32.mrf.mxu0
        %v2846 = vadd.f32 %v2758, %v2845
        %2847 = vdwg.mxu0
        %2848 = vmatprep.subr.mxu0 0.0
        %2849 = vmatpush1.msra.mxu0 0.0
        %2850 = vmatprep.subr.mxu0 0.0
        %2851 = vmatpush1.msra.mxu0 0.0
        %2852 = vmatprep.subr.mxu0 0.0
        %2853 = vmatpush1.msra.mxu0 0.0
        %2854 = vmatprep.subr.mxu0 0.0
        %2855 = vmatpush1.msra.mxu0 0.0
        %2856 = vmatprep.subr.mxu0 0.0
        %2857 = vmatpush1.msra.mxu0 0.0
        %2858 = vmatprep.subr.mxu0 0.0
        %2859 = vmatpush1.msra.mxu0 0.0
        %2860 = vmatprep.subr.mxu0 0.0
        %2861 = vmatpush1.msra.mxu0 0.0
        %2862 = vmatprep.subr.mxu0 0.0
        %2863 = vmatpush1.msra.mxu0 0.0
        %2864 = vmatprep.subr.mxu0 0.0
        %2865 = vmatpush1.msra.mxu0 0.0
        %2866 = vmatprep.subr.mxu0 0.0
        %2867 = vmatpush1.msra.mxu0 0.0
        %2868 = vmatprep.subr.mxu0 0.0
        %2869 = vmatpush1.msra.mxu0 0.0
        %2870 = vmatprep.subr.mxu0 0.0
        %2871 = vmatpush1.msra.mxu0 0.0
        %2872 = vmatprep.subr.mxu0 0.0
        %2873 = vmatpush1.msra.mxu0 0.0
        %2874 = vmatprep.subr.mxu0 0.0
        %2875 = vmatpush1.msra.mxu0 0.0
        %2876 = vmatprep.subr.mxu0 0.0
        %2877 = vmatpush1.msra.mxu0 0.0
        %v2878 = vand.u32 %v2768, 4294901760
        %v2879 = vsub.f32 %v2768, %v2878
        %v2880 = vand.u32 %v2879, 4294901760
        %v2881 = vsub.f32 %v2879, %v2880
        %v2882 = vand.u32 %v2881, 4294901760
        %2883 = vmatprep.subr.mxu0 %v2882
        %v2884 = vand.u32 %v2766, 4294901760
        %v2885 = vsub.f32 %v2766, %v2884
        %v2886 = vand.u32 %v2885, 4294901760
        %v2887 = vsub.f32 %v2885, %v2886
        %v2888 = vand.u32 %v2887, 4294901760
        %2889 = vmatpush1.msra.mxu0 %v2888
        %2890 = vmatprep.subr.mxu0 0.0
        %2891 = vmatpush2.msra.mxu0 0.0
        %2892 = vmatprep.subr.mxu0 0.0
        %2893 = vmatpush2.msra.mxu0 0.0
        %2894 = vmatprep.subr.mxu0 0.0
        %2895 = vmatpush2.msra.mxu0 0.0
        %2896 = vmatprep.subr.mxu0 0.0
        %2897 = vmatpush2.msra.mxu0 0.0
        %2898 = vmatprep.subr.mxu0 0.0
        %2899 = vmatpush2.msra.mxu0 0.0
        %2900 = vmatprep.subr.mxu0 0.0
        %2901 = vmatpush2.msra.mxu0 0.0
        %2902 = vmatprep.subr.mxu0 0.0
        %2903 = vmatpush2.msra.mxu0 0.0
        %2904 = vmatprep.subr.mxu0 0.0
        %2905 = vmatpush2.msra.mxu0 0.0
        %2906 = vmatprep.subr.mxu0 0.0
        %2907 = vmatpush2.msra.mxu0 0.0
        %2908 = vmatprep.subr.mxu0 0.0
        %2909 = vmatpush2.msra.mxu0 0.0
        %2910 = vmatprep.subr.mxu0 0.0
        %2911 = vmatpush2.msra.mxu0 0.0
        %2912 = vmatprep.subr.mxu0 0.0
        %2913 = vmatpush2.msra.mxu0 0.0
        %2914 = vmatprep.subr.mxu0 0.0
        %2915 = vmatpush2.msra.mxu0 0.0
        %2916 = vmatprep.subr.mxu0 0.0
        %2917 = vmatpush2.msra.mxu0 0.0
        %2918 = vmatprep.subr.mxu0 0.0
        %2919 = vmatpush2.msra.mxu0 0.0
        %2920 = vmatprep.subr.mxu0 0.0
        %2921 = vmatpush2.msra.mxu0 0.0
        %2922 = vmatprep.mubr.f32.mxu0 0.0
        %v2923 = vand.u32 %v2764, 4294901760
        %2924 = vmatmul.mubr.f32.gmra.mxu0 %v2923
        %v2925 = vpop.f32.mrf.mxu0
        %v2926 = vadd.f32 %v2844, %v2925
        %v2927 = vpop.f32.mrf.mxu0
        %v2928 = vadd.f32 %v2846, %v2927
        %2929 = vdwg.mxu0
        %2930 = vmatprep.subr.mxu0 0.0
        %2931 = vmatpush1.msra.mxu0 0.0
        %2932 = vmatprep.subr.mxu0 0.0
        %2933 = vmatpush1.msra.mxu0 0.0
        %2934 = vmatprep.subr.mxu0 0.0
        %2935 = vmatpush1.msra.mxu0 0.0
        %2936 = vmatprep.subr.mxu0 0.0
        %2937 = vmatpush1.msra.mxu0 0.0
        %2938 = vmatprep.subr.mxu0 0.0
        %2939 = vmatpush1.msra.mxu0 0.0
        %2940 = vmatprep.subr.mxu0 0.0
        %2941 = vmatpush1.msra.mxu0 0.0
        %2942 = vmatprep.subr.mxu0 0.0
        %2943 = vmatpush1.msra.mxu0 0.0
        %2944 = vmatprep.subr.mxu0 0.0
        %2945 = vmatpush1.msra.mxu0 0.0
        %2946 = vmatprep.subr.mxu0 0.0
        %2947 = vmatpush1.msra.mxu0 0.0
        %2948 = vmatprep.subr.mxu0 0.0
        %2949 = vmatpush1.msra.mxu0 0.0
        %2950 = vmatprep.subr.mxu0 0.0
        %2951 = vmatpush1.msra.mxu0 0.0
        %2952 = vmatprep.subr.mxu0 0.0
        %2953 = vmatpush1.msra.mxu0 0.0
        %2954 = vmatprep.subr.mxu0 0.0
        %2955 = vmatpush1.msra.mxu0 0.0
        %2956 = vmatprep.subr.mxu0 0.0
        %2957 = vmatpush1.msra.mxu0 0.0
        %2958 = vmatprep.subr.mxu0 0.0
        %2959 = vmatpush1.msra.mxu0 0.0
        %v2960 = vand.u32 %v2768, 4294901760
        %v2961 = vsub.f32 %v2768, %v2960
        %2962 = vmatprep.subr.mxu0 %v2961
        %v2963 = vand.u32 %v2766, 4294901760
        %v2964 = vsub.f32 %v2766, %v2963
        %2965 = vmatpush1.msra.mxu0 %v2964
        %2966 = vmatprep.subr.mxu0 0.0
        %2967 = vmatpush2.msra.mxu0 0.0
        %2968 = vmatprep.subr.mxu0 0.0
        %2969 = vmatpush2.msra.mxu0 0.0
        %2970 = vmatprep.subr.mxu0 0.0
        %2971 = vmatpush2.msra.mxu0 0.0
        %2972 = vmatprep.subr.mxu0 0.0
        %2973 = vmatpush2.msra.mxu0 0.0
        %2974 = vmatprep.subr.mxu0 0.0
        %2975 = vmatpush2.msra.mxu0 0.0
        %2976 = vmatprep.subr.mxu0 0.0
        %2977 = vmatpush2.msra.mxu0 0.0
        %2978 = vmatprep.subr.mxu0 0.0
        %2979 = vmatpush2.msra.mxu0 0.0
        %2980 = vmatprep.subr.mxu0 0.0
        %2981 = vmatpush2.msra.mxu0 0.0
        %2982 = vmatprep.subr.mxu0 0.0
        %2983 = vmatpush2.msra.mxu0 0.0
        %2984 = vmatprep.subr.mxu0 0.0
        %2985 = vmatpush2.msra.mxu0 0.0
        %2986 = vmatprep.subr.mxu0 0.0
        %2987 = vmatpush2.msra.mxu0 0.0
        %2988 = vmatprep.subr.mxu0 0.0
        %2989 = vmatpush2.msra.mxu0 0.0
        %2990 = vmatprep.subr.mxu0 0.0
        %2991 = vmatpush2.msra.mxu0 0.0
        %2992 = vmatprep.subr.mxu0 0.0
        %2993 = vmatpush2.msra.mxu0 0.0
        %2994 = vmatprep.subr.mxu0 0.0
        %2995 = vmatpush2.msra.mxu0 0.0
        %2996 = vmatprep.subr.mxu0 0.0
        %2997 = vmatpush2.msra.mxu0 0.0
        %2998 = vmatprep.mubr.f32.mxu0 0.0
        %v2999 = vand.u32 %v2764, 4294901760
        %v3000 = vsub.f32 %v2764, %v2999
        %3001 = vmatmul.mubr.f32.gmra.mxu0 %v3000
        %v3002 = vpop.f32.mrf.mxu0
        %v3003 = vadd.f32 %v2926, %v3002
        %v3004 = vpop.f32.mrf.mxu0
        %v3005 = vadd.f32 %v2928, %v3004
        %3006 = vdwg.mxu0
        %3007 = vmatprep.subr.mxu0 0.0
        %3008 = vmatpush1.msra.mxu0 0.0
        %3009 = vmatprep.subr.mxu0 0.0
        %3010 = vmatpush1.msra.mxu0 0.0
        %3011 = vmatprep.subr.mxu0 0.0
        %3012 = vmatpush1.msra.mxu0 0.0
        %3013 = vmatprep.subr.mxu0 0.0
        %3014 = vmatpush1.msra.mxu0 0.0
        %3015 = vmatprep.subr.mxu0 0.0
        %3016 = vmatpush1.msra.mxu0 0.0
        %3017 = vmatprep.subr.mxu0 0.0
        %3018 = vmatpush1.msra.mxu0 0.0
        %3019 = vmatprep.subr.mxu0 0.0
        %3020 = vmatpush1.msra.mxu0 0.0
        %3021 = vmatprep.subr.mxu0 0.0
        %3022 = vmatpush1.msra.mxu0 0.0
        %3023 = vmatprep.subr.mxu0 0.0
        %3024 = vmatpush1.msra.mxu0 0.0
        %3025 = vmatprep.subr.mxu0 0.0
        %3026 = vmatpush1.msra.mxu0 0.0
        %3027 = vmatprep.subr.mxu0 0.0
        %3028 = vmatpush1.msra.mxu0 0.0
        %3029 = vmatprep.subr.mxu0 0.0
        %3030 = vmatpush1.msra.mxu0 0.0
        %3031 = vmatprep.subr.mxu0 0.0
        %3032 = vmatpush1.msra.mxu0 0.0
        %3033 = vmatprep.subr.mxu0 0.0
        %3034 = vmatpush1.msra.mxu0 0.0
        %3035 = vmatprep.subr.mxu0 0.0
        %3036 = vmatpush1.msra.mxu0 0.0
        %v3037 = vand.u32 %v2768, 4294901760
        %3038 = vmatprep.subr.mxu0 %v3037
        %v3039 = vand.u32 %v2766, 4294901760
        %3040 = vmatpush1.msra.mxu0 %v3039
        %3041 = vmatprep.subr.mxu0 0.0
        %3042 = vmatpush2.msra.mxu0 0.0
        %3043 = vmatprep.subr.mxu0 0.0
        %3044 = vmatpush2.msra.mxu0 0.0
        %3045 = vmatprep.subr.mxu0 0.0
        %3046 = vmatpush2.msra.mxu0 0.0
        %3047 = vmatprep.subr.mxu0 0.0
        %3048 = vmatpush2.msra.mxu0 0.0
        %3049 = vmatprep.subr.mxu0 0.0
        %3050 = vmatpush2.msra.mxu0 0.0
        %3051 = vmatprep.subr.mxu0 0.0
        %3052 = vmatpush2.msra.mxu0 0.0
        %3053 = vmatprep.subr.mxu0 0.0
        %3054 = vmatpush2.msra.mxu0 0.0
        %3055 = vmatprep.subr.mxu0 0.0
        %3056 = vmatpush2.msra.mxu0 0.0
        %3057 = vmatprep.subr.mxu0 0.0
        %3058 = vmatpush2.msra.mxu0 0.0
        %3059 = vmatprep.subr.mxu0 0.0
        %3060 = vmatpush2.msra.mxu0 0.0
        %3061 = vmatprep.subr.mxu0 0.0
        %3062 = vmatpush2.msra.mxu0 0.0
        %3063 = vmatprep.subr.mxu0 0.0
        %3064 = vmatpush2.msra.mxu0 0.0
        %3065 = vmatprep.subr.mxu0 0.0
        %3066 = vmatpush2.msra.mxu0 0.0
        %3067 = vmatprep.subr.mxu0 0.0
        %3068 = vmatpush2.msra.mxu0 0.0
        %3069 = vmatprep.subr.mxu0 0.0
        %3070 = vmatpush2.msra.mxu0 0.0
        %3071 = vmatprep.subr.mxu0 0.0
        %3072 = vmatpush2.msra.mxu0 0.0
        %3073 = vmatprep.mubr.f32.mxu0 0.0
        %v3074 = vand.u32 %v2764, 4294901760
        %v3075 = vsub.f32 %v2764, %v3074
        %v3076 = vand.u32 %v3075, 4294901760
        %3077 = vmatmul.mubr.f32.gmra.mxu0 %v3076
        %v3078 = vpop.f32.mrf.mxu0
        %v3079 = vadd.f32 %v3003, %v3078
        %v3080 = vpop.f32.mrf.mxu0
        %v3081 = vadd.f32 %v3005, %v3080
        %3082 = vdwg.mxu0
        %3083 = vmatprep.subr.mxu0 0.0
        %3084 = vmatpush1.msra.mxu0 0.0
        %3085 = vmatprep.subr.mxu0 0.0
        %3086 = vmatpush1.msra.mxu0 0.0
        %3087 = vmatprep.subr.mxu0 0.0
        %3088 = vmatpush1.msra.mxu0 0.0
        %3089 = vmatprep.subr.mxu0 0.0
        %3090 = vmatpush1.msra.mxu0 0.0
        %3091 = vmatprep.subr.mxu0 0.0
        %3092 = vmatpush1.msra.mxu0 0.0
        %3093 = vmatprep.subr.mxu0 0.0
        %3094 = vmatpush1.msra.mxu0 0.0
        %3095 = vmatprep.subr.mxu0 0.0
        %3096 = vmatpush1.msra.mxu0 0.0
        %3097 = vmatprep.subr.mxu0 0.0
        %3098 = vmatpush1.msra.mxu0 0.0
        %3099 = vmatprep.subr.mxu0 0.0
        %3100 = vmatpush1.msra.mxu0 0.0
        %3101 = vmatprep.subr.mxu0 0.0
        %3102 = vmatpush1.msra.mxu0 0.0
        %3103 = vmatprep.subr.mxu0 0.0
        %3104 = vmatpush1.msra.mxu0 0.0
        %3105 = vmatprep.subr.mxu0 0.0
        %3106 = vmatpush1.msra.mxu0 0.0
        %3107 = vmatprep.subr.mxu0 0.0
        %3108 = vmatpush1.msra.mxu0 0.0
        %3109 = vmatprep.subr.mxu0 0.0
        %3110 = vmatpush1.msra.mxu0 0.0
        %3111 = vmatprep.subr.mxu0 0.0
        %3112 = vmatpush1.msra.mxu0 0.0
        %v3113 = vand.u32 %v2768, 4294901760
        %v3114 = vsub.f32 %v2768, %v3113
        %v3115 = vand.u32 %v3114, 4294901760
        %3116 = vmatprep.subr.mxu0 %v3115
        %v3117 = vand.u32 %v2766, 4294901760
        %v3118 = vsub.f32 %v2766, %v3117
        %v3119 = vand.u32 %v3118, 4294901760
        %3120 = vmatpush1.msra.mxu0 %v3119
        %3121 = vmatprep.subr.mxu0 0.0
        %3122 = vmatpush2.msra.mxu0 0.0
        %3123 = vmatprep.subr.mxu0 0.0
        %3124 = vmatpush2.msra.mxu0 0.0
        %3125 = vmatprep.subr.mxu0 0.0
        %3126 = vmatpush2.msra.mxu0 0.0
        %3127 = vmatprep.subr.mxu0 0.0
        %3128 = vmatpush2.msra.mxu0 0.0
        %3129 = vmatprep.subr.mxu0 0.0
        %3130 = vmatpush2.msra.mxu0 0.0
        %3131 = vmatprep.subr.mxu0 0.0
        %3132 = vmatpush2.msra.mxu0 0.0
        %3133 = vmatprep.subr.mxu0 0.0
        %3134 = vmatpush2.msra.mxu0 0.0
        %3135 = vmatprep.subr.mxu0 0.0
        %3136 = vmatpush2.msra.mxu0 0.0
        %3137 = vmatprep.subr.mxu0 0.0
        %3138 = vmatpush2.msra.mxu0 0.0
        %3139 = vmatprep.subr.mxu0 0.0
        %3140 = vmatpush2.msra.mxu0 0.0
        %3141 = vmatprep.subr.mxu0 0.0
        %3142 = vmatpush2.msra.mxu0 0.0
        %3143 = vmatprep.subr.mxu0 0.0
        %3144 = vmatpush2.msra.mxu0 0.0
        %3145 = vmatprep.subr.mxu0 0.0
        %3146 = vmatpush2.msra.mxu0 0.0
        %3147 = vmatprep.subr.mxu0 0.0
        %3148 = vmatpush2.msra.mxu0 0.0
        %3149 = vmatprep.subr.mxu0 0.0
        %3150 = vmatpush2.msra.mxu0 0.0
        %3151 = vmatprep.subr.mxu0 0.0
        %3152 = vmatpush2.msra.mxu0 0.0
        %3153 = vmatprep.mubr.f32.mxu0 0.0
        %v3154 = vand.u32 %v2764, 4294901760
        %3155 = vmatmul.mubr.f32.gmra.mxu0 %v3154
        %v3156 = vpop.f32.mrf.mxu0
        %v3157 = vadd.f32 %v3079, %v3156
        %v3158 = vpop.f32.mrf.mxu0
        %v3159 = vadd.f32 %v3081, %v3158
        %3160 = vdwg.mxu0
        %3161 = vmatprep.subr.mxu0 0.0
        %3162 = vmatpush1.msra.mxu0 0.0
        %3163 = vmatprep.subr.mxu0 0.0
        %3164 = vmatpush1.msra.mxu0 0.0
        %3165 = vmatprep.subr.mxu0 0.0
        %3166 = vmatpush1.msra.mxu0 0.0
        %3167 = vmatprep.subr.mxu0 0.0
        %3168 = vmatpush1.msra.mxu0 0.0
        %3169 = vmatprep.subr.mxu0 0.0
        %3170 = vmatpush1.msra.mxu0 0.0
        %3171 = vmatprep.subr.mxu0 0.0
        %3172 = vmatpush1.msra.mxu0 0.0
        %3173 = vmatprep.subr.mxu0 0.0
        %3174 = vmatpush1.msra.mxu0 0.0
        %3175 = vmatprep.subr.mxu0 0.0
        %3176 = vmatpush1.msra.mxu0 0.0
        %3177 = vmatprep.subr.mxu0 0.0
        %3178 = vmatpush1.msra.mxu0 0.0
        %3179 = vmatprep.subr.mxu0 0.0
        %3180 = vmatpush1.msra.mxu0 0.0
        %3181 = vmatprep.subr.mxu0 0.0
        %3182 = vmatpush1.msra.mxu0 0.0
        %3183 = vmatprep.subr.mxu0 0.0
        %3184 = vmatpush1.msra.mxu0 0.0
        %3185 = vmatprep.subr.mxu0 0.0
        %3186 = vmatpush1.msra.mxu0 0.0
        %3187 = vmatprep.subr.mxu0 0.0
        %3188 = vmatpush1.msra.mxu0 0.0
        %3189 = vmatprep.subr.mxu0 0.0
        %3190 = vmatpush1.msra.mxu0 0.0
        %v3191 = vand.u32 %v2768, 4294901760
        %3192 = vmatprep.subr.mxu0 %v3191
        %v3193 = vand.u32 %v2766, 4294901760
        %3194 = vmatpush1.msra.mxu0 %v3193
        %3195 = vmatprep.subr.mxu0 0.0
        %3196 = vmatpush2.msra.mxu0 0.0
        %3197 = vmatprep.subr.mxu0 0.0
        %3198 = vmatpush2.msra.mxu0 0.0
        %3199 = vmatprep.subr.mxu0 0.0
        %3200 = vmatpush2.msra.mxu0 0.0
        %3201 = vmatprep.subr.mxu0 0.0
        %3202 = vmatpush2.msra.mxu0 0.0
        %3203 = vmatprep.subr.mxu0 0.0
        %3204 = vmatpush2.msra.mxu0 0.0
        %3205 = vmatprep.subr.mxu0 0.0
        %3206 = vmatpush2.msra.mxu0 0.0
        %3207 = vmatprep.subr.mxu0 0.0
        %3208 = vmatpush2.msra.mxu0 0.0
        %3209 = vmatprep.subr.mxu0 0.0
        %3210 = vmatpush2.msra.mxu0 0.0
        %3211 = vmatprep.subr.mxu0 0.0
        %3212 = vmatpush2.msra.mxu0 0.0
        %3213 = vmatprep.subr.mxu0 0.0
        %3214 = vmatpush2.msra.mxu0 0.0
        %3215 = vmatprep.subr.mxu0 0.0
        %3216 = vmatpush2.msra.mxu0 0.0
        %3217 = vmatprep.subr.mxu0 0.0
        %3218 = vmatpush2.msra.mxu0 0.0
        %3219 = vmatprep.subr.mxu0 0.0
        %3220 = vmatpush2.msra.mxu0 0.0
        %3221 = vmatprep.subr.mxu0 0.0
        %3222 = vmatpush2.msra.mxu0 0.0
        %3223 = vmatprep.subr.mxu0 0.0
        %3224 = vmatpush2.msra.mxu0 0.0
        %3225 = vmatprep.subr.mxu0 0.0
        %3226 = vmatpush2.msra.mxu0 0.0
        %3227 = vmatprep.mubr.f32.mxu0 0.0
        %v3228 = vand.u32 %v2764, 4294901760
        %3229 = vmatmul.mubr.f32.gmra.mxu0 %v3228
        %v3230 = vpop.f32.mrf.mxu0
        %v3231 = vadd.f32 %v3157, %v3230
        %v3232 = vpop.f32.mrf.mxu0
        %v3233 = vadd.f32 %v3159, %v3232
        %3234 = vdwg.mxu0
        %vm3235 = vcmp.gt.f32.partialorder %v3231, 0.0
        %vm3236 = vcmp.gt.f32.partialorder %v3233, 0.0
        %v3237 = vld [vmem:[%s4] sm:$0xff]
        %v3238 = vld [vmem:[%s5] sm:$0xff]
        %3240 = vset.pattern.permute.xlu0 0
        %3241 = vperm.xlu0 %3240, %v3237
        %v3242 = vpop.permute.xlu0 %3241
        %3245 = vset.pattern.permute.xlu0 0
        %3246 = vperm.xlu0 %3245, %v3238
        %v3247 = vpop.permute.xlu0 %3246
        %v3249 = vsel %vm3235, %v3242, %v3247
        %v3250 = vsel %vm3236, %v3242, %v3247
        %v3251 = vmul.f32 %v3249, %v3231
        %v3252 = vmul.f32 %v3250, %v3233
        %v3253 = vld [vmem:[%s6] sm:$0xff]
        %3255 = vset.pattern.permute.xlu0 0
        %3256 = vperm.xlu0 %3255, %v3253
        %v3257 = vpop.permute.xlu0 %3256
        %v3259 = vadd.f32 %v3251, %v3257
        %v3260 = vadd.f32 %v3252, %v3257
        %3261 = vst [vmem:[%s292] sm:$0xff] %v3259
        %vm3262 = vcmask 556032
        %3263 = vst.msk [vmem:[%s292 + $0x8] sm:$0xff] %vm3262, %v3260
        %p3264 = scmp.lt.s32.totalorder %s19, 1
        %s3265 = scalar_select %p3264, %s19, 1
        %s3266 = smul.addr %s3265, 2
        %s3267 = smul.addr %s3266, 8
        %s3268 = scalar_lea.vmem %s7, %s3267
        // Predicated region
        $region53: #{acff_forward.1} parent=47 // pred_check
          %p3269 = pneg %p189
        $region54: #{acff_forward.1} parent=47 // pred_check_branch
          %3271 = sbr.rel (%p3269) target = $region56
        $region55: #{acff_forward.1} parent=47 // pred_region
          _
        $region56: #{acff_forward.1} parent=47 // pred_fallthru
          _
      $region48: #{acff_forward.1} parent=5 // pred_fallthru
        _
      %p3272 = scmp.le.s32.totalorder 2, %s14
      // Predicated region
      $region57: #{acff_forward.1} parent=5 // pred_check
        %p3273 = pneg %p3272
      $region58: #{acff_forward.1} parent=5 // pred_check_branch
        %3275 = sbr.rel (%p3273) target = $region60
      $region59: #{acff_forward.1} parent=5 // pred_region
        %s3276 = ssub.s32 %s14, 2
        // Predicated region
        $region61: #{acff_forward.1} parent=59 // pred_check
          %p3277 = pneg %p195
        $region62: #{acff_forward.1} parent=59 // pred_check_branch
          %3279 = sbr.rel (%p3277) target = $region64
        $region63: #{acff_forward.1} parent=59 // pred_region
          %p3280 = scmp.lt.s32.totalorder %s20, 1
          %s3281 = scalar_select %p3280, %s20, 1
          %s3282 = smul.addr %s3281, 2
          %s3283 = smul.addr %s3282, 8
          %s3284 = scalar_lea.vmem %s7, %s3283
        $region64: #{acff_forward.1} parent=59 // pred_fallthru
          _
      $region60: #{acff_forward.1} parent=5 // pred_fallthru
        _
    $region6: #{acff_forward.1} parent=1 // loop_footer
      %s18 = sadd.s32 1, %s14
    $region7: #{acff_forward.1} parent=1 // loop_footer_branch
      %13 = sbr.rel target = $region3
    $region8: #{acff_forward.1} parent=1 // loop_exit
      _
    %3285 = vsyncpa [#allocation6], 1
    %s3286 = scalar_lea.sflag [#allocation6], 1
    %3287 = vsyncpa %s3286, 1

</llo_original>
